<compile_context>
chip_gen: v5e
topology: v5e:2x2
jax: 0.10.0
libtpu: 0.0.40
codegen_flags: <defaults>
</compile_context>

<pallas_src>
import math
import numpy as np

import jax
import jax.numpy as jnp
from jax.experimental import pallas as pl
from jax.experimental.pallas import tpu as pltpu


# ---------------------------------------------------------------------------
# Pallas kernel
# ---------------------------------------------------------------------------
def _make_kernel(steps, B, A, F, H, L, n_out, use_input):
    FourH = 4 * H
    TwoH = 2 * H
    BA = B * A
    n_diag = B + L - 1

    # Active-layer range (inclusive) on each anti-diagonal of the
    # (layer, seq-pos) grid; seq-pos s = d - l.
    diag_ranges = [(max(0, d - B + 1), min(L - 1, d)) for d in range(n_diag)]
    distinct_ranges = list(dict.fromkeys(diag_ranges))

    def kernel(x_ref,                       # (steps*BA, F) VMEM
               w1t, b1, w2t, b2,            # fc1_1 / fc1_2 (pre-transposed)
               wdiag, blstm,                # block-diag [Wih;Whh]: (L*2H, L*4H), (1, L*4H)
               w3t, b3, w4t, b4,            # fc2_1 / fc2_2
               out_ref):                    # (BA, steps*n_out) VMEM
        # ---- hoisted parameter loads --------------------------------------
        w1 = w1t[...]; bb1 = b1[...]
        w2 = w2t[...]; bb2 = b2[...]
        w3 = w3t[...]; bb3 = b3[...]
        w4 = w4t[...]; bb4 = b4[...]

        # Per-(lo, hi) block-diagonal weight / bias sub-blocks (static,
        # lane/sublane-aligned slices); hoisted out of the time loop.
        wd = {}
        for (lo, hi) in distinct_ranges:
            wd[(lo, hi)] = (
                wdiag[lo * TwoH:(hi + 1) * TwoH, lo * FourH:(hi + 1) * FourH],
                blstm[:, lo * FourH:(hi + 1) * FourH],
            )

        # Gate masks (compile-time constants), one per distinct active count:
        # lanes whose (lane mod 4H) falls in [2H, 3H) are the "g" (tanh) gate.
        gmask = {}
        for (lo, hi) in distinct_ranges:
            na = hi - lo + 1
            if na not in gmask:
                lane = jax.lax.broadcasted_iota(jnp.int32, (A, na * FourH), 1) % FourH
                gmask[na] = (lane >= 2 * H) & (lane < 3 * H)

        # ---- batched fc1 over ALL ground-truth step inputs -----------------
        X = x_ref[...]                                              # (steps*BA, F)
        v_gt = jnp.maximum(
            jnp.dot(X, w1, preferred_element_type=jnp.float32) + bb1, 0.0)
        v_gt = jnp.maximum(
            jnp.dot(v_gt, w2, preferred_element_type=jnp.float32) + bb2, 0.0)

        h_st = [jnp.zeros((A, H), jnp.float32) for _ in range(L)]
        c_st = [jnp.zeros((A, H), jnp.float32) for _ in range(L)]
        prev = None
        ys = []

        # Static (fully unrolled) time loop — schedule baked at trace time.
        # TODO(synk): for large T, use a time-chunked grid instead.
        for t in range(steps):
            if use_input[t]:
                ins = X[t * BA:(t + 1) * BA]                        # (BA, F)
                v = v_gt[t * BA:(t + 1) * BA]                       # (BA, H)
            else:
                ins = prev
                v = jnp.maximum(
                    jnp.dot(ins, w1, preferred_element_type=jnp.float32) + bb1, 0.0)
                v = jnp.maximum(
                    jnp.dot(v, w2, preferred_element_type=jnp.float32) + bb2, 0.0)

            # fc1 output per LSTM sequence position (LSTM seq axis = B).
            v_s = [v[s * A:(s + 1) * A] for s in range(B)]          # B x (A, H)

            # ---- wavefront LSTM recurrence ---------------------------------
            h_out = [[None] * B for _ in range(L)]
            for d in range(n_diag):
                lo, hi = diag_ranges[d]
                cells = [(l, d - l) for l in range(lo, hi + 1)]
                pieces = []
                for (l, s) in cells:
                    inp = v_s[s] if l == 0 else h_out[l - 1][s]     # (A, H)
                    pieces.append(inp)
                    pieces.append(h_st[l])                          # (A, H)
                pair = jnp.concatenate(pieces, axis=1)              # (A, na*2H)
                w_blk, b_blk = wd[(lo, hi)]
                gates = jnp.dot(pair, w_blk,
                                preferred_element_type=jnp.float32) + b_blk
                # Single-tanh activation: sigmoid(x) = 0.5*tanh(x/2) + 0.5.
                m = gmask[hi - lo + 1]
                z = jnp.where(m, gates, 0.5 * gates)
                th = jnp.tanh(z)
                act = jnp.where(m, th, 0.5 * th + 0.5)              # [i|f|g|o] blocks
                for idx, (l, s) in enumerate(cells):
                    a0 = idx * FourH
                    i_g = act[:, a0          : a0 + H]
                    f_g = act[:, a0 + H      : a0 + 2 * H]
                    g_g = act[:, a0 + 2 * H  : a0 + 3 * H]
                    o_g = act[:, a0 + 3 * H  : a0 + 4 * H]
                    c_new = f_g * c_st[l] + i_g * g_g
                    h_new = o_g * jnp.tanh(c_new)
                    c_st[l] = c_new
                    h_st[l] = h_new
                    h_out[l][s] = h_new

            # ---- fc2_1 -> relu -> fc2_2 -> residual (+ ins, ww=False) -------
            top = jnp.concatenate([h_out[L - 1][s] for s in range(B)], axis=0)  # (BA, H)
            y = jnp.maximum(
                jnp.dot(top, w3, preferred_element_type=jnp.float32) + bb3, 0.0)
            y = jnp.dot(y, w4, preferred_element_type=jnp.float32) + bb4
            y = y + ins                                             # (BA, n_out)
            ys.append(y)
            prev = y

        # One lane-dense store instead of `steps` masked 4-lane stores.
        out_ref[...] = jnp.concatenate(ys, axis=1)                  # (BA, steps*n_out)

    return kernel


# ---------------------------------------------------------------------------
# Wrapper (layout transposes, parameter prep, pallas_call)
# ---------------------------------------------------------------------------
def single_lstm_forward(params, inputs, prediction_steps, burn_in=False, burn_in_steps=1):
    """inputs: (B, n_atoms, T, n_in)  ->  (B, n_atoms, T-1, n_out)."""
    B, A, T, F = inputs.shape
    H = params['w1'].shape[0]
    L = params['wih'].shape[0]
    n_out = params['w4'].shape[0]
    assert n_out == F, "ww=False residual requires n_out == n_in"
    steps = T - 1
    BA = B * A

    # Static autoregressive schedule: True -> ground-truth input, False -> feedback.
    if burn_in:
        use_input = tuple(step <= burn_in_steps for step in range(steps))
    else:
        use_input = tuple(step % prediction_steps == 0 for step in range(steps))
    assert use_input[0], "first step must read ground truth"

    # Flatten (B, A) -> B*A in the wrapper (free layout plumbing; keeps the
    # kernel reshape-free).  Only steps 0..T-2 are ever read.
    x_flat = (jnp.transpose(inputs[:, :, :steps, :], (2, 0, 1, 3))
              .reshape(steps * BA, F).astype(jnp.float32))

    # Pre-transpose fc weights so the kernel does plain row-major matmuls.
    w1t = params['w1'].T.astype(jnp.float32)
    w2t = params['w2'].T.astype(jnp.float32)
    w3t = params['w3'].T.astype(jnp.float32)
    w4t = params['w4'].T.astype(jnp.float32)
    b1 = params['b1'][None, :].astype(jnp.float32)
    b2 = params['b2'][None, :].astype(jnp.float32)
    b3 = params['b3'][None, :].astype(jnp.float32)
    b4 = params['b4'][None, :].astype(jnp.float32)

    # Block-diagonal fused [Wih; Whh] weight (L*2H, L*4H); pre-added biases.
    wih_t = jnp.transpose(params['wih'], (0, 2, 1)).astype(jnp.float32)   # (L, H, 4H)
    whh_t = jnp.transpose(params['whh'], (0, 2, 1)).astype(jnp.float32)   # (L, H, 4H)
    w_pair = jnp.concatenate([wih_t, whh_t], axis=1)                      # (L, 2H, 4H)
    wdiag = jnp.zeros((L * 2 * H, L * 4 * H), jnp.float32)
    for l in range(L):
        wdiag = wdiag.at[l * 2 * H:(l + 1) * 2 * H,
                         l * 4 * H:(l + 1) * 4 * H].set(w_pair[l])
    b_lstm = (params['bih'] + params['bhh']).reshape(1, L * 4 * H).astype(jnp.float32)

    kernel = _make_kernel(steps, B, A, F, H, L, n_out, use_input)

    operands = (x_flat, w1t, b1, w2t, b2, wdiag, b_lstm, w3t, b3, w4t, b4)

    def full(arr):
        nd = arr.ndim
        return pl.BlockSpec(arr.shape, lambda i, nd=nd: (0,) * nd)

    grid_spec = pltpu.PrefetchScalarGridSpec(
        num_scalar_prefetch=0,
        grid=(1,),                                   # single invocation (toy T)
        in_specs=[full(a) for a in operands],
        out_specs=pl.BlockSpec((BA, steps * n_out), lambda i: (0, 0)),
    )

    out = pl.pallas_call(
        kernel,
        out_shape=jax.ShapeDtypeStruct((BA, steps * n_out), jnp.float32),
        grid_spec=grid_spec,
        compiler_params=pltpu.CompilerParams(dimension_semantics=("arbitrary",)),
    )(*operands)

    # TODO(synk): for production n_atoms add a leading "parallel" atom-tile
    # grid axis (atoms are independent) to use the second TensorCore on v7x.
    # (BA, steps*n_out) -> (B, A, steps, n_out); pure wrapper-side reshape.
    return out.reshape(B, A, steps, n_out)


# ---------------------------------------------------------------------------
# Deterministic parameter init mirroring SingleLSTM.__init__/init_weights
# ---------------------------------------------------------------------------
def init_params(key, n_in, n_hid, n_out, n_layers):
    H = n_hid
    keys = jax.random.split(key, 4 + 4 * n_layers)

    def xavier(k, fan_out, fan_in):                    # xavier_normal_, gain=1
        std = math.sqrt(2.0 / (fan_in + fan_out))
        return (std * jax.random.normal(k, (fan_out, fan_in))).astype(jnp.float32)

    bound = 1.0 / math.sqrt(H)                         # PyTorch LSTM default init

    def uni(k, shape):
        return jax.random.uniform(k, shape, minval=-bound, maxval=bound,
                                  dtype=jnp.float32)

    return {
        'w1': xavier(keys[0], H, n_in),  'b1': jnp.full((H,), 0.1, jnp.float32),
        'w2': xavier(keys[1], H, H),     'b2': jnp.full((H,), 0.1, jnp.float32),
        'w3': xavier(keys[2], H, H),     'b3': jnp.full((H,), 0.1, jnp.float32),
        'w4': xavier(keys[3], n_out, H), 'b4': jnp.full((n_out,), 0.1, jnp.float32),
        'wih': jnp.stack([uni(keys[4 + 4 * l + 0], (4 * H, H)) for l in range(n_layers)]),
        'whh': jnp.stack([uni(keys[4 + 4 * l + 1], (4 * H, H)) for l in range(n_layers)]),
        'bih': jnp.stack([uni(keys[4 + 4 * l + 2], (4 * H,)) for l in range(n_layers)]),
        'bhh': jnp.stack([uni(keys[4 + 4 * l + 3], (4 * H,)) for l in range(n_layers)]),
    }


# ---------------------------------------------------------------------------
# Pure-JAX reference (numerical sanity check)
# ---------------------------------------------------------------------------
def reference_forward(params, inputs, prediction_steps, burn_in=False, burn_in_steps=1):
    B, A, T, _ = inputs.shape
    H = params['w1'].shape[0]
    L = params['wih'].shape[0]
    h = jnp.zeros((L, A, H), jnp.float32)
    c = jnp.zeros((L, A, H), jnp.float32)
    outputs, prev = [], None
    for step in range(T - 1):
        use = (step <= burn_in_steps) if burn_in else (step % prediction_steps == 0)
        ins = inputs[:, :, step, :] if use else prev
        x = jax.nn.relu(jnp.einsum('baf,hf->bah', ins, params['w1']) + params['b1'])
        x = jax.nn.relu(jnp.einsum('bah,gh->bag', x, params['w2']) + params['b2'])
        layer_in = x
        for l in range(L):
            hl, cl = h[l], c[l]
            outs = []
            for s in range(B):
                gates = (layer_in[s] @ params['wih'][l].T + params['bih'][l]
                         + hl @ params['whh'][l].T + params['bhh'][l])
                i_g = jax.nn.sigmoid(gates[:, 0:H])
                f_g = jax.nn.sigmoid(gates[:, H:2 * H])
                g_g = jnp.tanh(gates[:, 2 * H:3 * H])
                o_g = jax.nn.sigmoid(gates[:, 3 * H:4 * H])
                cl = f_g * cl + i_g * g_g
                hl = o_g * jnp.tanh(cl)
                outs.append(hl)
            h = h.at[l].set(hl)
            c = c.at[l].set(cl)
            layer_in = jnp.stack(outs, axis=0)
        y = jax.nn.relu(jnp.einsum('bah,gh->bag', layer_in, params['w3']) + params['b3'])
        y = jnp.einsum('bah,oh->bao', y, params['w4']) + params['b4']
        y = y + ins
        outputs.append(y)
        prev = y
    return jnp.stack(outputs, axis=2)


if __name__ == "__main__":
    # SingleLSTM(n_in=4, n_hid=32, n_out=4, n_atoms=4, n_layers=2)
    B, A, T = 2, 4, 8
    n_in = n_out = 4
    n_hid = 32
    n_layers = 2

    key = jax.random.PRNGKey(0)
    kp, kx = jax.random.split(key)
    params = init_params(kp, n_in, n_hid, n_out, n_layers)
    inputs = jax.random.normal(kx, (B, A, T, n_in), dtype=jnp.float32)

    # Modulo schedule.
    out = single_lstm_forward(params, inputs, prediction_steps=2)
    out = jax.block_until_ready(out)
    assert out.shape == (B, A, T - 1, n_out)
    ref = reference_forward(params, inputs, prediction_steps=2)
    np.testing.assert_allclose(np.asarray(out), np.asarray(ref), rtol=1e-3, atol=1e-3)

    # Burn-in schedule.
    out_bi = single_lstm_forward(params, inputs, prediction_steps=2,
                                 burn_in=True, burn_in_steps=2)
    out_bi = jax.block_until_ready(out_bi)
    ref_bi = reference_forward(params, inputs, prediction_steps=2,
                               burn_in=True, burn_in_steps=2)
    np.testing.assert_allclose(np.asarray(out_bi), np.asarray(ref_bi),
                               rtol=1e-3, atol=1e-3)

    print("KERNEL_OK")
</pallas_src>

<mosaic_0001>
module attributes {stable_mosaic.version = 11 : i64} {
  func.func @kernel(%arg0: i32, %arg1: memref<56x4xf32, #tpu.memory_space<vmem>>, %arg2: memref<4x32xf32, #tpu.memory_space<vmem>>, %arg3: memref<1x32xf32, #tpu.memory_space<vmem>>, %arg4: memref<32x32xf32, #tpu.memory_space<vmem>>, %arg5: memref<1x32xf32, #tpu.memory_space<vmem>>, %arg6: memref<128x256xf32, #tpu.memory_space<vmem>>, %arg7: memref<1x256xf32, #tpu.memory_space<vmem>>, %arg8: memref<32x32xf32, #tpu.memory_space<vmem>>, %arg9: memref<1x32xf32, #tpu.memory_space<vmem>>, %arg10: memref<32x4xf32, #tpu.memory_space<vmem>>, %arg11: memref<1x4xf32, #tpu.memory_space<vmem>>, %arg12: memref<8x28xf32, #tpu.memory_space<vmem>>) attributes {dimension_semantics = [#tpu.dimension_semantics<arbitrary>], iteration_bounds = array<i64: 1>, scalar_prefetch = 0 : i64, scratch_operands = 0 : i64, tpu.core_type = #tpu.core_type<tc>, window_params = [{pipeline_mode = #tpu.pipeline_mode<synchronous>, transform_indices = @transform_0, window_bounds = array<i64: 56, 4>}, {pipeline_mode = #tpu.pipeline_mode<synchronous>, transform_indices = @transform_1, window_bounds = array<i64: 4, 32>}, {pipeline_mode = #tpu.pipeline_mode<synchronous>, transform_indices = @transform_2, window_bounds = array<i64: 1, 32>}, {pipeline_mode = #tpu.pipeline_mode<synchronous>, transform_indices = @transform_3, window_bounds = array<i64: 32, 32>}, {pipeline_mode = #tpu.pipeline_mode<synchronous>, transform_indices = @transform_4, window_bounds = array<i64: 1, 32>}, {pipeline_mode = #tpu.pipeline_mode<synchronous>, transform_indices = @transform_5, window_bounds = array<i64: 128, 256>}, {pipeline_mode = #tpu.pipeline_mode<synchronous>, transform_indices = @transform_6, window_bounds = array<i64: 1, 256>}, {pipeline_mode = #tpu.pipeline_mode<synchronous>, transform_indices = @transform_7, window_bounds = array<i64: 32, 32>}, {pipeline_mode = #tpu.pipeline_mode<synchronous>, transform_indices = @transform_8, window_bounds = array<i64: 1, 32>}, {pipeline_mode = #tpu.pipeline_mode<synchronous>, transform_indices = @transform_9, window_bounds = array<i64: 32, 4>}, {pipeline_mode = #tpu.pipeline_mode<synchronous>, transform_indices = @transform_10, window_bounds = array<i64: 1, 4>}, {pipeline_mode = #tpu.pipeline_mode<synchronous>, transform_indices = @transform_11, window_bounds = array<i64: 8, 28>}]} {
    %c0 = arith.constant 0 : index
    %c0_0 = arith.constant 0 : index
    %0 = vector.load %arg2[%c0, %c0_0] : memref<4x32xf32, #tpu.memory_space<vmem>>, vector<4x32xf32>
    %c0_1 = arith.constant 0 : index
    %c0_2 = arith.constant 0 : index
    %1 = vector.load %arg3[%c0_1, %c0_2] : memref<1x32xf32, #tpu.memory_space<vmem>>, vector<1x32xf32>
    %c0_3 = arith.constant 0 : index
    %c0_4 = arith.constant 0 : index
    %2 = vector.load %arg4[%c0_3, %c0_4] : memref<32x32xf32, #tpu.memory_space<vmem>>, vector<32x32xf32>
    %c0_5 = arith.constant 0 : index
    %c0_6 = arith.constant 0 : index
    %3 = vector.load %arg5[%c0_5, %c0_6] : memref<1x32xf32, #tpu.memory_space<vmem>>, vector<1x32xf32>
    %c0_7 = arith.constant 0 : index
    %c0_8 = arith.constant 0 : index
    %4 = vector.load %arg8[%c0_7, %c0_8] : memref<32x32xf32, #tpu.memory_space<vmem>>, vector<32x32xf32>
    %c0_9 = arith.constant 0 : index
    %c0_10 = arith.constant 0 : index
    %5 = vector.load %arg9[%c0_9, %c0_10] : memref<1x32xf32, #tpu.memory_space<vmem>>, vector<1x32xf32>
    %c0_11 = arith.constant 0 : index
    %c0_12 = arith.constant 0 : index
    %6 = vector.load %arg10[%c0_11, %c0_12] : memref<32x4xf32, #tpu.memory_space<vmem>>, vector<32x4xf32>
    %c0_13 = arith.constant 0 : index
    %c0_14 = arith.constant 0 : index
    %7 = vector.load %arg11[%c0_13, %c0_14] : memref<1x4xf32, #tpu.memory_space<vmem>>, vector<1x4xf32>
    %c0_15 = arith.constant 0 : index
    %c0_16 = arith.constant 0 : index
    %8 = vector.load %arg6[%c0_15, %c0_16] : memref<128x256xf32, #tpu.memory_space<vmem>>, vector<64x128xf32>
    %c0_17 = arith.constant 0 : index
    %c0_18 = arith.constant 0 : index
    %9 = vector.load %arg7[%c0_17, %c0_18] : memref<1x256xf32, #tpu.memory_space<vmem>>, vector<1x128xf32>
    %c0_19 = arith.constant 0 : index
    %c0_20 = arith.constant 0 : index
    %10 = vector.load %arg6[%c0_19, %c0_20] : memref<128x256xf32, #tpu.memory_space<vmem>>, vector<128x256xf32>
    %c0_21 = arith.constant 0 : index
    %c0_22 = arith.constant 0 : index
    %11 = vector.load %arg7[%c0_21, %c0_22] : memref<1x256xf32, #tpu.memory_space<vmem>>, vector<1x256xf32>
    %c64 = arith.constant 64 : index
    %c128 = arith.constant 128 : index
    %12 = vector.load %arg6[%c64, %c128] : memref<128x256xf32, #tpu.memory_space<vmem>>, vector<64x128xf32>
    %c0_23 = arith.constant 0 : index
    %c128_24 = arith.constant 128 : index
    %13 = vector.load %arg7[%c0_23, %c128_24] : memref<1x256xf32, #tpu.memory_space<vmem>>, vector<1x128xf32>
    %14 = tpu.iota {dimensions = array<i32: 1>} : vector<4x128xi32>
    %c128_i32 = arith.constant 128 : i32
    %c0_i32 = arith.constant 0 : i32
    %15 = arith.cmpi eq, %c128_i32, %c0_i32 : i32
    %c1_i32 = arith.constant 1 : i32
    %16 = arith.select %15, %c1_i32, %c128_i32 : i32
    %17 = vector.broadcast %16 : i32 to vector<4x128xi32>
    %18 = arith.remsi %14, %17 : vector<4x128xi32>
    %c0_i32_25 = arith.constant 0 : i32
    %19 = vector.broadcast %c0_i32_25 : i32 to vector<4x128xi32>
    %20 = arith.cmpi ne, %18, %19 : vector<4x128xi32>
    %c0_i32_26 = arith.constant 0 : i32
    %21 = vector.broadcast %c0_i32_26 : i32 to vector<4x128xi32>
    %22 = arith.cmpi slt, %18, %21 : vector<4x128xi32>
    %c0_i32_27 = arith.constant 0 : i32
    %23 = arith.cmpi slt, %16, %c0_i32_27 : i32
    %24 = vector.broadcast %23 : i1 to vector<4x128xi1>
    %25 = vector.broadcast %24 : vector<4x128xi1> to vector<4x128xi1>
    %26 = arith.xori %22, %25 : vector<4x128xi1>
    %27 = arith.andi %26, %20 : vector<4x128xi1>
    %28 = vector.broadcast %16 : i32 to vector<4x128xi32>
    %29 = arith.addi %18, %28 : vector<4x128xi32>
    %30 = arith.select %27, %29, %18 : vector<4x128xi1>, vector<4x128xi32>
    %c64_i32 = arith.constant 64 : i32
    %31 = vector.broadcast %c64_i32 : i32 to vector<4x128xi32>
    %32 = arith.cmpi sge, %30, %31 : vector<4x128xi32>
    %c96_i32 = arith.constant 96 : i32
    %33 = vector.broadcast %c96_i32 : i32 to vector<4x128xi32>
    %34 = arith.cmpi slt, %30, %33 : vector<4x128xi32>
    %35 = arith.andi %32, %34 : vector<4x128xi1>
    %36 = tpu.iota {dimensions = array<i32: 1>} : vector<4x256xi32>
    %c128_i32_28 = arith.constant 128 : i32
    %c0_i32_29 = arith.constant 0 : i32
    %37 = arith.cmpi eq, %c128_i32_28, %c0_i32_29 : i32
    %c1_i32_30 = arith.constant 1 : i32
    %38 = arith.select %37, %c1_i32_30, %c128_i32_28 : i32
    %39 = vector.broadcast %38 : i32 to vector<4x256xi32>
    %40 = arith.remsi %36, %39 : vector<4x256xi32>
    %c0_i32_31 = arith.constant 0 : i32
    %41 = vector.broadcast %c0_i32_31 : i32 to vector<4x256xi32>
    %42 = arith.cmpi ne, %40, %41 : vector<4x256xi32>
    %c0_i32_32 = arith.constant 0 : i32
    %43 = vector.broadcast %c0_i32_32 : i32 to vector<4x256xi32>
    %44 = arith.cmpi slt, %40, %43 : vector<4x256xi32>
    %c0_i32_33 = arith.constant 0 : i32
    %45 = arith.cmpi slt, %38, %c0_i32_33 : i32
    %46 = vector.broadcast %45 : i1 to vector<4x256xi1>
    %47 = vector.broadcast %46 : vector<4x256xi1> to vector<4x256xi1>
    %48 = arith.xori %44, %47 : vector<4x256xi1>
    %49 = arith.andi %48, %42 : vector<4x256xi1>
    %50 = vector.broadcast %38 : i32 to vector<4x256xi32>
    %51 = arith.addi %40, %50 : vector<4x256xi32>
    %52 = arith.select %49, %51, %40 : vector<4x256xi1>, vector<4x256xi32>
    %c64_i32_34 = arith.constant 64 : i32
    %53 = vector.broadcast %c64_i32_34 : i32 to vector<4x256xi32>
    %54 = arith.cmpi sge, %52, %53 : vector<4x256xi32>
    %c96_i32_35 = arith.constant 96 : i32
    %55 = vector.broadcast %c96_i32_35 : i32 to vector<4x256xi32>
    %56 = arith.cmpi slt, %52, %55 : vector<4x256xi32>
    %57 = arith.andi %54, %56 : vector<4x256xi1>
    %c0_36 = arith.constant 0 : index
    %c0_37 = arith.constant 0 : index
    %58 = vector.load %arg1[%c0_36, %c0_37] : memref<56x4xf32, #tpu.memory_space<vmem>>, vector<56x4xf32>
    %cst = arith.constant dense<0.000000e+00> : vector<56x32xf32>
    %59 = tpu.matmul %58, %0, %cst {dimension_numbers = #tpu.dot_dimension_numbers<[1], [0], [0], [1], [0, 0, 1, 1], [], []>} : vector<56x4xf32>, vector<4x32xf32>, vector<56x32xf32> -> vector<56x32xf32>
    %60 = vector.broadcast %1 : vector<1x32xf32> to vector<56x32xf32>
    %61 = arith.addf %59, %60 : vector<56x32xf32>
    %cst_38 = arith.constant 0.000000e+00 : f32
    %62 = vector.broadcast %cst_38 : f32 to vector<56x32xf32>
    %63 = arith.maximumf %61, %62 : vector<56x32xf32>
    %cst_39 = arith.constant dense<0.000000e+00> : vector<56x32xf32>
    %64 = tpu.matmul %63, %2, %cst_39 {dimension_numbers = #tpu.dot_dimension_numbers<[1], [0], [0], [1], [0, 0, 1, 1], [], []>} : vector<56x32xf32>, vector<32x32xf32>, vector<56x32xf32> -> vector<56x32xf32>
    %65 = vector.broadcast %3 : vector<1x32xf32> to vector<56x32xf32>
    %66 = arith.addf %64, %65 : vector<56x32xf32>
    %cst_40 = arith.constant 0.000000e+00 : f32
    %67 = vector.broadcast %cst_40 : f32 to vector<56x32xf32>
    %68 = arith.maximumf %66, %67 : vector<56x32xf32>
    %cst_41 = arith.constant 0.000000e+00 : f32
    %69 = vector.broadcast %cst_41 : f32 to vector<4x32xf32>
    %cst_42 = arith.constant 0.000000e+00 : f32
    %70 = vector.broadcast %cst_42 : f32 to vector<4x32xf32>
    %cst_43 = arith.constant 0.000000e+00 : f32
    %71 = vector.broadcast %cst_43 : f32 to vector<4x32xf32>
    %cst_44 = arith.constant 0.000000e+00 : f32
    %72 = vector.broadcast %cst_44 : f32 to vector<4x32xf32>
    %73 = vector.extract_strided_slice %58 {offsets = [0, 0], sizes = [8, 4], strides = [1, 1]} : vector<56x4xf32> to vector<8x4xf32>
    %74 = vector.extract_strided_slice %68 {offsets = [0, 0], sizes = [8, 32], strides = [1, 1]} : vector<56x32xf32> to vector<8x32xf32>
    %75 = vector.extract_strided_slice %74 {offsets = [0, 0], sizes = [4, 32], strides = [1, 1]} : vector<8x32xf32> to vector<4x32xf32>
    %76 = vector.extract_strided_slice %74 {offsets = [4, 0], sizes = [4, 32], strides = [1, 1]} : vector<8x32xf32> to vector<4x32xf32>
    %77 = tpu.concatenate %75, %69 in 1 : vector<4x32xf32>, vector<4x32xf32> -> vector<4x64xf32>
    %cst_45 = arith.constant dense<0.000000e+00> : vector<4x128xf32>
    %78 = tpu.matmul %77, %8, %cst_45 {dimension_numbers = #tpu.dot_dimension_numbers<[1], [0], [0], [1], [0, 0, 1, 1], [], []>} : vector<4x64xf32>, vector<64x128xf32>, vector<4x128xf32> -> vector<4x128xf32>
    %79 = vector.broadcast %9 : vector<1x128xf32> to vector<4x128xf32>
    %80 = arith.addf %78, %79 : vector<4x128xf32>
    %cst_46 = arith.constant 5.000000e-01 : f32
    %81 = vector.broadcast %cst_46 : f32 to vector<4x128xf32>
    %82 = arith.mulf %81, %80 : vector<4x128xf32>
    %83 = arith.select %35, %80, %82 : vector<4x128xi1>, vector<4x128xf32>
    %84 = math.tanh %83 : vector<4x128xf32>
    %cst_47 = arith.constant 5.000000e-01 : f32
    %85 = vector.broadcast %cst_47 : f32 to vector<4x128xf32>
    %86 = arith.mulf %85, %84 : vector<4x128xf32>
    %cst_48 = arith.constant 5.000000e-01 : f32
    %87 = vector.broadcast %cst_48 : f32 to vector<4x128xf32>
    %88 = arith.addf %86, %87 : vector<4x128xf32>
    %89 = arith.select %35, %84, %88 : vector<4x128xi1>, vector<4x128xf32>
    %90 = vector.extract_strided_slice %89 {offsets = [0, 0], sizes = [4, 32], strides = [1, 1]} : vector<4x128xf32> to vector<4x32xf32>
    %91 = vector.extract_strided_slice %89 {offsets = [0, 32], sizes = [4, 32], strides = [1, 1]} : vector<4x128xf32> to vector<4x32xf32>
    %92 = vector.extract_strided_slice %89 {offsets = [0, 64], sizes = [4, 32], strides = [1, 1]} : vector<4x128xf32> to vector<4x32xf32>
    %93 = vector.extract_strided_slice %89 {offsets = [0, 96], sizes = [4, 32], strides = [1, 1]} : vector<4x128xf32> to vector<4x32xf32>
    %94 = arith.mulf %91, %71 : vector<4x32xf32>
    %95 = arith.mulf %90, %92 : vector<4x32xf32>
    %96 = arith.addf %94, %95 : vector<4x32xf32>
    %97 = math.tanh %96 : vector<4x32xf32>
    %98 = arith.mulf %93, %97 : vector<4x32xf32>
    %99 = tpu.concatenate %76, %98, %98, %70 in 1 : vector<4x32xf32>, vector<4x32xf32>, vector<4x32xf32>, vector<4x32xf32> -> vector<4x128xf32>
    %cst_49 = arith.constant dense<0.000000e+00> : vector<4x256xf32>
    %100 = tpu.matmul %99, %10, %cst_49 {dimension_numbers = #tpu.dot_dimension_numbers<[1], [0], [0], [1], [0, 0, 1, 1], [], []>} : vector<4x128xf32>, vector<128x256xf32>, vector<4x256xf32> -> vector<4x256xf32>
    %101 = vector.broadcast %11 : vector<1x256xf32> to vector<4x256xf32>
    %102 = arith.addf %100, %101 : vector<4x256xf32>
    %cst_50 = arith.constant 5.000000e-01 : f32
    %103 = vector.broadcast %cst_50 : f32 to vector<4x256xf32>
    %104 = arith.mulf %103, %102 : vector<4x256xf32>
    %105 = arith.select %57, %102, %104 : vector<4x256xi1>, vector<4x256xf32>
    %106 = math.tanh %105 : vector<4x256xf32>
    %cst_51 = arith.constant 5.000000e-01 : f32
    %107 = vector.broadcast %cst_51 : f32 to vector<4x256xf32>
    %108 = arith.mulf %107, %106 : vector<4x256xf32>
    %cst_52 = arith.constant 5.000000e-01 : f32
    %109 = vector.broadcast %cst_52 : f32 to vector<4x256xf32>
    %110 = arith.addf %108, %109 : vector<4x256xf32>
    %111 = arith.select %57, %106, %110 : vector<4x256xi1>, vector<4x256xf32>
    %112 = vector.extract_strided_slice %111 {offsets = [0, 0], sizes = [4, 32], strides = [1, 1]} : vector<4x256xf32> to vector<4x32xf32>
    %113 = vector.extract_strided_slice %111 {offsets = [0, 32], sizes = [4, 32], strides = [1, 1]} : vector<4x256xf32> to vector<4x32xf32>
    %114 = vector.extract_strided_slice %111 {offsets = [0, 64], sizes = [4, 32], strides = [1, 1]} : vector<4x256xf32> to vector<4x32xf32>
    %115 = vector.extract_strided_slice %111 {offsets = [0, 96], sizes = [4, 32], strides = [1, 1]} : vector<4x256xf32> to vector<4x32xf32>
    %116 = arith.mulf %113, %96 : vector<4x32xf32>
    %117 = arith.mulf %112, %114 : vector<4x32xf32>
    %118 = arith.addf %116, %117 : vector<4x32xf32>
    %119 = math.tanh %118 : vector<4x32xf32>
    %120 = arith.mulf %115, %119 : vector<4x32xf32>
    %121 = vector.extract_strided_slice %111 {offsets = [0, 128], sizes = [4, 32], strides = [1, 1]} : vector<4x256xf32> to vector<4x32xf32>
    %122 = vector.extract_strided_slice %111 {offsets = [0, 160], sizes = [4, 32], strides = [1, 1]} : vector<4x256xf32> to vector<4x32xf32>
    %123 = vector.extract_strided_slice %111 {offsets = [0, 192], sizes = [4, 32], strides = [1, 1]} : vector<4x256xf32> to vector<4x32xf32>
    %124 = vector.extract_strided_slice %111 {offsets = [0, 224], sizes = [4, 32], strides = [1, 1]} : vector<4x256xf32> to vector<4x32xf32>
    %125 = arith.mulf %122, %72 : vector<4x32xf32>
    %126 = arith.mulf %121, %123 : vector<4x32xf32>
    %127 = arith.addf %125, %126 : vector<4x32xf32>
    %128 = math.tanh %127 : vector<4x32xf32>
    %129 = arith.mulf %124, %128 : vector<4x32xf32>
    %130 = tpu.concatenate %120, %129 in 1 : vector<4x32xf32>, vector<4x32xf32> -> vector<4x64xf32>
    %cst_53 = arith.constant dense<0.000000e+00> : vector<4x128xf32>
    %131 = tpu.matmul %130, %12, %cst_53 {dimension_numbers = #tpu.dot_dimension_numbers<[1], [0], [0], [1], [0, 0, 1, 1], [], []>} : vector<4x64xf32>, vector<64x128xf32>, vector<4x128xf32> -> vector<4x128xf32>
    %132 = vector.broadcast %13 : vector<1x128xf32> to vector<4x128xf32>
    %133 = arith.addf %131, %132 : vector<4x128xf32>
    %cst_54 = arith.constant 5.000000e-01 : f32
    %134 = vector.broadcast %cst_54 : f32 to vector<4x128xf32>
    %135 = arith.mulf %134, %133 : vector<4x128xf32>
    %136 = arith.select %35, %133, %135 : vector<4x128xi1>, vector<4x128xf32>
    %137 = math.tanh %136 : vector<4x128xf32>
    %cst_55 = arith.constant 5.000000e-01 : f32
    %138 = vector.broadcast %cst_55 : f32 to vector<4x128xf32>
    %139 = arith.mulf %138, %137 : vector<4x128xf32>
    %cst_56 = arith.constant 5.000000e-01 : f32
    %140 = vector.broadcast %cst_56 : f32 to vector<4x128xf32>
    %141 = arith.addf %139, %140 : vector<4x128xf32>
    %142 = arith.select %35, %137, %141 : vector<4x128xi1>, vector<4x128xf32>
    %143 = vector.extract_strided_slice %142 {offsets = [0, 0], sizes = [4, 32], strides = [1, 1]} : vector<4x128xf32> to vector<4x32xf32>
    %144 = vector.extract_strided_slice %142 {offsets = [0, 32], sizes = [4, 32], strides = [1, 1]} : vector<4x128xf32> to vector<4x32xf32>
    %145 = vector.extract_strided_slice %142 {offsets = [0, 64], sizes = [4, 32], strides = [1, 1]} : vector<4x128xf32> to vector<4x32xf32>
    %146 = vector.extract_strided_slice %142 {offsets = [0, 96], sizes = [4, 32], strides = [1, 1]} : vector<4x128xf32> to vector<4x32xf32>
    %147 = arith.mulf %144, %127 : vector<4x32xf32>
    %148 = arith.mulf %143, %145 : vector<4x32xf32>
    %149 = arith.addf %147, %148 : vector<4x32xf32>
    %150 = math.tanh %149 : vector<4x32xf32>
    %151 = arith.mulf %146, %150 : vector<4x32xf32>
    %152 = tpu.concatenate %129, %151 in 0 : vector<4x32xf32>, vector<4x32xf32> -> vector<8x32xf32>
    %cst_57 = arith.constant dense<0.000000e+00> : vector<8x32xf32>
    %153 = tpu.matmul %152, %4, %cst_57 {dimension_numbers = #tpu.dot_dimension_numbers<[1], [0], [0], [1], [0, 0, 1, 1], [], []>} : vector<8x32xf32>, vector<32x32xf32>, vector<8x32xf32> -> vector<8x32xf32>
    %154 = vector.broadcast %5 : vector<1x32xf32> to vector<8x32xf32>
    %155 = arith.addf %153, %154 : vector<8x32xf32>
    %cst_58 = arith.constant 0.000000e+00 : f32
    %156 = vector.broadcast %cst_58 : f32 to vector<8x32xf32>
    %157 = arith.maximumf %155, %156 : vector<8x32xf32>
    %cst_59 = arith.constant dense<0.000000e+00> : vector<8x4xf32>
    %158 = tpu.matmul %157, %6, %cst_59 {dimension_numbers = #tpu.dot_dimension_numbers<[1], [0], [0], [1], [0, 0, 1, 1], [], []>} : vector<8x32xf32>, vector<32x4xf32>, vector<8x4xf32> -> vector<8x4xf32>
    %159 = vector.broadcast %7 : vector<1x4xf32> to vector<8x4xf32>
    %160 = arith.addf %158, %159 : vector<8x4xf32>
    %161 = arith.addf %160, %73 : vector<8x4xf32>
    %cst_60 = arith.constant dense<0.000000e+00> : vector<8x32xf32>
    %162 = tpu.matmul %161, %0, %cst_60 {dimension_numbers = #tpu.dot_dimension_numbers<[1], [0], [0], [1], [0, 0, 1, 1], [], []>} : vector<8x4xf32>, vector<4x32xf32>, vector<8x32xf32> -> vector<8x32xf32>
    %163 = vector.broadcast %1 : vector<1x32xf32> to vector<8x32xf32>
    %164 = arith.addf %162, %163 : vector<8x32xf32>
    %cst_61 = arith.constant 0.000000e+00 : f32
    %165 = vector.broadcast %cst_61 : f32 to vector<8x32xf32>
    %166 = arith.maximumf %164, %165 : vector<8x32xf32>
    %cst_62 = arith.constant dense<0.000000e+00> : vector<8x32xf32>
    %167 = tpu.matmul %166, %2, %cst_62 {dimension_numbers = #tpu.dot_dimension_numbers<[1], [0], [0], [1], [0, 0, 1, 1], [], []>} : vector<8x32xf32>, vector<32x32xf32>, vector<8x32xf32> -> vector<8x32xf32>
    %168 = vector.broadcast %3 : vector<1x32xf32> to vector<8x32xf32>
    %169 = arith.addf %167, %168 : vector<8x32xf32>
    %cst_63 = arith.constant 0.000000e+00 : f32
    %170 = vector.broadcast %cst_63 : f32 to vector<8x32xf32>
    %171 = arith.maximumf %169, %170 : vector<8x32xf32>
    %172 = vector.extract_strided_slice %171 {offsets = [0, 0], sizes = [4, 32], strides = [1, 1]} : vector<8x32xf32> to vector<4x32xf32>
    %173 = vector.extract_strided_slice %171 {offsets = [4, 0], sizes = [4, 32], strides = [1, 1]} : vector<8x32xf32> to vector<4x32xf32>
    %174 = tpu.concatenate %172, %120 in 1 : vector<4x32xf32>, vector<4x32xf32> -> vector<4x64xf32>
    %cst_64 = arith.constant dense<0.000000e+00> : vector<4x128xf32>
    %175 = tpu.matmul %174, %8, %cst_64 {dimension_numbers = #tpu.dot_dimension_numbers<[1], [0], [0], [1], [0, 0, 1, 1], [], []>} : vector<4x64xf32>, vector<64x128xf32>, vector<4x128xf32> -> vector<4x128xf32>
    %176 = vector.broadcast %9 : vector<1x128xf32> to vector<4x128xf32>
    %177 = arith.addf %175, %176 : vector<4x128xf32>
    %cst_65 = arith.constant 5.000000e-01 : f32
    %178 = vector.broadcast %cst_65 : f32 to vector<4x128xf32>
    %179 = arith.mulf %178, %177 : vector<4x128xf32>
    %180 = arith.select %35, %177, %179 : vector<4x128xi1>, vector<4x128xf32>
    %181 = math.tanh %180 : vector<4x128xf32>
    %cst_66 = arith.constant 5.000000e-01 : f32
    %182 = vector.broadcast %cst_66 : f32 to vector<4x128xf32>
    %183 = arith.mulf %182, %181 : vector<4x128xf32>
    %cst_67 = arith.constant 5.000000e-01 : f32
    %184 = vector.broadcast %cst_67 : f32 to vector<4x128xf32>
    %185 = arith.addf %183, %184 : vector<4x128xf32>
    %186 = arith.select %35, %181, %185 : vector<4x128xi1>, vector<4x128xf32>
    %187 = vector.extract_strided_slice %186 {offsets = [0, 0], sizes = [4, 32], strides = [1, 1]} : vector<4x128xf32> to vector<4x32xf32>
    %188 = vector.extract_strided_slice %186 {offsets = [0, 32], sizes = [4, 32], strides = [1, 1]} : vector<4x128xf32> to vector<4x32xf32>
    %189 = vector.extract_strided_slice %186 {offsets = [0, 64], sizes = [4, 32], strides = [1, 1]} : vector<4x128xf32> to vector<4x32xf32>
    %190 = vector.extract_strided_slice %186 {offsets = [0, 96], sizes = [4, 32], strides = [1, 1]} : vector<4x128xf32> to vector<4x32xf32>
    %191 = arith.mulf %188, %118 : vector<4x32xf32>
    %192 = arith.mulf %187, %189 : vector<4x32xf32>
    %193 = arith.addf %191, %192 : vector<4x32xf32>
    %194 = math.tanh %193 : vector<4x32xf32>
    %195 = arith.mulf %190, %194 : vector<4x32xf32>
    %196 = tpu.concatenate %173, %195, %195, %151 in 1 : vector<4x32xf32>, vector<4x32xf32>, vector<4x32xf32>, vector<4x32xf32> -> vector<4x128xf32>
    %cst_68 = arith.constant dense<0.000000e+00> : vector<4x256xf32>
    %197 = tpu.matmul %196, %10, %cst_68 {dimension_numbers = #tpu.dot_dimension_numbers<[1], [0], [0], [1], [0, 0, 1, 1], [], []>} : vector<4x128xf32>, vector<128x256xf32>, vector<4x256xf32> -> vector<4x256xf32>
    %198 = vector.broadcast %11 : vector<1x256xf32> to vector<4x256xf32>
    %199 = arith.addf %197, %198 : vector<4x256xf32>
    %cst_69 = arith.constant 5.000000e-01 : f32
    %200 = vector.broadcast %cst_69 : f32 to vector<4x256xf32>
    %201 = arith.mulf %200, %199 : vector<4x256xf32>
    %202 = arith.select %57, %199, %201 : vector<4x256xi1>, vector<4x256xf32>
    %203 = math.tanh %202 : vector<4x256xf32>
    %cst_70 = arith.constant 5.000000e-01 : f32
    %204 = vector.broadcast %cst_70 : f32 to vector<4x256xf32>
    %205 = arith.mulf %204, %203 : vector<4x256xf32>
    %cst_71 = arith.constant 5.000000e-01 : f32
    %206 = vector.broadcast %cst_71 : f32 to vector<4x256xf32>
    %207 = arith.addf %205, %206 : vector<4x256xf32>
    %208 = arith.select %57, %203, %207 : vector<4x256xi1>, vector<4x256xf32>
    %209 = vector.extract_strided_slice %208 {offsets = [0, 0], sizes = [4, 32], strides = [1, 1]} : vector<4x256xf32> to vector<4x32xf32>
    %210 = vector.extract_strided_slice %208 {offsets = [0, 32], sizes = [4, 32], strides = [1, 1]} : vector<4x256xf32> to vector<4x32xf32>
    %211 = vector.extract_strided_slice %208 {offsets = [0, 64], sizes = [4, 32], strides = [1, 1]} : vector<4x256xf32> to vector<4x32xf32>
    %212 = vector.extract_strided_slice %208 {offsets = [0, 96], sizes = [4, 32], strides = [1, 1]} : vector<4x256xf32> to vector<4x32xf32>
    %213 = arith.mulf %210, %193 : vector<4x32xf32>
    %214 = arith.mulf %209, %211 : vector<4x32xf32>
    %215 = arith.addf %213, %214 : vector<4x32xf32>
    %216 = math.tanh %215 : vector<4x32xf32>
    %217 = arith.mulf %212, %216 : vector<4x32xf32>
    %218 = vector.extract_strided_slice %208 {offsets = [0, 128], sizes = [4, 32], strides = [1, 1]} : vector<4x256xf32> to vector<4x32xf32>
    %219 = vector.extract_strided_slice %208 {offsets = [0, 160], sizes = [4, 32], strides = [1, 1]} : vector<4x256xf32> to vector<4x32xf32>
    %220 = vector.extract_strided_slice %208 {offsets = [0, 192], sizes = [4, 32], strides = [1, 1]} : vector<4x256xf32> to vector<4x32xf32>
    %221 = vector.extract_strided_slice %208 {offsets = [0, 224], sizes = [4, 32], strides = [1, 1]} : vector<4x256xf32> to vector<4x32xf32>
    %222 = arith.mulf %219, %149 : vector<4x32xf32>
    %223 = arith.mulf %218, %220 : vector<4x32xf32>
    %224 = arith.addf %222, %223 : vector<4x32xf32>
    %225 = math.tanh %224 : vector<4x32xf32>
    %226 = arith.mulf %221, %225 : vector<4x32xf32>
    %227 = tpu.concatenate %217, %226 in 1 : vector<4x32xf32>, vector<4x32xf32> -> vector<4x64xf32>
    %cst_72 = arith.constant dense<0.000000e+00> : vector<4x128xf32>
    %228 = tpu.matmul %227, %12, %cst_72 {dimension_numbers = #tpu.dot_dimension_numbers<[1], [0], [0], [1], [0, 0, 1, 1], [], []>} : vector<4x64xf32>, vector<64x128xf32>, vector<4x128xf32> -> vector<4x128xf32>
    %229 = vector.broadcast %13 : vector<1x128xf32> to vector<4x128xf32>
    %230 = arith.addf %228, %229 : vector<4x128xf32>
    %cst_73 = arith.constant 5.000000e-01 : f32
    %231 = vector.broadcast %cst_73 : f32 to vector<4x128xf32>
    %232 = arith.mulf %231, %230 : vector<4x128xf32>
    %233 = arith.select %35, %230, %232 : vector<4x128xi1>, vector<4x128xf32>
    %234 = math.tanh %233 : vector<4x128xf32>
    %cst_74 = arith.constant 5.000000e-01 : f32
    %235 = vector.broadcast %cst_74 : f32 to vector<4x128xf32>
    %236 = arith.mulf %235, %234 : vector<4x128xf32>
    %cst_75 = arith.constant 5.000000e-01 : f32
    %237 = vector.broadcast %cst_75 : f32 to vector<4x128xf32>
    %238 = arith.addf %236, %237 : vector<4x128xf32>
    %239 = arith.select %35, %234, %238 : vector<4x128xi1>, vector<4x128xf32>
    %240 = vector.extract_strided_slice %239 {offsets = [0, 0], sizes = [4, 32], strides = [1, 1]} : vector<4x128xf32> to vector<4x32xf32>
    %241 = vector.extract_strided_slice %239 {offsets = [0, 32], sizes = [4, 32], strides = [1, 1]} : vector<4x128xf32> to vector<4x32xf32>
    %242 = vector.extract_strided_slice %239 {offsets = [0, 64], sizes = [4, 32], strides = [1, 1]} : vector<4x128xf32> to vector<4x32xf32>
    %243 = vector.extract_strided_slice %239 {offsets = [0, 96], sizes = [4, 32], strides = [1, 1]} : vector<4x128xf32> to vector<4x32xf32>
    %244 = arith.mulf %241, %224 : vector<4x32xf32>
    %245 = arith.mulf %240, %242 : vector<4x32xf32>
    %246 = arith.addf %244, %245 : vector<4x32xf32>
    %247 = math.tanh %246 : vector<4x32xf32>
    %248 = arith.mulf %243, %247 : vector<4x32xf32>
    %249 = tpu.concatenate %226, %248 in 0 : vector<4x32xf32>, vector<4x32xf32> -> vector<8x32xf32>
    %cst_76 = arith.constant dense<0.000000e+00> : vector<8x32xf32>
    %250 = tpu.matmul %249, %4, %cst_76 {dimension_numbers = #tpu.dot_dimension_numbers<[1], [0], [0], [1], [0, 0, 1, 1], [], []>} : vector<8x32xf32>, vector<32x32xf32>, vector<8x32xf32> -> vector<8x32xf32>
    %251 = vector.broadcast %5 : vector<1x32xf32> to vector<8x32xf32>
    %252 = arith.addf %250, %251 : vector<8x32xf32>
    %cst_77 = arith.constant 0.000000e+00 : f32
    %253 = vector.broadcast %cst_77 : f32 to vector<8x32xf32>
    %254 = arith.maximumf %252, %253 : vector<8x32xf32>
    %cst_78 = arith.constant dense<0.000000e+00> : vector<8x4xf32>
    %255 = tpu.matmul %254, %6, %cst_78 {dimension_numbers = #tpu.dot_dimension_numbers<[1], [0], [0], [1], [0, 0, 1, 1], [], []>} : vector<8x32xf32>, vector<32x4xf32>, vector<8x4xf32> -> vector<8x4xf32>
    %256 = vector.broadcast %7 : vector<1x4xf32> to vector<8x4xf32>
    %257 = arith.addf %255, %256 : vector<8x4xf32>
    %258 = arith.addf %257, %161 : vector<8x4xf32>
    %259 = vector.extract_strided_slice %58 {offsets = [16, 0], sizes = [8, 4], strides = [1, 1]} : vector<56x4xf32> to vector<8x4xf32>
    %260 = vector.extract_strided_slice %68 {offsets = [16, 0], sizes = [8, 32], strides = [1, 1]} : vector<56x32xf32> to vector<8x32xf32>
    %261 = vector.extract_strided_slice %260 {offsets = [0, 0], sizes = [4, 32], strides = [1, 1]} : vector<8x32xf32> to vector<4x32xf32>
    %262 = vector.extract_strided_slice %260 {offsets = [4, 0], sizes = [4, 32], strides = [1, 1]} : vector<8x32xf32> to vector<4x32xf32>
    %263 = tpu.concatenate %261, %217 in 1 : vector<4x32xf32>, vector<4x32xf32> -> vector<4x64xf32>
    %cst_79 = arith.constant dense<0.000000e+00> : vector<4x128xf32>
    %264 = tpu.matmul %263, %8, %cst_79 {dimension_numbers = #tpu.dot_dimension_numbers<[1], [0], [0], [1], [0, 0, 1, 1], [], []>} : vector<4x64xf32>, vector<64x128xf32>, vector<4x128xf32> -> vector<4x128xf32>
    %265 = vector.broadcast %9 : vector<1x128xf32> to vector<4x128xf32>
    %266 = arith.addf %264, %265 : vector<4x128xf32>
    %cst_80 = arith.constant 5.000000e-01 : f32
    %267 = vector.broadcast %cst_80 : f32 to vector<4x128xf32>
    %268 = arith.mulf %267, %266 : vector<4x128xf32>
    %269 = arith.select %35, %266, %268 : vector<4x128xi1>, vector<4x128xf32>
    %270 = math.tanh %269 : vector<4x128xf32>
    %cst_81 = arith.constant 5.000000e-01 : f32
    %271 = vector.broadcast %cst_81 : f32 to vector<4x128xf32>
    %272 = arith.mulf %271, %270 : vector<4x128xf32>
    %cst_82 = arith.constant 5.000000e-01 : f32
    %273 = vector.broadcast %cst_82 : f32 to vector<4x128xf32>
    %274 = arith.addf %272, %273 : vector<4x128xf32>
    %275 = arith.select %35, %270, %274 : vector<4x128xi1>, vector<4x128xf32>
    %276 = vector.extract_strided_slice %275 {offsets = [0, 0], sizes = [4, 32], strides = [1, 1]} : vector<4x128xf32> to vector<4x32xf32>
    %277 = vector.extract_strided_slice %275 {offsets = [0, 32], sizes = [4, 32], strides = [1, 1]} : vector<4x128xf32> to vector<4x32xf32>
    %278 = vector.extract_strided_slice %275 {offsets = [0, 64], sizes = [4, 32], strides = [1, 1]} : vector<4x128xf32> to vector<4x32xf32>
    %279 = vector.extract_strided_slice %275 {offsets = [0, 96], sizes = [4, 32], strides = [1, 1]} : vector<4x128xf32> to vector<4x32xf32>
    %280 = arith.mulf %277, %215 : vector<4x32xf32>
    %281 = arith.mulf %276, %278 : vector<4x32xf32>
    %282 = arith.addf %280, %281 : vector<4x32xf32>
    %283 = math.tanh %282 : vector<4x32xf32>
    %284 = arith.mulf %279, %283 : vector<4x32xf32>
    %285 = tpu.concatenate %262, %284, %284, %248 in 1 : vector<4x32xf32>, vector<4x32xf32>, vector<4x32xf32>, vector<4x32xf32> -> vector<4x128xf32>
    %cst_83 = arith.constant dense<0.000000e+00> : vector<4x256xf32>
    %286 = tpu.matmul %285, %10, %cst_83 {dimension_numbers = #tpu.dot_dimension_numbers<[1], [0], [0], [1], [0, 0, 1, 1], [], []>} : vector<4x128xf32>, vector<128x256xf32>, vector<4x256xf32> -> vector<4x256xf32>
    %287 = vector.broadcast %11 : vector<1x256xf32> to vector<4x256xf32>
    %288 = arith.addf %286, %287 : vector<4x256xf32>
    %cst_84 = arith.constant 5.000000e-01 : f32
    %289 = vector.broadcast %cst_84 : f32 to vector<4x256xf32>
    %290 = arith.mulf %289, %288 : vector<4x256xf32>
    %291 = arith.select %57, %288, %290 : vector<4x256xi1>, vector<4x256xf32>
    %292 = math.tanh %291 : vector<4x256xf32>
    %cst_85 = arith.constant 5.000000e-01 : f32
    %293 = vector.broadcast %cst_85 : f32 to vector<4x256xf32>
    %294 = arith.mulf %293, %292 : vector<4x256xf32>
    %cst_86 = arith.constant 5.000000e-01 : f32
    %295 = vector.broadcast %cst_86 : f32 to vector<4x256xf32>
    %296 = arith.addf %294, %295 : vector<4x256xf32>
    %297 = arith.select %57, %292, %296 : vector<4x256xi1>, vector<4x256xf32>
    %298 = vector.extract_strided_slice %297 {offsets = [0, 0], sizes = [4, 32], strides = [1, 1]} : vector<4x256xf32> to vector<4x32xf32>
    %299 = vector.extract_strided_slice %297 {offsets = [0, 32], sizes = [4, 32], strides = [1, 1]} : vector<4x256xf32> to vector<4x32xf32>
    %300 = vector.extract_strided_slice %297 {offsets = [0, 64], sizes = [4, 32], strides = [1, 1]} : vector<4x256xf32> to vector<4x32xf32>
    %301 = vector.extract_strided_slice %297 {offsets = [0, 96], sizes = [4, 32], strides = [1, 1]} : vector<4x256xf32> to vector<4x32xf32>
    %302 = arith.mulf %299, %282 : vector<4x32xf32>
    %303 = arith.mulf %298, %300 : vector<4x32xf32>
    %304 = arith.addf %302, %303 : vector<4x32xf32>
    %305 = math.tanh %304 : vector<4x32xf32>
    %306 = arith.mulf %301, %305 : vector<4x32xf32>
    %307 = vector.extract_strided_slice %297 {offsets = [0, 128], sizes = [4, 32], strides = [1, 1]} : vector<4x256xf32> to vector<4x32xf32>
    %308 = vector.extract_strided_slice %297 {offsets = [0, 160], sizes = [4, 32], strides = [1, 1]} : vector<4x256xf32> to vector<4x32xf32>
    %309 = vector.extract_strided_slice %297 {offsets = [0, 192], sizes = [4, 32], strides = [1, 1]} : vector<4x256xf32> to vector<4x32xf32>
    %310 = vector.extract_strided_slice %297 {offsets = [0, 224], sizes = [4, 32], strides = [1, 1]} : vector<4x256xf32> to vector<4x32xf32>
    %311 = arith.mulf %308, %246 : vector<4x32xf32>
    %312 = arith.mulf %307, %309 : vector<4x32xf32>
    %313 = arith.addf %311, %312 : vector<4x32xf32>
    %314 = math.tanh %313 : vector<4x32xf32>
    %315 = arith.mulf %310, %314 : vector<4x32xf32>
    %316 = tpu.concatenate %306, %315 in 1 : vector<4x32xf32>, vector<4x32xf32> -> vector<4x64xf32>
    %cst_87 = arith.constant dense<0.000000e+00> : vector<4x128xf32>
    %317 = tpu.matmul %316, %12, %cst_87 {dimension_numbers = #tpu.dot_dimension_numbers<[1], [0], [0], [1], [0, 0, 1, 1], [], []>} : vector<4x64xf32>, vector<64x128xf32>, vector<4x128xf32> -> vector<4x128xf32>
    %318 = vector.broadcast %13 : vector<1x128xf32> to vector<4x128xf32>
    %319 = arith.addf %317, %318 : vector<4x128xf32>
    %cst_88 = arith.constant 5.000000e-01 : f32
    %320 = vector.broadcast %cst_88 : f32 to vector<4x128xf32>
    %321 = arith.mulf %320, %319 : vector<4x128xf32>
    %322 = arith.select %35, %319, %321 : vector<4x128xi1>, vector<4x128xf32>
    %323 = math.tanh %322 : vector<4x128xf32>
    %cst_89 = arith.constant 5.000000e-01 : f32
    %324 = vector.broadcast %cst_89 : f32 to vector<4x128xf32>
    %325 = arith.mulf %324, %323 : vector<4x128xf32>
    %cst_90 = arith.constant 5.000000e-01 : f32
    %326 = vector.broadcast %cst_90 : f32 to vector<4x128xf32>
    %327 = arith.addf %325, %326 : vector<4x128xf32>
    %328 = arith.select %35, %323, %327 : vector<4x128xi1>, vector<4x128xf32>
    %329 = vector.extract_strided_slice %328 {offsets = [0, 0], sizes = [4, 32], strides = [1, 1]} : vector<4x128xf32> to vector<4x32xf32>
    %330 = vector.extract_strided_slice %328 {offsets = [0, 32], sizes = [4, 32], strides = [1, 1]} : vector<4x128xf32> to vector<4x32xf32>
    %331 = vector.extract_strided_slice %328 {offsets = [0, 64], sizes = [4, 32], strides = [1, 1]} : vector<4x128xf32> to vector<4x32xf32>
    %332 = vector.extract_strided_slice %328 {offsets = [0, 96], sizes = [4, 32], strides = [1, 1]} : vector<4x128xf32> to vector<4x32xf32>
    %333 = arith.mulf %330, %313 : vector<4x32xf32>
    %334 = arith.mulf %329, %331 : vector<4x32xf32>
    %335 = arith.addf %333, %334 : vector<4x32xf32>
    %336 = math.tanh %335 : vector<4x32xf32>
    %337 = arith.mulf %332, %336 : vector<4x32xf32>
    %338 = tpu.concatenate %315, %337 in 0 : vector<4x32xf32>, vector<4x32xf32> -> vector<8x32xf32>
    %cst_91 = arith.constant dense<0.000000e+00> : vector<8x32xf32>
    %339 = tpu.matmul %338, %4, %cst_91 {dimension_numbers = #tpu.dot_dimension_numbers<[1], [0], [0], [1], [0, 0, 1, 1], [], []>} : vector<8x32xf32>, vector<32x32xf32>, vector<8x32xf32> -> vector<8x32xf32>
    %340 = vector.broadcast %5 : vector<1x32xf32> to vector<8x32xf32>
    %341 = arith.addf %339, %340 : vector<8x32xf32>
    %cst_92 = arith.constant 0.000000e+00 : f32
    %342 = vector.broadcast %cst_92 : f32 to vector<8x32xf32>
    %343 = arith.maximumf %341, %342 : vector<8x32xf32>
    %cst_93 = arith.constant dense<0.000000e+00> : vector<8x4xf32>
    %344 = tpu.matmul %343, %6, %cst_93 {dimension_numbers = #tpu.dot_dimension_numbers<[1], [0], [0], [1], [0, 0, 1, 1], [], []>} : vector<8x32xf32>, vector<32x4xf32>, vector<8x4xf32> -> vector<8x4xf32>
    %345 = vector.broadcast %7 : vector<1x4xf32> to vector<8x4xf32>
    %346 = arith.addf %344, %345 : vector<8x4xf32>
    %347 = arith.addf %346, %259 : vector<8x4xf32>
    %cst_94 = arith.constant dense<0.000000e+00> : vector<8x32xf32>
    %348 = tpu.matmul %347, %0, %cst_94 {dimension_numbers = #tpu.dot_dimension_numbers<[1], [0], [0], [1], [0, 0, 1, 1], [], []>} : vector<8x4xf32>, vector<4x32xf32>, vector<8x32xf32> -> vector<8x32xf32>
    %349 = vector.broadcast %1 : vector<1x32xf32> to vector<8x32xf32>
    %350 = arith.addf %348, %349 : vector<8x32xf32>
    %cst_95 = arith.constant 0.000000e+00 : f32
    %351 = vector.broadcast %cst_95 : f32 to vector<8x32xf32>
    %352 = arith.maximumf %350, %351 : vector<8x32xf32>
    %cst_96 = arith.constant dense<0.000000e+00> : vector<8x32xf32>
    %353 = tpu.matmul %352, %2, %cst_96 {dimension_numbers = #tpu.dot_dimension_numbers<[1], [0], [0], [1], [0, 0, 1, 1], [], []>} : vector<8x32xf32>, vector<32x32xf32>, vector<8x32xf32> -> vector<8x32xf32>
    %354 = vector.broadcast %3 : vector<1x32xf32> to vector<8x32xf32>
    %355 = arith.addf %353, %354 : vector<8x32xf32>
    %cst_97 = arith.constant 0.000000e+00 : f32
    %356 = vector.broadcast %cst_97 : f32 to vector<8x32xf32>
    %357 = arith.maximumf %355, %356 : vector<8x32xf32>
    %358 = vector.extract_strided_slice %357 {offsets = [0, 0], sizes = [4, 32], strides = [1, 1]} : vector<8x32xf32> to vector<4x32xf32>
    %359 = vector.extract_strided_slice %357 {offsets = [4, 0], sizes = [4, 32], strides = [1, 1]} : vector<8x32xf32> to vector<4x32xf32>
    %360 = tpu.concatenate %358, %306 in 1 : vector<4x32xf32>, vector<4x32xf32> -> vector<4x64xf32>
    %cst_98 = arith.constant dense<0.000000e+00> : vector<4x128xf32>
    %361 = tpu.matmul %360, %8, %cst_98 {dimension_numbers = #tpu.dot_dimension_numbers<[1], [0], [0], [1], [0, 0, 1, 1], [], []>} : vector<4x64xf32>, vector<64x128xf32>, vector<4x128xf32> -> vector<4x128xf32>
    %362 = vector.broadcast %9 : vector<1x128xf32> to vector<4x128xf32>
    %363 = arith.addf %361, %362 : vector<4x128xf32>
    %cst_99 = arith.constant 5.000000e-01 : f32
    %364 = vector.broadcast %cst_99 : f32 to vector<4x128xf32>
    %365 = arith.mulf %364, %363 : vector<4x128xf32>
    %366 = arith.select %35, %363, %365 : vector<4x128xi1>, vector<4x128xf32>
    %367 = math.tanh %366 : vector<4x128xf32>
    %cst_100 = arith.constant 5.000000e-01 : f32
    %368 = vector.broadcast %cst_100 : f32 to vector<4x128xf32>
    %369 = arith.mulf %368, %367 : vector<4x128xf32>
    %cst_101 = arith.constant 5.000000e-01 : f32
    %370 = vector.broadcast %cst_101 : f32 to vector<4x128xf32>
    %371 = arith.addf %369, %370 : vector<4x128xf32>
    %372 = arith.select %35, %367, %371 : vector<4x128xi1>, vector<4x128xf32>
    %373 = vector.extract_strided_slice %372 {offsets = [0, 0], sizes = [4, 32], strides = [1, 1]} : vector<4x128xf32> to vector<4x32xf32>
    %374 = vector.extract_strided_slice %372 {offsets = [0, 32], sizes = [4, 32], strides = [1, 1]} : vector<4x128xf32> to vector<4x32xf32>
    %375 = vector.extract_strided_slice %372 {offsets = [0, 64], sizes = [4, 32], strides = [1, 1]} : vector<4x128xf32> to vector<4x32xf32>
    %376 = vector.extract_strided_slice %372 {offsets = [0, 96], sizes = [4, 32], strides = [1, 1]} : vector<4x128xf32> to vector<4x32xf32>
    %377 = arith.mulf %374, %304 : vector<4x32xf32>
    %378 = arith.mulf %373, %375 : vector<4x32xf32>
    %379 = arith.addf %377, %378 : vector<4x32xf32>
    %380 = math.tanh %379 : vector<4x32xf32>
    %381 = arith.mulf %376, %380 : vector<4x32xf32>
    %382 = tpu.concatenate %359, %381, %381, %337 in 1 : vector<4x32xf32>, vector<4x32xf32>, vector<4x32xf32>, vector<4x32xf32> -> vector<4x128xf32>
    %cst_102 = arith.constant dense<0.000000e+00> : vector<4x256xf32>
    %383 = tpu.matmul %382, %10, %cst_102 {dimension_numbers = #tpu.dot_dimension_numbers<[1], [0], [0], [1], [0, 0, 1, 1], [], []>} : vector<4x128xf32>, vector<128x256xf32>, vector<4x256xf32> -> vector<4x256xf32>
    %384 = vector.broadcast %11 : vector<1x256xf32> to vector<4x256xf32>
    %385 = arith.addf %383, %384 : vector<4x256xf32>
    %cst_103 = arith.constant 5.000000e-01 : f32
    %386 = vector.broadcast %cst_103 : f32 to vector<4x256xf32>
    %387 = arith.mulf %386, %385 : vector<4x256xf32>
    %388 = arith.select %57, %385, %387 : vector<4x256xi1>, vector<4x256xf32>
    %389 = math.tanh %388 : vector<4x256xf32>
    %cst_104 = arith.constant 5.000000e-01 : f32
    %390 = vector.broadcast %cst_104 : f32 to vector<4x256xf32>
    %391 = arith.mulf %390, %389 : vector<4x256xf32>
    %cst_105 = arith.constant 5.000000e-01 : f32
    %392 = vector.broadcast %cst_105 : f32 to vector<4x256xf32>
    %393 = arith.addf %391, %392 : vector<4x256xf32>
    %394 = arith.select %57, %389, %393 : vector<4x256xi1>, vector<4x256xf32>
    %395 = vector.extract_strided_slice %394 {offsets = [0, 0], sizes = [4, 32], strides = [1, 1]} : vector<4x256xf32> to vector<4x32xf32>
    %396 = vector.extract_strided_slice %394 {offsets = [0, 32], sizes = [4, 32], strides = [1, 1]} : vector<4x256xf32> to vector<4x32xf32>
    %397 = vector.extract_strided_slice %394 {offsets = [0, 64], sizes = [4, 32], strides = [1, 1]} : vector<4x256xf32> to vector<4x32xf32>
    %398 = vector.extract_strided_slice %394 {offsets = [0, 96], sizes = [4, 32], strides = [1, 1]} : vector<4x256xf32> to vector<4x32xf32>
    %399 = arith.mulf %396, %379 : vector<4x32xf32>
    %400 = arith.mulf %395, %397 : vector<4x32xf32>
    %401 = arith.addf %399, %400 : vector<4x32xf32>
    %402 = math.tanh %401 : vector<4x32xf32>
    %403 = arith.mulf %398, %402 : vector<4x32xf32>
    %404 = vector.extract_strided_slice %394 {offsets = [0, 128], sizes = [4, 32], strides = [1, 1]} : vector<4x256xf32> to vector<4x32xf32>
    %405 = vector.extract_strided_slice %394 {offsets = [0, 160], sizes = [4, 32], strides = [1, 1]} : vector<4x256xf32> to vector<4x32xf32>
    %406 = vector.extract_strided_slice %394 {offsets = [0, 192], sizes = [4, 32], strides = [1, 1]} : vector<4x256xf32> to vector<4x32xf32>
    %407 = vector.extract_strided_slice %394 {offsets = [0, 224], sizes = [4, 32], strides = [1, 1]} : vector<4x256xf32> to vector<4x32xf32>
    %408 = arith.mulf %405, %335 : vector<4x32xf32>
    %409 = arith.mulf %404, %406 : vector<4x32xf32>
    %410 = arith.addf %408, %409 : vector<4x32xf32>
    %411 = math.tanh %410 : vector<4x32xf32>
    %412 = arith.mulf %407, %411 : vector<4x32xf32>
    %413 = tpu.concatenate %403, %412 in 1 : vector<4x32xf32>, vector<4x32xf32> -> vector<4x64xf32>
    %cst_106 = arith.constant dense<0.000000e+00> : vector<4x128xf32>
    %414 = tpu.matmul %413, %12, %cst_106 {dimension_numbers = #tpu.dot_dimension_numbers<[1], [0], [0], [1], [0, 0, 1, 1], [], []>} : vector<4x64xf32>, vector<64x128xf32>, vector<4x128xf32> -> vector<4x128xf32>
    %415 = vector.broadcast %13 : vector<1x128xf32> to vector<4x128xf32>
    %416 = arith.addf %414, %415 : vector<4x128xf32>
    %cst_107 = arith.constant 5.000000e-01 : f32
    %417 = vector.broadcast %cst_107 : f32 to vector<4x128xf32>
    %418 = arith.mulf %417, %416 : vector<4x128xf32>
    %419 = arith.select %35, %416, %418 : vector<4x128xi1>, vector<4x128xf32>
    %420 = math.tanh %419 : vector<4x128xf32>
    %cst_108 = arith.constant 5.000000e-01 : f32
    %421 = vector.broadcast %cst_108 : f32 to vector<4x128xf32>
    %422 = arith.mulf %421, %420 : vector<4x128xf32>
    %cst_109 = arith.constant 5.000000e-01 : f32
    %423 = vector.broadcast %cst_109 : f32 to vector<4x128xf32>
    %424 = arith.addf %422, %423 : vector<4x128xf32>
    %425 = arith.select %35, %420, %424 : vector<4x128xi1>, vector<4x128xf32>
    %426 = vector.extract_strided_slice %425 {offsets = [0, 0], sizes = [4, 32], strides = [1, 1]} : vector<4x128xf32> to vector<4x32xf32>
    %427 = vector.extract_strided_slice %425 {offsets = [0, 32], sizes = [4, 32], strides = [1, 1]} : vector<4x128xf32> to vector<4x32xf32>
    %428 = vector.extract_strided_slice %425 {offsets = [0, 64], sizes = [4, 32], strides = [1, 1]} : vector<4x128xf32> to vector<4x32xf32>
    %429 = vector.extract_strided_slice %425 {offsets = [0, 96], sizes = [4, 32], strides = [1, 1]} : vector<4x128xf32> to vector<4x32xf32>
    %430 = arith.mulf %427, %410 : vector<4x32xf32>
    %431 = arith.mulf %426, %428 : vector<4x32xf32>
    %432 = arith.addf %430, %431 : vector<4x32xf32>
    %433 = math.tanh %432 : vector<4x32xf32>
    %434 = arith.mulf %429, %433 : vector<4x32xf32>
    %435 = tpu.concatenate %412, %434 in 0 : vector<4x32xf32>, vector<4x32xf32> -> vector<8x32xf32>
    %cst_110 = arith.constant dense<0.000000e+00> : vector<8x32xf32>
    %436 = tpu.matmul %435, %4, %cst_110 {dimension_numbers = #tpu.dot_dimension_numbers<[1], [0], [0], [1], [0, 0, 1, 1], [], []>} : vector<8x32xf32>, vector<32x32xf32>, vector<8x32xf32> -> vector<8x32xf32>
    %437 = vector.broadcast %5 : vector<1x32xf32> to vector<8x32xf32>
    %438 = arith.addf %436, %437 : vector<8x32xf32>
    %cst_111 = arith.constant 0.000000e+00 : f32
    %439 = vector.broadcast %cst_111 : f32 to vector<8x32xf32>
    %440 = arith.maximumf %438, %439 : vector<8x32xf32>
    %cst_112 = arith.constant dense<0.000000e+00> : vector<8x4xf32>
    %441 = tpu.matmul %440, %6, %cst_112 {dimension_numbers = #tpu.dot_dimension_numbers<[1], [0], [0], [1], [0, 0, 1, 1], [], []>} : vector<8x32xf32>, vector<32x4xf32>, vector<8x4xf32> -> vector<8x4xf32>
    %442 = vector.broadcast %7 : vector<1x4xf32> to vector<8x4xf32>
    %443 = arith.addf %441, %442 : vector<8x4xf32>
    %444 = arith.addf %443, %347 : vector<8x4xf32>
    %445 = vector.extract_strided_slice %58 {offsets = [32, 0], sizes = [8, 4], strides = [1, 1]} : vector<56x4xf32> to vector<8x4xf32>
    %446 = vector.extract_strided_slice %68 {offsets = [32, 0], sizes = [8, 32], strides = [1, 1]} : vector<56x32xf32> to vector<8x32xf32>
    %447 = vector.extract_strided_slice %446 {offsets = [0, 0], sizes = [4, 32], strides = [1, 1]} : vector<8x32xf32> to vector<4x32xf32>
    %448 = vector.extract_strided_slice %446 {offsets = [4, 0], sizes = [4, 32], strides = [1, 1]} : vector<8x32xf32> to vector<4x32xf32>
    %449 = tpu.concatenate %447, %403 in 1 : vector<4x32xf32>, vector<4x32xf32> -> vector<4x64xf32>
    %cst_113 = arith.constant dense<0.000000e+00> : vector<4x128xf32>
    %450 = tpu.matmul %449, %8, %cst_113 {dimension_numbers = #tpu.dot_dimension_numbers<[1], [0], [0], [1], [0, 0, 1, 1], [], []>} : vector<4x64xf32>, vector<64x128xf32>, vector<4x128xf32> -> vector<4x128xf32>
    %451 = vector.broadcast %9 : vector<1x128xf32> to vector<4x128xf32>
    %452 = arith.addf %450, %451 : vector<4x128xf32>
    %cst_114 = arith.constant 5.000000e-01 : f32
    %453 = vector.broadcast %cst_114 : f32 to vector<4x128xf32>
    %454 = arith.mulf %453, %452 : vector<4x128xf32>
    %455 = arith.select %35, %452, %454 : vector<4x128xi1>, vector<4x128xf32>
    %456 = math.tanh %455 : vector<4x128xf32>
    %cst_115 = arith.constant 5.000000e-01 : f32
    %457 = vector.broadcast %cst_115 : f32 to vector<4x128xf32>
    %458 = arith.mulf %457, %456 : vector<4x128xf32>
    %cst_116 = arith.constant 5.000000e-01 : f32
    %459 = vector.broadcast %cst_116 : f32 to vector<4x128xf32>
    %460 = arith.addf %458, %459 : vector<4x128xf32>
    %461 = arith.select %35, %456, %460 : vector<4x128xi1>, vector<4x128xf32>
    %462 = vector.extract_strided_slice %461 {offsets = [0, 0], sizes = [4, 32], strides = [1, 1]} : vector<4x128xf32> to vector<4x32xf32>
    %463 = vector.extract_strided_slice %461 {offsets = [0, 32], sizes = [4, 32], strides = [1, 1]} : vector<4x128xf32> to vector<4x32xf32>
    %464 = vector.extract_strided_slice %461 {offsets = [0, 64], sizes = [4, 32], strides = [1, 1]} : vector<4x128xf32> to vector<4x32xf32>
    %465 = vector.extract_strided_slice %461 {offsets = [0, 96], sizes = [4, 32], strides = [1, 1]} : vector<4x128xf32> to vector<4x32xf32>
    %466 = arith.mulf %463, %401 : vector<4x32xf32>
    %467 = arith.mulf %462, %464 : vector<4x32xf32>
    %468 = arith.addf %466, %467 : vector<4x32xf32>
    %469 = math.tanh %468 : vector<4x32xf32>
    %470 = arith.mulf %465, %469 : vector<4x32xf32>
    %471 = tpu.concatenate %448, %470, %470, %434 in 1 : vector<4x32xf32>, vector<4x32xf32>, vector<4x32xf32>, vector<4x32xf32> -> vector<4x128xf32>
    %cst_117 = arith.constant dense<0.000000e+00> : vector<4x256xf32>
    %472 = tpu.matmul %471, %10, %cst_117 {dimension_numbers = #tpu.dot_dimension_numbers<[1], [0], [0], [1], [0, 0, 1, 1], [], []>} : vector<4x128xf32>, vector<128x256xf32>, vector<4x256xf32> -> vector<4x256xf32>
    %473 = vector.broadcast %11 : vector<1x256xf32> to vector<4x256xf32>
    %474 = arith.addf %472, %473 : vector<4x256xf32>
    %cst_118 = arith.constant 5.000000e-01 : f32
    %475 = vector.broadcast %cst_118 : f32 to vector<4x256xf32>
    %476 = arith.mulf %475, %474 : vector<4x256xf32>
    %477 = arith.select %57, %474, %476 : vector<4x256xi1>, vector<4x256xf32>
    %478 = math.tanh %477 : vector<4x256xf32>
    %cst_119 = arith.constant 5.000000e-01 : f32
    %479 = vector.broadcast %cst_119 : f32 to vector<4x256xf32>
    %480 = arith.mulf %479, %478 : vector<4x256xf32>
    %cst_120 = arith.constant 5.000000e-01 : f32
    %481 = vector.broadcast %cst_120 : f32 to vector<4x256xf32>
    %482 = arith.addf %480, %481 : vector<4x256xf32>
    %483 = arith.select %57, %478, %482 : vector<4x256xi1>, vector<4x256xf32>
    %484 = vector.extract_strided_slice %483 {offsets = [0, 0], sizes = [4, 32], strides = [1, 1]} : vector<4x256xf32> to vector<4x32xf32>
    %485 = vector.extract_strided_slice %483 {offsets = [0, 32], sizes = [4, 32], strides = [1, 1]} : vector<4x256xf32> to vector<4x32xf32>
    %486 = vector.extract_strided_slice %483 {offsets = [0, 64], sizes = [4, 32], strides = [1, 1]} : vector<4x256xf32> to vector<4x32xf32>
    %487 = vector.extract_strided_slice %483 {offsets = [0, 96], sizes = [4, 32], strides = [1, 1]} : vector<4x256xf32> to vector<4x32xf32>
    %488 = arith.mulf %485, %468 : vector<4x32xf32>
    %489 = arith.mulf %484, %486 : vector<4x32xf32>
    %490 = arith.addf %488, %489 : vector<4x32xf32>
    %491 = math.tanh %490 : vector<4x32xf32>
    %492 = arith.mulf %487, %491 : vector<4x32xf32>
    %493 = vector.extract_strided_slice %483 {offsets = [0, 128], sizes = [4, 32], strides = [1, 1]} : vector<4x256xf32> to vector<4x32xf32>
    %494 = vector.extract_strided_slice %483 {offsets = [0, 160], sizes = [4, 32], strides = [1, 1]} : vector<4x256xf32> to vector<4x32xf32>
    %495 = vector.extract_strided_slice %483 {offsets = [0, 192], sizes = [4, 32], strides = [1, 1]} : vector<4x256xf32> to vector<4x32xf32>
    %496 = vector.extract_strided_slice %483 {offsets = [0, 224], sizes = [4, 32], strides = [1, 1]} : vector<4x256xf32> to vector<4x32xf32>
    %497 = arith.mulf %494, %432 : vector<4x32xf32>
    %498 = arith.mulf %493, %495 : vector<4x32xf32>
    %499 = arith.addf %497, %498 : vector<4x32xf32>
    %500 = math.tanh %499 : vector<4x32xf32>
    %501 = arith.mulf %496, %500 : vector<4x32xf32>
    %502 = tpu.concatenate %492, %501 in 1 : vector<4x32xf32>, vector<4x32xf32> -> vector<4x64xf32>
    %cst_121 = arith.constant dense<0.000000e+00> : vector<4x128xf32>
    %503 = tpu.matmul %502, %12, %cst_121 {dimension_numbers = #tpu.dot_dimension_numbers<[1], [0], [0], [1], [0, 0, 1, 1], [], []>} : vector<4x64xf32>, vector<64x128xf32>, vector<4x128xf32> -> vector<4x128xf32>
    %504 = vector.broadcast %13 : vector<1x128xf32> to vector<4x128xf32>
    %505 = arith.addf %503, %504 : vector<4x128xf32>
    %cst_122 = arith.constant 5.000000e-01 : f32
    %506 = vector.broadcast %cst_122 : f32 to vector<4x128xf32>
    %507 = arith.mulf %506, %505 : vector<4x128xf32>
    %508 = arith.select %35, %505, %507 : vector<4x128xi1>, vector<4x128xf32>
    %509 = math.tanh %508 : vector<4x128xf32>
    %cst_123 = arith.constant 5.000000e-01 : f32
    %510 = vector.broadcast %cst_123 : f32 to vector<4x128xf32>
    %511 = arith.mulf %510, %509 : vector<4x128xf32>
    %cst_124 = arith.constant 5.000000e-01 : f32
    %512 = vector.broadcast %cst_124 : f32 to vector<4x128xf32>
    %513 = arith.addf %511, %512 : vector<4x128xf32>
    %514 = arith.select %35, %509, %513 : vector<4x128xi1>, vector<4x128xf32>
    %515 = vector.extract_strided_slice %514 {offsets = [0, 0], sizes = [4, 32], strides = [1, 1]} : vector<4x128xf32> to vector<4x32xf32>
    %516 = vector.extract_strided_slice %514 {offsets = [0, 32], sizes = [4, 32], strides = [1, 1]} : vector<4x128xf32> to vector<4x32xf32>
    %517 = vector.extract_strided_slice %514 {offsets = [0, 64], sizes = [4, 32], strides = [1, 1]} : vector<4x128xf32> to vector<4x32xf32>
    %518 = vector.extract_strided_slice %514 {offsets = [0, 96], sizes = [4, 32], strides = [1, 1]} : vector<4x128xf32> to vector<4x32xf32>
    %519 = arith.mulf %516, %499 : vector<4x32xf32>
    %520 = arith.mulf %515, %517 : vector<4x32xf32>
    %521 = arith.addf %519, %520 : vector<4x32xf32>
    %522 = math.tanh %521 : vector<4x32xf32>
    %523 = arith.mulf %518, %522 : vector<4x32xf32>
    %524 = tpu.concatenate %501, %523 in 0 : vector<4x32xf32>, vector<4x32xf32> -> vector<8x32xf32>
    %cst_125 = arith.constant dense<0.000000e+00> : vector<8x32xf32>
    %525 = tpu.matmul %524, %4, %cst_125 {dimension_numbers = #tpu.dot_dimension_numbers<[1], [0], [0], [1], [0, 0, 1, 1], [], []>} : vector<8x32xf32>, vector<32x32xf32>, vector<8x32xf32> -> vector<8x32xf32>
    %526 = vector.broadcast %5 : vector<1x32xf32> to vector<8x32xf32>
    %527 = arith.addf %525, %526 : vector<8x32xf32>
    %cst_126 = arith.constant 0.000000e+00 : f32
    %528 = vector.broadcast %cst_126 : f32 to vector<8x32xf32>
    %529 = arith.maximumf %527, %528 : vector<8x32xf32>
    %cst_127 = arith.constant dense<0.000000e+00> : vector<8x4xf32>
    %530 = tpu.matmul %529, %6, %cst_127 {dimension_numbers = #tpu.dot_dimension_numbers<[1], [0], [0], [1], [0, 0, 1, 1], [], []>} : vector<8x32xf32>, vector<32x4xf32>, vector<8x4xf32> -> vector<8x4xf32>
    %531 = vector.broadcast %7 : vector<1x4xf32> to vector<8x4xf32>
    %532 = arith.addf %530, %531 : vector<8x4xf32>
    %533 = arith.addf %532, %445 : vector<8x4xf32>
    %cst_128 = arith.constant dense<0.000000e+00> : vector<8x32xf32>
    %534 = tpu.matmul %533, %0, %cst_128 {dimension_numbers = #tpu.dot_dimension_numbers<[1], [0], [0], [1], [0, 0, 1, 1], [], []>} : vector<8x4xf32>, vector<4x32xf32>, vector<8x32xf32> -> vector<8x32xf32>
    %535 = vector.broadcast %1 : vector<1x32xf32> to vector<8x32xf32>
    %536 = arith.addf %534, %535 : vector<8x32xf32>
    %cst_129 = arith.constant 0.000000e+00 : f32
    %537 = vector.broadcast %cst_129 : f32 to vector<8x32xf32>
    %538 = arith.maximumf %536, %537 : vector<8x32xf32>
    %cst_130 = arith.constant dense<0.000000e+00> : vector<8x32xf32>
    %539 = tpu.matmul %538, %2, %cst_130 {dimension_numbers = #tpu.dot_dimension_numbers<[1], [0], [0], [1], [0, 0, 1, 1], [], []>} : vector<8x32xf32>, vector<32x32xf32>, vector<8x32xf32> -> vector<8x32xf32>
    %540 = vector.broadcast %3 : vector<1x32xf32> to vector<8x32xf32>
    %541 = arith.addf %539, %540 : vector<8x32xf32>
    %cst_131 = arith.constant 0.000000e+00 : f32
    %542 = vector.broadcast %cst_131 : f32 to vector<8x32xf32>
    %543 = arith.maximumf %541, %542 : vector<8x32xf32>
    %544 = vector.extract_strided_slice %543 {offsets = [0, 0], sizes = [4, 32], strides = [1, 1]} : vector<8x32xf32> to vector<4x32xf32>
    %545 = vector.extract_strided_slice %543 {offsets = [4, 0], sizes = [4, 32], strides = [1, 1]} : vector<8x32xf32> to vector<4x32xf32>
    %546 = tpu.concatenate %544, %492 in 1 : vector<4x32xf32>, vector<4x32xf32> -> vector<4x64xf32>
    %cst_132 = arith.constant dense<0.000000e+00> : vector<4x128xf32>
    %547 = tpu.matmul %546, %8, %cst_132 {dimension_numbers = #tpu.dot_dimension_numbers<[1], [0], [0], [1], [0, 0, 1, 1], [], []>} : vector<4x64xf32>, vector<64x128xf32>, vector<4x128xf32> -> vector<4x128xf32>
    %548 = vector.broadcast %9 : vector<1x128xf32> to vector<4x128xf32>
    %549 = arith.addf %547, %548 : vector<4x128xf32>
    %cst_133 = arith.constant 5.000000e-01 : f32
    %550 = vector.broadcast %cst_133 : f32 to vector<4x128xf32>
    %551 = arith.mulf %550, %549 : vector<4x128xf32>
    %552 = arith.select %35, %549, %551 : vector<4x128xi1>, vector<4x128xf32>
    %553 = math.tanh %552 : vector<4x128xf32>
    %cst_134 = arith.constant 5.000000e-01 : f32
    %554 = vector.broadcast %cst_134 : f32 to vector<4x128xf32>
    %555 = arith.mulf %554, %553 : vector<4x128xf32>
    %cst_135 = arith.constant 5.000000e-01 : f32
    %556 = vector.broadcast %cst_135 : f32 to vector<4x128xf32>
    %557 = arith.addf %555, %556 : vector<4x128xf32>
    %558 = arith.select %35, %553, %557 : vector<4x128xi1>, vector<4x128xf32>
    %559 = vector.extract_strided_slice %558 {offsets = [0, 0], sizes = [4, 32], strides = [1, 1]} : vector<4x128xf32> to vector<4x32xf32>
    %560 = vector.extract_strided_slice %558 {offsets = [0, 32], sizes = [4, 32], strides = [1, 1]} : vector<4x128xf32> to vector<4x32xf32>
    %561 = vector.extract_strided_slice %558 {offsets = [0, 64], sizes = [4, 32], strides = [1, 1]} : vector<4x128xf32> to vector<4x32xf32>
    %562 = vector.extract_strided_slice %558 {offsets = [0, 96], sizes = [4, 32], strides = [1, 1]} : vector<4x128xf32> to vector<4x32xf32>
    %563 = arith.mulf %560, %490 : vector<4x32xf32>
    %564 = arith.mulf %559, %561 : vector<4x32xf32>
    %565 = arith.addf %563, %564 : vector<4x32xf32>
    %566 = math.tanh %565 : vector<4x32xf32>
    %567 = arith.mulf %562, %566 : vector<4x32xf32>
    %568 = tpu.concatenate %545, %567, %567, %523 in 1 : vector<4x32xf32>, vector<4x32xf32>, vector<4x32xf32>, vector<4x32xf32> -> vector<4x128xf32>
    %cst_136 = arith.constant dense<0.000000e+00> : vector<4x256xf32>
    %569 = tpu.matmul %568, %10, %cst_136 {dimension_numbers = #tpu.dot_dimension_numbers<[1], [0], [0], [1], [0, 0, 1, 1], [], []>} : vector<4x128xf32>, vector<128x256xf32>, vector<4x256xf32> -> vector<4x256xf32>
    %570 = vector.broadcast %11 : vector<1x256xf32> to vector<4x256xf32>
    %571 = arith.addf %569, %570 : vector<4x256xf32>
    %cst_137 = arith.constant 5.000000e-01 : f32
    %572 = vector.broadcast %cst_137 : f32 to vector<4x256xf32>
    %573 = arith.mulf %572, %571 : vector<4x256xf32>
    %574 = arith.select %57, %571, %573 : vector<4x256xi1>, vector<4x256xf32>
    %575 = math.tanh %574 : vector<4x256xf32>
    %cst_138 = arith.constant 5.000000e-01 : f32
    %576 = vector.broadcast %cst_138 : f32 to vector<4x256xf32>
    %577 = arith.mulf %576, %575 : vector<4x256xf32>
    %cst_139 = arith.constant 5.000000e-01 : f32
    %578 = vector.broadcast %cst_139 : f32 to vector<4x256xf32>
    %579 = arith.addf %577, %578 : vector<4x256xf32>
    %580 = arith.select %57, %575, %579 : vector<4x256xi1>, vector<4x256xf32>
    %581 = vector.extract_strided_slice %580 {offsets = [0, 0], sizes = [4, 32], strides = [1, 1]} : vector<4x256xf32> to vector<4x32xf32>
    %582 = vector.extract_strided_slice %580 {offsets = [0, 32], sizes = [4, 32], strides = [1, 1]} : vector<4x256xf32> to vector<4x32xf32>
    %583 = vector.extract_strided_slice %580 {offsets = [0, 64], sizes = [4, 32], strides = [1, 1]} : vector<4x256xf32> to vector<4x32xf32>
    %584 = vector.extract_strided_slice %580 {offsets = [0, 96], sizes = [4, 32], strides = [1, 1]} : vector<4x256xf32> to vector<4x32xf32>
    %585 = arith.mulf %582, %565 : vector<4x32xf32>
    %586 = arith.mulf %581, %583 : vector<4x32xf32>
    %587 = arith.addf %585, %586 : vector<4x32xf32>
    %588 = math.tanh %587 : vector<4x32xf32>
    %589 = arith.mulf %584, %588 : vector<4x32xf32>
    %590 = vector.extract_strided_slice %580 {offsets = [0, 128], sizes = [4, 32], strides = [1, 1]} : vector<4x256xf32> to vector<4x32xf32>
    %591 = vector.extract_strided_slice %580 {offsets = [0, 160], sizes = [4, 32], strides = [1, 1]} : vector<4x256xf32> to vector<4x32xf32>
    %592 = vector.extract_strided_slice %580 {offsets = [0, 192], sizes = [4, 32], strides = [1, 1]} : vector<4x256xf32> to vector<4x32xf32>
    %593 = vector.extract_strided_slice %580 {offsets = [0, 224], sizes = [4, 32], strides = [1, 1]} : vector<4x256xf32> to vector<4x32xf32>
    %594 = arith.mulf %591, %521 : vector<4x32xf32>
    %595 = arith.mulf %590, %592 : vector<4x32xf32>
    %596 = arith.addf %594, %595 : vector<4x32xf32>
    %597 = math.tanh %596 : vector<4x32xf32>
    %598 = arith.mulf %593, %597 : vector<4x32xf32>
    %599 = tpu.concatenate %589, %598 in 1 : vector<4x32xf32>, vector<4x32xf32> -> vector<4x64xf32>
    %cst_140 = arith.constant dense<0.000000e+00> : vector<4x128xf32>
    %600 = tpu.matmul %599, %12, %cst_140 {dimension_numbers = #tpu.dot_dimension_numbers<[1], [0], [0], [1], [0, 0, 1, 1], [], []>} : vector<4x64xf32>, vector<64x128xf32>, vector<4x128xf32> -> vector<4x128xf32>
    %601 = vector.broadcast %13 : vector<1x128xf32> to vector<4x128xf32>
    %602 = arith.addf %600, %601 : vector<4x128xf32>
    %cst_141 = arith.constant 5.000000e-01 : f32
    %603 = vector.broadcast %cst_141 : f32 to vector<4x128xf32>
    %604 = arith.mulf %603, %602 : vector<4x128xf32>
    %605 = arith.select %35, %602, %604 : vector<4x128xi1>, vector<4x128xf32>
    %606 = math.tanh %605 : vector<4x128xf32>
    %cst_142 = arith.constant 5.000000e-01 : f32
    %607 = vector.broadcast %cst_142 : f32 to vector<4x128xf32>
    %608 = arith.mulf %607, %606 : vector<4x128xf32>
    %cst_143 = arith.constant 5.000000e-01 : f32
    %609 = vector.broadcast %cst_143 : f32 to vector<4x128xf32>
    %610 = arith.addf %608, %609 : vector<4x128xf32>
    %611 = arith.select %35, %606, %610 : vector<4x128xi1>, vector<4x128xf32>
    %612 = vector.extract_strided_slice %611 {offsets = [0, 0], sizes = [4, 32], strides = [1, 1]} : vector<4x128xf32> to vector<4x32xf32>
    %613 = vector.extract_strided_slice %611 {offsets = [0, 32], sizes = [4, 32], strides = [1, 1]} : vector<4x128xf32> to vector<4x32xf32>
    %614 = vector.extract_strided_slice %611 {offsets = [0, 64], sizes = [4, 32], strides = [1, 1]} : vector<4x128xf32> to vector<4x32xf32>
    %615 = vector.extract_strided_slice %611 {offsets = [0, 96], sizes = [4, 32], strides = [1, 1]} : vector<4x128xf32> to vector<4x32xf32>
    %616 = arith.mulf %613, %596 : vector<4x32xf32>
    %617 = arith.mulf %612, %614 : vector<4x32xf32>
    %618 = arith.addf %616, %617 : vector<4x32xf32>
    %619 = math.tanh %618 : vector<4x32xf32>
    %620 = arith.mulf %615, %619 : vector<4x32xf32>
    %621 = tpu.concatenate %598, %620 in 0 : vector<4x32xf32>, vector<4x32xf32> -> vector<8x32xf32>
    %cst_144 = arith.constant dense<0.000000e+00> : vector<8x32xf32>
    %622 = tpu.matmul %621, %4, %cst_144 {dimension_numbers = #tpu.dot_dimension_numbers<[1], [0], [0], [1], [0, 0, 1, 1], [], []>} : vector<8x32xf32>, vector<32x32xf32>, vector<8x32xf32> -> vector<8x32xf32>
    %623 = vector.broadcast %5 : vector<1x32xf32> to vector<8x32xf32>
    %624 = arith.addf %622, %623 : vector<8x32xf32>
    %cst_145 = arith.constant 0.000000e+00 : f32
    %625 = vector.broadcast %cst_145 : f32 to vector<8x32xf32>
    %626 = arith.maximumf %624, %625 : vector<8x32xf32>
    %cst_146 = arith.constant dense<0.000000e+00> : vector<8x4xf32>
    %627 = tpu.matmul %626, %6, %cst_146 {dimension_numbers = #tpu.dot_dimension_numbers<[1], [0], [0], [1], [0, 0, 1, 1], [], []>} : vector<8x32xf32>, vector<32x4xf32>, vector<8x4xf32> -> vector<8x4xf32>
    %628 = vector.broadcast %7 : vector<1x4xf32> to vector<8x4xf32>
    %629 = arith.addf %627, %628 : vector<8x4xf32>
    %630 = arith.addf %629, %533 : vector<8x4xf32>
    %631 = vector.extract_strided_slice %58 {offsets = [48, 0], sizes = [8, 4], strides = [1, 1]} : vector<56x4xf32> to vector<8x4xf32>
    %632 = vector.extract_strided_slice %68 {offsets = [48, 0], sizes = [8, 32], strides = [1, 1]} : vector<56x32xf32> to vector<8x32xf32>
    %633 = vector.extract_strided_slice %632 {offsets = [0, 0], sizes = [4, 32], strides = [1, 1]} : vector<8x32xf32> to vector<4x32xf32>
    %634 = vector.extract_strided_slice %632 {offsets = [4, 0], sizes = [4, 32], strides = [1, 1]} : vector<8x32xf32> to vector<4x32xf32>
    %635 = tpu.concatenate %633, %589 in 1 : vector<4x32xf32>, vector<4x32xf32> -> vector<4x64xf32>
    %cst_147 = arith.constant dense<0.000000e+00> : vector<4x128xf32>
    %636 = tpu.matmul %635, %8, %cst_147 {dimension_numbers = #tpu.dot_dimension_numbers<[1], [0], [0], [1], [0, 0, 1, 1], [], []>} : vector<4x64xf32>, vector<64x128xf32>, vector<4x128xf32> -> vector<4x128xf32>
    %637 = vector.broadcast %9 : vector<1x128xf32> to vector<4x128xf32>
    %638 = arith.addf %636, %637 : vector<4x128xf32>
    %cst_148 = arith.constant 5.000000e-01 : f32
    %639 = vector.broadcast %cst_148 : f32 to vector<4x128xf32>
    %640 = arith.mulf %639, %638 : vector<4x128xf32>
    %641 = arith.select %35, %638, %640 : vector<4x128xi1>, vector<4x128xf32>
    %642 = math.tanh %641 : vector<4x128xf32>
    %cst_149 = arith.constant 5.000000e-01 : f32
    %643 = vector.broadcast %cst_149 : f32 to vector<4x128xf32>
    %644 = arith.mulf %643, %642 : vector<4x128xf32>
    %cst_150 = arith.constant 5.000000e-01 : f32
    %645 = vector.broadcast %cst_150 : f32 to vector<4x128xf32>
    %646 = arith.addf %644, %645 : vector<4x128xf32>
    %647 = arith.select %35, %642, %646 : vector<4x128xi1>, vector<4x128xf32>
    %648 = vector.extract_strided_slice %647 {offsets = [0, 0], sizes = [4, 32], strides = [1, 1]} : vector<4x128xf32> to vector<4x32xf32>
    %649 = vector.extract_strided_slice %647 {offsets = [0, 32], sizes = [4, 32], strides = [1, 1]} : vector<4x128xf32> to vector<4x32xf32>
    %650 = vector.extract_strided_slice %647 {offsets = [0, 64], sizes = [4, 32], strides = [1, 1]} : vector<4x128xf32> to vector<4x32xf32>
    %651 = vector.extract_strided_slice %647 {offsets = [0, 96], sizes = [4, 32], strides = [1, 1]} : vector<4x128xf32> to vector<4x32xf32>
    %652 = arith.mulf %649, %587 : vector<4x32xf32>
    %653 = arith.mulf %648, %650 : vector<4x32xf32>
    %654 = arith.addf %652, %653 : vector<4x32xf32>
    %655 = math.tanh %654 : vector<4x32xf32>
    %656 = arith.mulf %651, %655 : vector<4x32xf32>
    %657 = tpu.concatenate %634, %656, %656, %620 in 1 : vector<4x32xf32>, vector<4x32xf32>, vector<4x32xf32>, vector<4x32xf32> -> vector<4x128xf32>
    %cst_151 = arith.constant dense<0.000000e+00> : vector<4x256xf32>
    %658 = tpu.matmul %657, %10, %cst_151 {dimension_numbers = #tpu.dot_dimension_numbers<[1], [0], [0], [1], [0, 0, 1, 1], [], []>} : vector<4x128xf32>, vector<128x256xf32>, vector<4x256xf32> -> vector<4x256xf32>
    %659 = vector.broadcast %11 : vector<1x256xf32> to vector<4x256xf32>
    %660 = arith.addf %658, %659 : vector<4x256xf32>
    %cst_152 = arith.constant 5.000000e-01 : f32
    %661 = vector.broadcast %cst_152 : f32 to vector<4x256xf32>
    %662 = arith.mulf %661, %660 : vector<4x256xf32>
    %663 = arith.select %57, %660, %662 : vector<4x256xi1>, vector<4x256xf32>
    %664 = math.tanh %663 : vector<4x256xf32>
    %cst_153 = arith.constant 5.000000e-01 : f32
    %665 = vector.broadcast %cst_153 : f32 to vector<4x256xf32>
    %666 = arith.mulf %665, %664 : vector<4x256xf32>
    %cst_154 = arith.constant 5.000000e-01 : f32
    %667 = vector.broadcast %cst_154 : f32 to vector<4x256xf32>
    %668 = arith.addf %666, %667 : vector<4x256xf32>
    %669 = arith.select %57, %664, %668 : vector<4x256xi1>, vector<4x256xf32>
    %670 = vector.extract_strided_slice %669 {offsets = [0, 0], sizes = [4, 32], strides = [1, 1]} : vector<4x256xf32> to vector<4x32xf32>
    %671 = vector.extract_strided_slice %669 {offsets = [0, 32], sizes = [4, 32], strides = [1, 1]} : vector<4x256xf32> to vector<4x32xf32>
    %672 = vector.extract_strided_slice %669 {offsets = [0, 64], sizes = [4, 32], strides = [1, 1]} : vector<4x256xf32> to vector<4x32xf32>
    %673 = vector.extract_strided_slice %669 {offsets = [0, 96], sizes = [4, 32], strides = [1, 1]} : vector<4x256xf32> to vector<4x32xf32>
    %674 = arith.mulf %671, %654 : vector<4x32xf32>
    %675 = arith.mulf %670, %672 : vector<4x32xf32>
    %676 = arith.addf %674, %675 : vector<4x32xf32>
    %677 = math.tanh %676 : vector<4x32xf32>
    %678 = arith.mulf %673, %677 : vector<4x32xf32>
    %679 = vector.extract_strided_slice %669 {offsets = [0, 128], sizes = [4, 32], strides = [1, 1]} : vector<4x256xf32> to vector<4x32xf32>
    %680 = vector.extract_strided_slice %669 {offsets = [0, 160], sizes = [4, 32], strides = [1, 1]} : vector<4x256xf32> to vector<4x32xf32>
    %681 = vector.extract_strided_slice %669 {offsets = [0, 192], sizes = [4, 32], strides = [1, 1]} : vector<4x256xf32> to vector<4x32xf32>
    %682 = vector.extract_strided_slice %669 {offsets = [0, 224], sizes = [4, 32], strides = [1, 1]} : vector<4x256xf32> to vector<4x32xf32>
    %683 = arith.mulf %680, %618 : vector<4x32xf32>
    %684 = arith.mulf %679, %681 : vector<4x32xf32>
    %685 = arith.addf %683, %684 : vector<4x32xf32>
    %686 = math.tanh %685 : vector<4x32xf32>
    %687 = arith.mulf %682, %686 : vector<4x32xf32>
    %688 = tpu.concatenate %678, %687 in 1 : vector<4x32xf32>, vector<4x32xf32> -> vector<4x64xf32>
    %cst_155 = arith.constant dense<0.000000e+00> : vector<4x128xf32>
    %689 = tpu.matmul %688, %12, %cst_155 {dimension_numbers = #tpu.dot_dimension_numbers<[1], [0], [0], [1], [0, 0, 1, 1], [], []>} : vector<4x64xf32>, vector<64x128xf32>, vector<4x128xf32> -> vector<4x128xf32>
    %690 = vector.broadcast %13 : vector<1x128xf32> to vector<4x128xf32>
    %691 = arith.addf %689, %690 : vector<4x128xf32>
    %cst_156 = arith.constant 5.000000e-01 : f32
    %692 = vector.broadcast %cst_156 : f32 to vector<4x128xf32>
    %693 = arith.mulf %692, %691 : vector<4x128xf32>
    %694 = arith.select %35, %691, %693 : vector<4x128xi1>, vector<4x128xf32>
    %695 = math.tanh %694 : vector<4x128xf32>
    %cst_157 = arith.constant 5.000000e-01 : f32
    %696 = vector.broadcast %cst_157 : f32 to vector<4x128xf32>
    %697 = arith.mulf %696, %695 : vector<4x128xf32>
    %cst_158 = arith.constant 5.000000e-01 : f32
    %698 = vector.broadcast %cst_158 : f32 to vector<4x128xf32>
    %699 = arith.addf %697, %698 : vector<4x128xf32>
    %700 = arith.select %35, %695, %699 : vector<4x128xi1>, vector<4x128xf32>
    %701 = vector.extract_strided_slice %700 {offsets = [0, 0], sizes = [4, 32], strides = [1, 1]} : vector<4x128xf32> to vector<4x32xf32>
    %702 = vector.extract_strided_slice %700 {offsets = [0, 32], sizes = [4, 32], strides = [1, 1]} : vector<4x128xf32> to vector<4x32xf32>
    %703 = vector.extract_strided_slice %700 {offsets = [0, 64], sizes = [4, 32], strides = [1, 1]} : vector<4x128xf32> to vector<4x32xf32>
    %704 = vector.extract_strided_slice %700 {offsets = [0, 96], sizes = [4, 32], strides = [1, 1]} : vector<4x128xf32> to vector<4x32xf32>
    %705 = arith.mulf %702, %685 : vector<4x32xf32>
    %706 = arith.mulf %701, %703 : vector<4x32xf32>
    %707 = arith.addf %705, %706 : vector<4x32xf32>
    %708 = math.tanh %707 : vector<4x32xf32>
    %709 = arith.mulf %704, %708 : vector<4x32xf32>
    %710 = tpu.concatenate %687, %709 in 0 : vector<4x32xf32>, vector<4x32xf32> -> vector<8x32xf32>
    %cst_159 = arith.constant dense<0.000000e+00> : vector<8x32xf32>
    %711 = tpu.matmul %710, %4, %cst_159 {dimension_numbers = #tpu.dot_dimension_numbers<[1], [0], [0], [1], [0, 0, 1, 1], [], []>} : vector<8x32xf32>, vector<32x32xf32>, vector<8x32xf32> -> vector<8x32xf32>
    %712 = vector.broadcast %5 : vector<1x32xf32> to vector<8x32xf32>
    %713 = arith.addf %711, %712 : vector<8x32xf32>
    %cst_160 = arith.constant 0.000000e+00 : f32
    %714 = vector.broadcast %cst_160 : f32 to vector<8x32xf32>
    %715 = arith.maximumf %713, %714 : vector<8x32xf32>
    %cst_161 = arith.constant dense<0.000000e+00> : vector<8x4xf32>
    %716 = tpu.matmul %715, %6, %cst_161 {dimension_numbers = #tpu.dot_dimension_numbers<[1], [0], [0], [1], [0, 0, 1, 1], [], []>} : vector<8x32xf32>, vector<32x4xf32>, vector<8x4xf32> -> vector<8x4xf32>
    %717 = vector.broadcast %7 : vector<1x4xf32> to vector<8x4xf32>
    %718 = arith.addf %716, %717 : vector<8x4xf32>
    %719 = arith.addf %718, %631 : vector<8x4xf32>
    %720 = tpu.concatenate %161, %258, %347, %444, %533, %630, %719 in 1 : vector<8x4xf32>, vector<8x4xf32>, vector<8x4xf32>, vector<8x4xf32>, vector<8x4xf32>, vector<8x4xf32>, vector<8x4xf32> -> vector<8x28xf32>
    %c0_162 = arith.constant 0 : index
    %c0_163 = arith.constant 0 : index
    %721 = vector.load %arg12[%c0_162, %c0_163] : memref<8x28xf32, #tpu.memory_space<vmem>>, vector<8x28xf32>
    tpu.vector_store %arg12[%c0_162, %c0_163], %720 {strides = array<i32>} : memref<8x28xf32, #tpu.memory_space<vmem>>, vector<8x28xf32>,
    return
  }
  func.func @transform_0(%arg0: i32) -> (i32, i32) {
    %c0_i32 = arith.constant 0 : i32
    %c0_i32_0 = arith.constant 0 : i32
    %c0_i32_1 = arith.constant 0 : i32
    return %c0_i32, %c0_i32_0 : i32, i32
  }
  func.func @transform_1(%arg0: i32) -> (i32, i32) {
    %c0_i32 = arith.constant 0 : i32
    %c0_i32_0 = arith.constant 0 : i32
    %c0_i32_1 = arith.constant 0 : i32
    return %c0_i32, %c0_i32_0 : i32, i32
  }
  func.func @transform_2(%arg0: i32) -> (i32, i32) {
    %c0_i32 = arith.constant 0 : i32
    %c0_i32_0 = arith.constant 0 : i32
    %c0_i32_1 = arith.constant 0 : i32
    return %c0_i32, %c0_i32_0 : i32, i32
  }
  func.func @transform_3(%arg0: i32) -> (i32, i32) {
    %c0_i32 = arith.constant 0 : i32
    %c0_i32_0 = arith.constant 0 : i32
    %c0_i32_1 = arith.constant 0 : i32
    return %c0_i32, %c0_i32_0 : i32, i32
  }
  func.func @transform_4(%arg0: i32) -> (i32, i32) {
    %c0_i32 = arith.constant 0 : i32
    %c0_i32_0 = arith.constant 0 : i32
    %c0_i32_1 = arith.constant 0 : i32
    return %c0_i32, %c0_i32_0 : i32, i32
  }
  func.func @transform_5(%arg0: i32) -> (i32, i32) {
    %c0_i32 = arith.constant 0 : i32
    %c0_i32_0 = arith.constant 0 : i32
    %c0_i32_1 = arith.constant 0 : i32
    return %c0_i32, %c0_i32_0 : i32, i32
  }
  func.func @transform_6(%arg0: i32) -> (i32, i32) {
    %c0_i32 = arith.constant 0 : i32
    %c0_i32_0 = arith.constant 0 : i32
    %c0_i32_1 = arith.constant 0 : i32
    return %c0_i32, %c0_i32_0 : i32, i32
  }
  func.func @transform_7(%arg0: i32) -> (i32, i32) {
    %c0_i32 = arith.constant 0 : i32
    %c0_i32_0 = arith.constant 0 : i32
    %c0_i32_1 = arith.constant 0 : i32
    return %c0_i32, %c0_i32_0 : i32, i32
  }
  func.func @transform_8(%arg0: i32) -> (i32, i32) {
    %c0_i32 = arith.constant 0 : i32
    %c0_i32_0 = arith.constant 0 : i32
    %c0_i32_1 = arith.constant 0 : i32
    return %c0_i32, %c0_i32_0 : i32, i32
  }
  func.func @transform_9(%arg0: i32) -> (i32, i32) {
    %c0_i32 = arith.constant 0 : i32
    %c0_i32_0 = arith.constant 0 : i32
    %c0_i32_1 = arith.constant 0 : i32
    return %c0_i32, %c0_i32_0 : i32, i32
  }
  func.func @transform_10(%arg0: i32) -> (i32, i32) {
    %c0_i32 = arith.constant 0 : i32
    %c0_i32_0 = arith.constant 0 : i32
    %c0_i32_1 = arith.constant 0 : i32
    return %c0_i32, %c0_i32_0 : i32, i32
  }
  func.func @transform_11(%arg0: i32) -> (i32, i32) {
    %c0_i32 = arith.constant 0 : i32
    %c0_i32_0 = arith.constant 0 : i32
    %c0_i32_1 = arith.constant 0 : i32
    return %c0_i32, %c0_i32_0 : i32, i32
  }
}

</mosaic_0001>

<llo_original>
// kernel: tpu_custom_call.1
$region0: #{tpu_custom_call.1}
  #allocation0 [shape = 'u32[]', space=smem, size = 0x4, offset = 0x4, fixed_abs, tag = 'smem constant byte address 0x4 - core index']
  #allocation1 [shape = 'u32[72,128]{1,0:T(1,128)}', space=vmem, size = 0x9000, scoped, tag = 'internal scratch']
  %s0 = inlined_call_operand.vmem [shape: f32[56,4], index: 0, kind: input, shape index: {}]
  %s1 = inlined_call_operand.vmem [shape: f32[4,32], index: 1, kind: input, shape index: {}]
  %s2 = inlined_call_operand.vmem [shape: f32[1,32], index: 2, kind: input, shape index: {}]
  %s3 = inlined_call_operand.vmem [shape: f32[32,32], index: 3, kind: input, shape index: {}]
  %s4 = inlined_call_operand.vmem [shape: f32[1,32], index: 4, kind: input, shape index: {}]
  %s5 = inlined_call_operand.hbm [shape: f32[128,256], index: 5, kind: input, shape index: {}]
  %s6 = inlined_call_operand.vmem [shape: f32[1,256], index: 6, kind: input, shape index: {}]
  %s7 = inlined_call_operand.vmem [shape: f32[32,32], index: 7, kind: input, shape index: {}]
  %s8 = inlined_call_operand.vmem [shape: f32[1,32], index: 8, kind: input, shape index: {}]
  %s9 = inlined_call_operand.vmem [shape: f32[32,4], index: 9, kind: input, shape index: {}]
  %s10 = inlined_call_operand.vmem [shape: f32[1,4], index: 10, kind: input, shape index: {}]
  %s11 = inlined_call_operand.hbm [shape: f32[8,28], index: 11, kind: output, shape index: {}]
  %s12 = sld [smem:[#allocation0]]
  $region58: #{tpu_custom_call.1} parent=0
    _
  %s14 = ssub.s32 1, %s12
  %s15 = scalar_select 0, %s14, %s12
  $region1: #{tpu_custom_call.1} parent=0
    #allocation2 [shape = 'u8[131072]{0}', space=vmem, size = 0x20000, scoped, tag = 'input window, operand 5, single buffered']
    #allocation3 [shape = 's32[1]{0}', space=sflag, size = 0x4, scoped, tag = 'scoped memory for tpu_custom_call.1']
    #allocation4 [shape = 's32[1]{0}', space=sflag, size = 0x4, scoped, tag = 'scoped memory for tpu_custom_call.1']
    #allocation5 [shape = 'u8[4096]{0}', space=vmem, size = 0x1000, scoped, tag = 'output window, operand 0, single buffered']
    %16 = vsyncpa [#allocation3], 0
    %17 = vsyncpa [#allocation4], 0
    // Predicated region
    $region2: #{tpu_custom_call.1} parent=1 // pred_check
      _
    $region3: #{tpu_custom_call.1} parent=1 // pred_check_branch
      %19 = sbr.rel (0) target = $region5
    $region4: #{tpu_custom_call.1} parent=1 // pred_region
      _
    $region5: #{tpu_custom_call.1} parent=1 // pred_fallthru
      _
    // Predicated region
    $region6: #{tpu_custom_call.1} parent=1 // pred_check
      _
    $region7: #{tpu_custom_call.1} parent=1 // pred_check_branch
      %21 = sbr.rel (0) target = $region9
    $region8: #{tpu_custom_call.1} parent=1 // pred_region
      _
    $region9: #{tpu_custom_call.1} parent=1 // pred_fallthru
      _
    // Predicated region
    $region10: #{tpu_custom_call.1} parent=1 // pred_check
      _
    $region11: #{tpu_custom_call.1} parent=1 // pred_check_branch
      %23 = sbr.rel (0) target = $region13
    $region12: #{tpu_custom_call.1} parent=1 // pred_region
      _
    $region13: #{tpu_custom_call.1} parent=1 // pred_fallthru
      _
    // Predicated region
    $region14: #{tpu_custom_call.1} parent=1 // pred_check
      _
    $region15: #{tpu_custom_call.1} parent=1 // pred_check_branch
      %25 = sbr.rel (0) target = $region17
    $region16: #{tpu_custom_call.1} parent=1 // pred_region
      _
    $region17: #{tpu_custom_call.1} parent=1 // pred_fallthru
      _
    // Predicated region
    $region18: #{tpu_custom_call.1} parent=1 // pred_check
      _
    $region19: #{tpu_custom_call.1} parent=1 // pred_check_branch
      %27 = sbr.rel (0) target = $region21
    $region20: #{tpu_custom_call.1} parent=1 // pred_region
      _
    $region21: #{tpu_custom_call.1} parent=1 // pred_fallthru
      _
    // Predicated region
    $region22: #{tpu_custom_call.1} parent=1 // pred_check
      _
    $region23: #{tpu_custom_call.1} parent=1 // pred_check_branch
      %29 = sbr.rel (0) target = $region25
    $region24: #{tpu_custom_call.1} parent=1 // pred_region
      %31 = vsyncadd [#allocation3], 0
      %s32 = sshll.u32 %s5, 4
      %s33 = int_to_ptr.hbm [resolvable:$true] %s32
      %s34 = sshll.u32 [#allocation2], 4
      %s35 = int_to_ptr.vmem [resolvable:$true] %s34
      %40 = dma.hbm_to_vmem [thread:$0]  %s33, 4096, %s35, [#allocation3], 256, 256, 16
    $region25: #{tpu_custom_call.1} parent=1 // pred_fallthru
      _
    // Predicated region
    $region26: #{tpu_custom_call.1} parent=1 // pred_check
      _
    $region27: #{tpu_custom_call.1} parent=1 // pred_check_branch
      %42 = sbr.rel (0) target = $region29
    $region28: #{tpu_custom_call.1} parent=1 // pred_region
      _
    $region29: #{tpu_custom_call.1} parent=1 // pred_fallthru
      _
    // Predicated region
    $region30: #{tpu_custom_call.1} parent=1 // pred_check
      _
    $region31: #{tpu_custom_call.1} parent=1 // pred_check_branch
      %44 = sbr.rel (0) target = $region33
    $region32: #{tpu_custom_call.1} parent=1 // pred_region
      _
    $region33: #{tpu_custom_call.1} parent=1 // pred_fallthru
      _
    // Predicated region
    $region34: #{tpu_custom_call.1} parent=1 // pred_check
      _
    $region35: #{tpu_custom_call.1} parent=1 // pred_check_branch
      %46 = sbr.rel (0) target = $region37
    $region36: #{tpu_custom_call.1} parent=1 // pred_region
      _
    $region37: #{tpu_custom_call.1} parent=1 // pred_fallthru
      _
    // Predicated region
    $region38: #{tpu_custom_call.1} parent=1 // pred_check
      _
    $region39: #{tpu_custom_call.1} parent=1 // pred_check_branch
      %48 = sbr.rel (0) target = $region41
    $region40: #{tpu_custom_call.1} parent=1 // pred_region
      _
    $region41: #{tpu_custom_call.1} parent=1 // pred_fallthru
      _
    // Predicated region
    $region42: #{tpu_custom_call.1} parent=1 // pred_check
      _
    $region43: #{tpu_custom_call.1} parent=1 // pred_check_branch
      %50 = sbr.rel (0) target = $region45
    $region44: #{tpu_custom_call.1} parent=1 // pred_region
      _
    $region45: #{tpu_custom_call.1} parent=1 // pred_fallthru
      _
    // Predicated region
    $region46: #{tpu_custom_call.1} parent=1 // pred_check
      _
    $region47: #{tpu_custom_call.1} parent=1 // pred_check_branch
      %52 = sbr.rel (0) target = $region49
    $region48: #{tpu_custom_call.1} parent=1 // pred_region
      %54 = dma.done [#allocation3], 4096
    $region49: #{tpu_custom_call.1} parent=1 // pred_fallthru
      _
    %v55 = vld [vmem:[%s1] sm:$0xf]
    %v56 = vld [vmem:[%s2] sm:$0x1]
    %v57 = vld [vmem:[%s3] sm:$0xff]
    %v58 = vld [vmem:[%s3 + $0x8] sm:$0xff]
    %v59 = vld [vmem:[%s3 + $0x10] sm:$0xff]
    %v60 = vld [vmem:[%s3 + $0x18] sm:$0xff]
    %v61 = vld [vmem:[%s4] sm:$0x1]
    %v62 = vld [vmem:[%s7] sm:$0xff]
    %v63 = vld [vmem:[%s7 + $0x8] sm:$0xff]
    %v64 = vld [vmem:[%s7 + $0x10] sm:$0xff]
    %v65 = vld [vmem:[%s7 + $0x18] sm:$0xff]
    %v66 = vld [vmem:[%s8] sm:$0x1]
    %v67 = vld [vmem:[%s9] sm:$0xff]
    %v68 = vld [vmem:[%s9 + $0x8] sm:$0xff]
    %v69 = vld [vmem:[%s9 + $0x10] sm:$0xff]
    %v70 = vld [vmem:[%s9 + $0x18] sm:$0xff]
    %v71 = vld [vmem:[%s10] sm:$0x1]
    %v72 = vld [vmem:[#allocation2] sm:$0xff]
    %v73 = vld [vmem:[#allocation2 + $0x10] sm:$0xff]
    %v74 = vld [vmem:[#allocation2 + $0x20] sm:$0xff]
    %v75 = vld [vmem:[#allocation2 + $0x30] sm:$0xff]
    %v76 = vld [vmem:[#allocation2 + $0x40] sm:$0xff]
    %v77 = vld [vmem:[#allocation2 + $0x50] sm:$0xff]
    %v78 = vld [vmem:[#allocation2 + $0x60] sm:$0xff]
    %v79 = vld [vmem:[#allocation2 + $0x70] sm:$0xff]
    %v80 = vld [vmem:[%s6] sm:$0x1]
    %v81 = vld [vmem:[#allocation2] sm:$0xff]
    %v82 = vld [vmem:[#allocation2 + $0x8] sm:$0xff]
    %v83 = vld [vmem:[#allocation2 + $0x10] sm:$0xff]
    %v84 = vld [vmem:[#allocation2 + $0x18] sm:$0xff]
    %v85 = vld [vmem:[#allocation2 + $0x20] sm:$0xff]
    %v86 = vld [vmem:[#allocation2 + $0x28] sm:$0xff]
    %v87 = vld [vmem:[#allocation2 + $0x30] sm:$0xff]
    %v88 = vld [vmem:[#allocation2 + $0x38] sm:$0xff]
    %v89 = vld [vmem:[#allocation2 + $0x40] sm:$0xff]
    %v90 = vld [vmem:[#allocation2 + $0x48] sm:$0xff]
    %v91 = vld [vmem:[#allocation2 + $0x50] sm:$0xff]
    %v92 = vld [vmem:[#allocation2 + $0x58] sm:$0xff]
    %v93 = vld [vmem:[#allocation2 + $0x60] sm:$0xff]
    %v94 = vld [vmem:[#allocation2 + $0x68] sm:$0xff]
    %v95 = vld [vmem:[#allocation2 + $0x70] sm:$0xff]
    %v96 = vld [vmem:[#allocation2 + $0x78] sm:$0xff]
    %v97 = vld [vmem:[#allocation2 + $0x80] sm:$0xff]
    %v98 = vld [vmem:[#allocation2 + $0x88] sm:$0xff]
    %v99 = vld [vmem:[#allocation2 + $0x90] sm:$0xff]
    %v100 = vld [vmem:[#allocation2 + $0x98] sm:$0xff]
    %v101 = vld [vmem:[#allocation2 + $0xa0] sm:$0xff]
    %v102 = vld [vmem:[#allocation2 + $0xa8] sm:$0xff]
    %v103 = vld [vmem:[#allocation2 + $0xb0] sm:$0xff]
    %v104 = vld [vmem:[#allocation2 + $0xb8] sm:$0xff]
    %v105 = vld [vmem:[#allocation2 + $0xc0] sm:$0xff]
    %v106 = vld [vmem:[#allocation2 + $0xc8] sm:$0xff]
    %v107 = vld [vmem:[#allocation2 + $0xd0] sm:$0xff]
    %v108 = vld [vmem:[#allocation2 + $0xd8] sm:$0xff]
    %v109 = vld [vmem:[#allocation2 + $0xe0] sm:$0xff]
    %v110 = vld [vmem:[#allocation2 + $0xe8] sm:$0xff]
    %v111 = vld [vmem:[#allocation2 + $0xf0] sm:$0xff]
    %v112 = vld [vmem:[#allocation2 + $0xf8] sm:$0xff]
    %v113 = vld [vmem:[%s6] sm:$0x3]
    %v114 = vld [vmem:[%s6 + $0x1] sm:$0x1]
    %v115 = vlaneseq
    %v116 = vand.u32 %v115, 127
    %vm117 = vcmp.lt.s32.totalorder %v116, 0
    %v118 = vsub.s32 0, %v116
    %v119 = vsel %vm117, %v118, %v116
    %v120 = vshrl.u32 %v119, 7
    %v121 = vand.u32 %v119, 127
    %v122 = vsub.s32 0, %v121
    %v123 = vsel %vm117, %v122, %v121
    %vm124 = vcmp.ne.s32.totalorder %v123, 0
    %vm125 = vcmp.lt.s32.totalorder %v123, 0
    %vm126 = vmand %vm125, %vm124
    %v127 = vadd.s32 %v123, 128
    %v128 = vsel %vm126, %v127, %v123
    %vm129 = vcmp.ge.s32.totalorder %v128, 64
    %vm130 = vcmp.lt.s32.totalorder %v128, 96
    %vm131 = vmand %vm129, %vm130
    %v132 = vadd.s32 %v116, 128
    %vm133 = vcmp.lt.s32.totalorder %v132, 0
    %v134 = vsub.s32 0, %v132
    %v135 = vsel %vm133, %v134, %v132
    %v136 = vshrl.u32 %v135, 7
    %v137 = vand.u32 %v135, 127
    %v138 = vsub.s32 0, %v137
    %v139 = vsel %vm133, %v138, %v137
    %vm140 = vcmp.ne.s32.totalorder %v139, 0
    %vm141 = vcmp.lt.s32.totalorder %v139, 0
    %vm142 = vmand %vm141, %vm140
    %v143 = vadd.s32 %v139, 128
    %v144 = vsel %vm142, %v143, %v139
    %vm145 = vcmp.ge.s32.totalorder %v144, 64
    %vm146 = vcmp.lt.s32.totalorder %v144, 96
    %vm147 = vmand %vm145, %vm146
    %v148 = vld [vmem:[%s0] sm:$0xff]
    %v149 = vld [vmem:[%s0 + $0x8] sm:$0xff]
    %v150 = vld [vmem:[%s0 + $0x10] sm:$0xff]
    %v151 = vld [vmem:[%s0 + $0x18] sm:$0xff]
    %v152 = vld [vmem:[%s0 + $0x20] sm:$0xff]
    %v153 = vld [vmem:[%s0 + $0x28] sm:$0xff]
    %v154 = vld [vmem:[%s0 + $0x30] sm:$0xff]
    %v156 = vperm.slane %v56, 0
    %vm158 = vcmask 31744
    %v160 = vsel %vm158, %v148, 0
    %v163 = vsel %vm158, %v149, 0
    %v166 = vsel %vm158, %v150, 0
    %v169 = vsel %vm158, %v151, 0
    %v172 = vsel %vm158, %v152, 0
    %v175 = vsel %vm158, %v153, 0
    %v178 = vsel %vm158, %v154, 0
    %vm180 = vcmask 1043456
    %v182 = vsel %vm180, %v55, 0
    %184 = vmatpush.msra.mxu0 0.0
    %185 = vmatpush.msra.mxu0 0.0
    %186 = vmatpush.msra.mxu0 0.0
    %187 = vmatpush.msra.mxu0 0.0
    %188 = vmatpush.msra.mxu0 0.0
    %189 = vmatpush.msra.mxu0 0.0
    %190 = vmatpush.msra.mxu0 0.0
    %191 = vmatpush.msra.mxu0 0.0
    %192 = vmatpush.msra.mxu0 0.0
    %193 = vmatpush.msra.mxu0 0.0
    %194 = vmatpush.msra.mxu0 0.0
    %195 = vmatpush.msra.mxu0 0.0
    %196 = vmatpush.msra.mxu0 0.0
    %197 = vmatpush.msra.mxu0 0.0
    %198 = vmatpush.msra.mxu0 0.0
    %199 = vmatpush.msra.mxu0 %v182
    %200 = vmatmul.f32.gmra.mxu0 %v160
    %v201 = vpop.f32.mrf.mxu0
    %v202 = vadd.f32 %v156, %v201
    %203 = vmatmul.f32.gmra.mxu0 %v163
    %v204 = vpop.f32.mrf.mxu0
    %v205 = vadd.f32 %v156, %v204
    %206 = vmatmul.f32.gmra.mxu0 %v166
    %v207 = vpop.f32.mrf.mxu0
    %v208 = vadd.f32 %v156, %v207
    %209 = vmatmul.f32.gmra.mxu0 %v169
    %v210 = vpop.f32.mrf.mxu0
    %v211 = vadd.f32 %v156, %v210
    %212 = vmatmul.f32.gmra.mxu0 %v172
    %v213 = vpop.f32.mrf.mxu0
    %v214 = vadd.f32 %v156, %v213
    %215 = vmatmul.f32.gmra.mxu0 %v175
    %v216 = vpop.f32.mrf.mxu0
    %v217 = vadd.f32 %v156, %v216
    %218 = vmatmul.f32.gmra.mxu0 %v178
    %v219 = vpop.f32.mrf.mxu0
    %v220 = vadd.f32 %v156, %v219
    %221 = vdwg.mxu0
    %v222 = vmax.f32 %v202, 0.0
    %v223 = vmax.f32 %v205, 0.0
    %v224 = vmax.f32 %v208, 0.0
    %v225 = vmax.f32 %v211, 0.0
    %v226 = vmax.f32 %v214, 0.0
    %v227 = vmax.f32 %v217, 0.0
    %v228 = vmax.f32 %v220, 0.0
    %v230 = vperm.slane %v61, 0
    %vm232 = vcmask 261120
    %v234 = vsel %vm232, %v222, 0
    %v237 = vsel %vm232, %v223, 0
    %v240 = vsel %vm232, %v224, 0
    %v243 = vsel %vm232, %v225, 0
    %v246 = vsel %vm232, %v226, 0
    %v249 = vsel %vm232, %v227, 0
    %v252 = vsel %vm232, %v228, 0
    %254 = vmatpush.msra.mxu0 0.0
    %255 = vmatpush.msra.mxu0 0.0
    %256 = vmatpush.msra.mxu0 0.0
    %257 = vmatpush.msra.mxu0 0.0
    %258 = vmatpush.msra.mxu0 0.0
    %259 = vmatpush.msra.mxu0 0.0
    %260 = vmatpush.msra.mxu0 0.0
    %261 = vmatpush.msra.mxu0 0.0
    %262 = vmatpush.msra.mxu0 0.0
    %263 = vmatpush.msra.mxu0 0.0
    %264 = vmatpush.msra.mxu0 0.0
    %265 = vmatpush.msra.mxu0 0.0
    %266 = vmatpush.msra.mxu0 %v60
    %267 = vmatpush.msra.mxu0 %v59
    %268 = vmatpush.msra.mxu0 %v58
    %269 = vmatpush.msra.mxu0 %v57
    %270 = vmatmul.f32.gmra.mxu0 %v234
    %v271 = vpop.f32.mrf.mxu0
    %v272 = vadd.f32 %v230, %v271
    %273 = vmatmul.f32.gmra.mxu0 %v237
    %v274 = vpop.f32.mrf.mxu0
    %275 = vmatmul.f32.gmra.mxu0 %v240
    %v276 = vpop.f32.mrf.mxu0
    %v277 = vadd.f32 %v230, %v276
    %278 = vmatmul.f32.gmra.mxu0 %v243
    %v279 = vpop.f32.mrf.mxu0
    %280 = vmatmul.f32.gmra.mxu0 %v246
    %v281 = vpop.f32.mrf.mxu0
    %v282 = vadd.f32 %v230, %v281
    %283 = vmatmul.f32.gmra.mxu0 %v249
    %v284 = vpop.f32.mrf.mxu0
    %285 = vmatmul.f32.gmra.mxu0 %v252
    %v286 = vpop.f32.mrf.mxu0
    %v287 = vadd.f32 %v230, %v286
    %288 = vdwg.mxu0
    %v289 = vmax.f32 %v272, 0.0
    %v290 = vmax.f32 %v277, 0.0
    %v291 = vmax.f32 %v282, 0.0
    %v292 = vmax.f32 %v287, 0.0
    %v293 = vsel %vm232, %v289, 0.0
    %v295 = vperm.slane %v80, 0
    %vm297 = vcmask 523264
    %v299 = vsel %vm297, %v293, 0
    %301 = vmatpush.msra.mxu0 0.0
    %302 = vmatpush.msra.mxu0 0.0
    %303 = vmatpush.msra.mxu0 0.0
    %304 = vmatpush.msra.mxu0 0.0
    %305 = vmatpush.msra.mxu0 0.0
    %306 = vmatpush.msra.mxu0 0.0
    %307 = vmatpush.msra.mxu0 0.0
    %308 = vmatpush.msra.mxu0 0.0
    %309 = vmatpush.msra.mxu0 %v79
    %310 = vmatpush.msra.mxu0 %v78
    %311 = vmatpush.msra.mxu0 %v77
    %312 = vmatpush.msra.mxu0 %v76
    %313 = vmatpush.msra.mxu0 %v75
    %314 = vmatpush.msra.mxu0 %v74
    %315 = vmatpush.msra.mxu0 %v73
    %316 = vmatpush.msra.mxu0 %v72
    %317 = vmatmul.f32.gmra.mxu0 %v299
    %v318 = vpop.f32.mrf.mxu0
    %v319 = vadd.f32 %v295, %v318
    %320 = vdwg.mxu0
    %v321 = vmul.f32 %v319, 0.5
    %v322 = vsel %vm131, %v319, %v321
    %v323 = vtanh.pop %v322
    %v324 = vmul.f32 %v323, 0.5
    %v325 = vadd.f32 %v324, 0.5
    %v326 = vsel %vm131, %v323, %v325
    %v327 = vmul.f32 %v326, 0.0
    %329 = vrot.lane.b32.xlu0 %v326, 64
    %v330 = vpop.permute.xlu0 %329
    %v332 = vmul.f32 %v326, %v330
    %334 = vrot.lane.b32.xlu0 %v332, 32
    %v335 = vpop.permute.xlu0 %334
    %v337 = vadd.f32 %v327, %v335
    %v338 = vtanh.pop %v337
    %340 = vrot.lane.b32.xlu0 %v338, 64
    %v341 = vpop.permute.xlu0 %340
    %v343 = vmul.f32 %v326, %v341
    %v345 = vrot.slane %v343, 4
    %346 = vrot.lane.b32.xlu0 %v345, 64
    %v347 = vpop.permute.xlu0 %346
    %349 = vrot.lane.b32.xlu0 %v345, 96
    %v350 = vpop.permute.xlu0 %349
    %v352 = vsel %vm232, %v289, %v347
    %v353 = vsel %vm297, %v352, %v350
    %vm354 = vcmask 785408
    %v355 = vsel %vm354, %v353, 0.0
    %v357 = vperm.slane %v113, 0
    %v358 = vperm.slane %v113, 1
    %v362 = vrot.slane %v355, 4
    %364 = vmatpush.msra.mxu0 %v111
    %365 = vmatpush.msra.mxu0 %v109
    %366 = vmatpush.msra.mxu0 %v107
    %367 = vmatpush.msra.mxu0 %v105
    %368 = vmatpush.msra.mxu0 %v103
    %369 = vmatpush.msra.mxu0 %v101
    %370 = vmatpush.msra.mxu0 %v99
    %371 = vmatpush.msra.mxu0 %v97
    %372 = vmatpush.msra.mxu0 %v95
    %373 = vmatpush.msra.mxu0 %v93
    %374 = vmatpush.msra.mxu0 %v91
    %375 = vmatpush.msra.mxu0 %v89
    %376 = vmatpush.msra.mxu0 %v87
    %377 = vmatpush.msra.mxu0 %v85
    %378 = vmatpush.msra.mxu0 %v83
    %379 = vmatpush.msra.mxu0 %v81
    %380 = vmatmul.f32.gmra.mxu0 %v362
    %v381 = vpop.f32.mrf.mxu0
    %v382 = vadd.f32 %v357, %v381
    %383 = vdwg.mxu0
    %384 = vmatpush.msra.mxu0 %v112
    %385 = vmatpush.msra.mxu0 %v110
    %386 = vmatpush.msra.mxu0 %v108
    %387 = vmatpush.msra.mxu0 %v106
    %388 = vmatpush.msra.mxu0 %v104
    %389 = vmatpush.msra.mxu0 %v102
    %390 = vmatpush.msra.mxu0 %v100
    %391 = vmatpush.msra.mxu0 %v98
    %392 = vmatpush.msra.mxu0 %v96
    %393 = vmatpush.msra.mxu0 %v94
    %394 = vmatpush.msra.mxu0 %v92
    %395 = vmatpush.msra.mxu0 %v90
    %396 = vmatpush.msra.mxu0 %v88
    %397 = vmatpush.msra.mxu0 %v86
    %398 = vmatpush.msra.mxu0 %v84
    %399 = vmatpush.msra.mxu0 %v82
    %400 = vmatmul.f32.gmra.mxu0 %v362
    %v401 = vpop.f32.mrf.mxu0
    %v402 = vadd.f32 %v358, %v401
    %403 = vdwg.mxu0
    %v404 = vmul.f32 %v382, 0.5
    %v405 = vmul.f32 %v402, 0.5
    %v406 = vsel %vm131, %v382, %v404
    %v407 = vsel %vm147, %v402, %v405
    %v408 = vtanh.pop %v406
    %v409 = vtanh.pop %v407
    %v410 = vmul.f32 %v408, 0.5
    %v411 = vmul.f32 %v409, 0.5
    %v412 = vadd.f32 %v410, 0.5
    %v413 = vadd.f32 %v411, 0.5
    %v414 = vsel %vm131, %v408, %v412
    %v415 = vsel %vm147, %v409, %v413
    %v416 = vmul.f32 %v414, %v337
    %418 = vrot.lane.b32.xlu0 %v414, 64
    %v419 = vpop.permute.xlu0 %418
    %v421 = vmul.f32 %v414, %v419
    %423 = vrot.lane.b32.xlu0 %v421, 32
    %v424 = vpop.permute.xlu0 %423
    %v426 = vadd.f32 %v416, %v424
    %v427 = vtanh.pop %v426
    %429 = vrot.lane.b32.xlu0 %v427, 64
    %v430 = vpop.permute.xlu0 %429
    %v432 = vmul.f32 %v414, %v430
    %v433 = vmul.f32 %v415, 0.0
    %435 = vrot.lane.b32.xlu0 %v415, 64
    %v436 = vpop.permute.xlu0 %435
    %v438 = vmul.f32 %v415, %v436
    %440 = vrot.lane.b32.xlu0 %v438, 32
    %v441 = vpop.permute.xlu0 %440
    %v443 = vadd.f32 %v433, %v441
    %v444 = vtanh.pop %v443
    %446 = vrot.lane.b32.xlu0 %v444, 64
    %v447 = vpop.permute.xlu0 %446
    %v449 = vmul.f32 %v415, %v447
    %451 = vrot.lane.b32.xlu0 %v432, 32
    %v452 = vpop.permute.xlu0 %451
    %455 = vrot.lane.b32.xlu0 %v449, 64
    %v456 = vpop.permute.xlu0 %455
    %v458 = vsel %vm232, %v452, %v456
    %v460 = vperm.slane %v114, 0
    %v463 = vsel %vm297, %v458, 0
    %465 = vmatpush.msra.mxu0 0.0
    %466 = vmatpush.msra.mxu0 0.0
    %467 = vmatpush.msra.mxu0 0.0
    %468 = vmatpush.msra.mxu0 0.0
    %469 = vmatpush.msra.mxu0 0.0
    %470 = vmatpush.msra.mxu0 0.0
    %471 = vmatpush.msra.mxu0 0.0
    %472 = vmatpush.msra.mxu0 0.0
    %473 = vmatpush.msra.mxu0 %v112
    %474 = vmatpush.msra.mxu0 %v110
    %475 = vmatpush.msra.mxu0 %v108
    %476 = vmatpush.msra.mxu0 %v106
    %477 = vmatpush.msra.mxu0 %v104
    %478 = vmatpush.msra.mxu0 %v102
    %479 = vmatpush.msra.mxu0 %v100
    %480 = vmatpush.msra.mxu0 %v98
    %481 = vmatmul.f32.gmra.mxu0 %v463
    %v482 = vpop.f32.mrf.mxu0
    %v483 = vadd.f32 %v460, %v482
    %484 = vdwg.mxu0
    %v485 = vmul.f32 %v483, 0.5
    %v486 = vsel %vm131, %v483, %v485
    %v487 = vtanh.pop %v486
    %v488 = vmul.f32 %v487, 0.5
    %v489 = vadd.f32 %v488, 0.5
    %v490 = vsel %vm131, %v487, %v489
    %v491 = vmul.f32 %v490, %v443
    %493 = vrot.lane.b32.xlu0 %v490, 64
    %v494 = vpop.permute.xlu0 %493
    %v496 = vmul.f32 %v490, %v494
    %498 = vrot.lane.b32.xlu0 %v496, 32
    %v499 = vpop.permute.xlu0 %498
    %v501 = vadd.f32 %v491, %v499
    %v502 = vtanh.pop %v501
    %504 = vrot.lane.b32.xlu0 %v502, 64
    %v505 = vpop.permute.xlu0 %504
    %v507 = vmul.f32 %v490, %v505
    %v509 = vrot.slane %v507, 4
    %v511 = vsel %vm180, %v449, %v509
    %v513 = vperm.slane %v66, 0
    %516 = vrot.lane.b32.xlu0 %v511, 32
    %v517 = vpop.permute.xlu0 %516
    %v518 = vsel %vm232, %v517, 0
    %520 = vmatpush.msra.mxu0 0.0
    %521 = vmatpush.msra.mxu0 0.0
    %522 = vmatpush.msra.mxu0 0.0
    %523 = vmatpush.msra.mxu0 0.0
    %524 = vmatpush.msra.mxu0 0.0
    %525 = vmatpush.msra.mxu0 0.0
    %526 = vmatpush.msra.mxu0 0.0
    %527 = vmatpush.msra.mxu0 0.0
    %528 = vmatpush.msra.mxu0 0.0
    %529 = vmatpush.msra.mxu0 0.0
    %530 = vmatpush.msra.mxu0 0.0
    %531 = vmatpush.msra.mxu0 0.0
    %532 = vmatpush.msra.mxu0 %v65
    %533 = vmatpush.msra.mxu0 %v64
    %534 = vmatpush.msra.mxu0 %v63
    %535 = vmatpush.msra.mxu0 %v62
    %536 = vmatmul.f32.gmra.mxu0 %v518
    %v537 = vpop.f32.mrf.mxu0
    %v538 = vadd.f32 %v513, %v537
    %539 = vdwg.mxu0
    %v540 = vmax.f32 %v538, 0.0
    %v542 = vperm.slane %v71, 0
    %v545 = vsel %vm232, %v540, 0
    %547 = vmatpush.msra.mxu0 0.0
    %548 = vmatpush.msra.mxu0 0.0
    %549 = vmatpush.msra.mxu0 0.0
    %550 = vmatpush.msra.mxu0 0.0
    %551 = vmatpush.msra.mxu0 0.0
    %552 = vmatpush.msra.mxu0 0.0
    %553 = vmatpush.msra.mxu0 0.0
    %554 = vmatpush.msra.mxu0 0.0
    %555 = vmatpush.msra.mxu0 0.0
    %556 = vmatpush.msra.mxu0 0.0
    %557 = vmatpush.msra.mxu0 0.0
    %558 = vmatpush.msra.mxu0 0.0
    %559 = vmatpush.msra.mxu0 %v70
    %560 = vmatpush.msra.mxu0 %v69
    %561 = vmatpush.msra.mxu0 %v68
    %562 = vmatpush.msra.mxu0 %v67
    %563 = vmatmul.f32.gmra.mxu0 %v545
    %v564 = vpop.f32.mrf.mxu0
    %v565 = vadd.f32 %v542, %v564
    %566 = vdwg.mxu0
    %v567 = vadd.f32 %v565, %v148
    %v569 = vsel %vm158, %v567, 0
    %571 = vmatpush.msra.mxu0 0.0
    %572 = vmatpush.msra.mxu0 0.0
    %573 = vmatpush.msra.mxu0 0.0
    %574 = vmatpush.msra.mxu0 0.0
    %575 = vmatpush.msra.mxu0 0.0
    %576 = vmatpush.msra.mxu0 0.0
    %577 = vmatpush.msra.mxu0 0.0
    %578 = vmatpush.msra.mxu0 0.0
    %579 = vmatpush.msra.mxu0 0.0
    %580 = vmatpush.msra.mxu0 0.0
    %581 = vmatpush.msra.mxu0 0.0
    %582 = vmatpush.msra.mxu0 0.0
    %583 = vmatpush.msra.mxu0 0.0
    %584 = vmatpush.msra.mxu0 0.0
    %585 = vmatpush.msra.mxu0 0.0
    %586 = vmatpush.msra.mxu0 %v182
    %587 = vmatmul.f32.gmra.mxu0 %v569
    %v588 = vpop.f32.mrf.mxu0
    %v589 = vadd.f32 %v156, %v588
    %590 = vdwg.mxu0
    %v591 = vmax.f32 %v589, 0.0
    %v593 = vsel %vm232, %v591, 0
    %595 = vmatpush.msra.mxu0 0.0
    %596 = vmatpush.msra.mxu0 0.0
    %597 = vmatpush.msra.mxu0 0.0
    %598 = vmatpush.msra.mxu0 0.0
    %599 = vmatpush.msra.mxu0 0.0
    %600 = vmatpush.msra.mxu0 0.0
    %601 = vmatpush.msra.mxu0 0.0
    %602 = vmatpush.msra.mxu0 0.0
    %603 = vmatpush.msra.mxu0 0.0
    %604 = vmatpush.msra.mxu0 0.0
    %605 = vmatpush.msra.mxu0 0.0
    %606 = vmatpush.msra.mxu0 0.0
    %607 = vmatpush.msra.mxu0 %v60
    %608 = vmatpush.msra.mxu0 %v59
    %609 = vmatpush.msra.mxu0 %v58
    %610 = vmatpush.msra.mxu0 %v57
    %611 = vmatmul.f32.gmra.mxu0 %v593
    %v612 = vpop.f32.mrf.mxu0
    %v613 = vadd.f32 %v230, %v612
    %614 = vdwg.mxu0
    %v615 = vmax.f32 %v613, 0.0
    %616 = vrot.lane.b32.xlu0 %v432, 64
    %v617 = vpop.permute.xlu0 %616
    %v619 = vsel %vm232, %v615, %v617
    %v621 = vsel %vm297, %v619, 0
    %623 = vmatpush.msra.mxu0 0.0
    %624 = vmatpush.msra.mxu0 0.0
    %625 = vmatpush.msra.mxu0 0.0
    %626 = vmatpush.msra.mxu0 0.0
    %627 = vmatpush.msra.mxu0 0.0
    %628 = vmatpush.msra.mxu0 0.0
    %629 = vmatpush.msra.mxu0 0.0
    %630 = vmatpush.msra.mxu0 0.0
    %631 = vmatpush.msra.mxu0 %v79
    %632 = vmatpush.msra.mxu0 %v78
    %633 = vmatpush.msra.mxu0 %v77
    %634 = vmatpush.msra.mxu0 %v76
    %635 = vmatpush.msra.mxu0 %v75
    %636 = vmatpush.msra.mxu0 %v74
    %637 = vmatpush.msra.mxu0 %v73
    %638 = vmatpush.msra.mxu0 %v72
    %639 = vmatmul.f32.gmra.mxu0 %v621
    %v640 = vpop.f32.mrf.mxu0
    %v641 = vadd.f32 %v295, %v640
    %642 = vdwg.mxu0
    %v643 = vmul.f32 %v641, 0.5
    %v644 = vsel %vm131, %v641, %v643
    %v645 = vtanh.pop %v644
    %v646 = vmul.f32 %v645, 0.5
    %v647 = vadd.f32 %v646, 0.5
    %v648 = vsel %vm131, %v645, %v647
    %v649 = vmul.f32 %v648, %v426
    %651 = vrot.lane.b32.xlu0 %v648, 64
    %v652 = vpop.permute.xlu0 %651
    %v654 = vmul.f32 %v648, %v652
    %656 = vrot.lane.b32.xlu0 %v654, 32
    %v657 = vpop.permute.xlu0 %656
    %v659 = vadd.f32 %v649, %v657
    %v660 = vtanh.pop %v659
    %662 = vrot.lane.b32.xlu0 %v660, 64
    %v663 = vpop.permute.xlu0 %662
    %v665 = vmul.f32 %v648, %v663
    %v667 = vrot.slane %v665, 4
    %668 = vrot.lane.b32.xlu0 %v667, 64
    %v669 = vpop.permute.xlu0 %668
    %671 = vrot.lane.b32.xlu0 %v667, 96
    %v672 = vpop.permute.xlu0 %671
    %v674 = vsel %vm232, %v615, %v669
    %v675 = vsel %vm297, %v674, %v672
    %v676 = vsel %vm354, %v675, %v509
    %v678 = vrot.slane %v676, 4
    %680 = vmatpush.msra.mxu0 %v111
    %681 = vmatpush.msra.mxu0 %v109
    %682 = vmatpush.msra.mxu0 %v107
    %683 = vmatpush.msra.mxu0 %v105
    %684 = vmatpush.msra.mxu0 %v103
    %685 = vmatpush.msra.mxu0 %v101
    %686 = vmatpush.msra.mxu0 %v99
    %687 = vmatpush.msra.mxu0 %v97
    %688 = vmatpush.msra.mxu0 %v95
    %689 = vmatpush.msra.mxu0 %v93
    %690 = vmatpush.msra.mxu0 %v91
    %691 = vmatpush.msra.mxu0 %v89
    %692 = vmatpush.msra.mxu0 %v87
    %693 = vmatpush.msra.mxu0 %v85
    %694 = vmatpush.msra.mxu0 %v83
    %695 = vmatpush.msra.mxu0 %v81
    %696 = vmatmul.f32.gmra.mxu0 %v678
    %v697 = vpop.f32.mrf.mxu0
    %v698 = vadd.f32 %v357, %v697
    %699 = vdwg.mxu0
    %700 = vmatpush.msra.mxu0 %v112
    %701 = vmatpush.msra.mxu0 %v110
    %702 = vmatpush.msra.mxu0 %v108
    %703 = vmatpush.msra.mxu0 %v106
    %704 = vmatpush.msra.mxu0 %v104
    %705 = vmatpush.msra.mxu0 %v102
    %706 = vmatpush.msra.mxu0 %v100
    %707 = vmatpush.msra.mxu0 %v98
    %708 = vmatpush.msra.mxu0 %v96
    %709 = vmatpush.msra.mxu0 %v94
    %710 = vmatpush.msra.mxu0 %v92
    %711 = vmatpush.msra.mxu0 %v90
    %712 = vmatpush.msra.mxu0 %v88
    %713 = vmatpush.msra.mxu0 %v86
    %714 = vmatpush.msra.mxu0 %v84
    %715 = vmatpush.msra.mxu0 %v82
    %716 = vmatmul.f32.gmra.mxu0 %v678
    %v717 = vpop.f32.mrf.mxu0
    %v718 = vadd.f32 %v358, %v717
    %719 = vdwg.mxu0
    %v720 = vmul.f32 %v698, 0.5
    %v721 = vmul.f32 %v718, 0.5
    %v722 = vsel %vm131, %v698, %v720
    %v723 = vsel %vm147, %v718, %v721
    %v724 = vtanh.pop %v722
    %v725 = vtanh.pop %v723
    %v726 = vmul.f32 %v724, 0.5
    %v727 = vmul.f32 %v725, 0.5
    %v728 = vadd.f32 %v726, 0.5
    %v729 = vadd.f32 %v727, 0.5
    %v730 = vsel %vm131, %v724, %v728
    %v731 = vsel %vm147, %v725, %v729
    %v732 = vmul.f32 %v730, %v659
    %734 = vrot.lane.b32.xlu0 %v730, 64
    %v735 = vpop.permute.xlu0 %734
    %v737 = vmul.f32 %v730, %v735
    %739 = vrot.lane.b32.xlu0 %v737, 32
    %v740 = vpop.permute.xlu0 %739
    %v742 = vadd.f32 %v732, %v740
    %v743 = vtanh.pop %v742
    %745 = vrot.lane.b32.xlu0 %v743, 64
    %v746 = vpop.permute.xlu0 %745
    %v748 = vmul.f32 %v730, %v746
    %v749 = vmul.f32 %v731, %v501
    %751 = vrot.lane.b32.xlu0 %v731, 64
    %v752 = vpop.permute.xlu0 %751
    %v754 = vmul.f32 %v731, %v752
    %756 = vrot.lane.b32.xlu0 %v754, 32
    %v757 = vpop.permute.xlu0 %756
    %v759 = vadd.f32 %v749, %v757
    %v760 = vtanh.pop %v759
    %762 = vrot.lane.b32.xlu0 %v760, 64
    %v763 = vpop.permute.xlu0 %762
    %v765 = vmul.f32 %v731, %v763
    %767 = vrot.lane.b32.xlu0 %v748, 32
    %v768 = vpop.permute.xlu0 %767
    %771 = vrot.lane.b32.xlu0 %v765, 64
    %v772 = vpop.permute.xlu0 %771
    %v774 = vsel %vm232, %v768, %v772
    %v776 = vsel %vm297, %v774, 0
    %778 = vmatpush.msra.mxu0 0.0
    %779 = vmatpush.msra.mxu0 0.0
    %780 = vmatpush.msra.mxu0 0.0
    %781 = vmatpush.msra.mxu0 0.0
    %782 = vmatpush.msra.mxu0 0.0
    %783 = vmatpush.msra.mxu0 0.0
    %784 = vmatpush.msra.mxu0 0.0
    %785 = vmatpush.msra.mxu0 0.0
    %786 = vmatpush.msra.mxu0 %v112
    %787 = vmatpush.msra.mxu0 %v110
    %788 = vmatpush.msra.mxu0 %v108
    %789 = vmatpush.msra.mxu0 %v106
    %790 = vmatpush.msra.mxu0 %v104
    %791 = vmatpush.msra.mxu0 %v102
    %792 = vmatpush.msra.mxu0 %v100
    %793 = vmatpush.msra.mxu0 %v98
    %794 = vmatmul.f32.gmra.mxu0 %v776
    %v795 = vpop.f32.mrf.mxu0
    %v796 = vadd.f32 %v460, %v795
    %797 = vdwg.mxu0
    %v798 = vmul.f32 %v796, 0.5
    %v799 = vsel %vm131, %v796, %v798
    %v800 = vtanh.pop %v799
    %v801 = vmul.f32 %v800, 0.5
    %v802 = vadd.f32 %v801, 0.5
    %v803 = vsel %vm131, %v800, %v802
    %v804 = vmul.f32 %v803, %v759
    %806 = vrot.lane.b32.xlu0 %v803, 64
    %v807 = vpop.permute.xlu0 %806
    %v809 = vmul.f32 %v803, %v807
    %811 = vrot.lane.b32.xlu0 %v809, 32
    %v812 = vpop.permute.xlu0 %811
    %v814 = vadd.f32 %v804, %v812
    %v815 = vtanh.pop %v814
    %817 = vrot.lane.b32.xlu0 %v815, 64
    %v818 = vpop.permute.xlu0 %817
    %v820 = vmul.f32 %v803, %v818
    %v822 = vrot.slane %v820, 4
    %v824 = vsel %vm180, %v765, %v822
    %826 = vrot.lane.b32.xlu0 %v824, 32
    %v827 = vpop.permute.xlu0 %826
    %v828 = vsel %vm232, %v827, 0
    %830 = vmatpush.msra.mxu0 0.0
    %831 = vmatpush.msra.mxu0 0.0
    %832 = vmatpush.msra.mxu0 0.0
    %833 = vmatpush.msra.mxu0 0.0
    %834 = vmatpush.msra.mxu0 0.0
    %835 = vmatpush.msra.mxu0 0.0
    %836 = vmatpush.msra.mxu0 0.0
    %837 = vmatpush.msra.mxu0 0.0
    %838 = vmatpush.msra.mxu0 0.0
    %839 = vmatpush.msra.mxu0 0.0
    %840 = vmatpush.msra.mxu0 0.0
    %841 = vmatpush.msra.mxu0 0.0
    %842 = vmatpush.msra.mxu0 %v65
    %843 = vmatpush.msra.mxu0 %v64
    %844 = vmatpush.msra.mxu0 %v63
    %845 = vmatpush.msra.mxu0 %v62
    %846 = vmatmul.f32.gmra.mxu0 %v828
    %v847 = vpop.f32.mrf.mxu0
    %v848 = vadd.f32 %v513, %v847
    %849 = vdwg.mxu0
    %v850 = vmax.f32 %v848, 0.0
    %v852 = vsel %vm232, %v850, 0
    %854 = vmatpush.msra.mxu0 0.0
    %855 = vmatpush.msra.mxu0 0.0
    %856 = vmatpush.msra.mxu0 0.0
    %857 = vmatpush.msra.mxu0 0.0
    %858 = vmatpush.msra.mxu0 0.0
    %859 = vmatpush.msra.mxu0 0.0
    %860 = vmatpush.msra.mxu0 0.0
    %861 = vmatpush.msra.mxu0 0.0
    %862 = vmatpush.msra.mxu0 0.0
    %863 = vmatpush.msra.mxu0 0.0
    %864 = vmatpush.msra.mxu0 0.0
    %865 = vmatpush.msra.mxu0 0.0
    %866 = vmatpush.msra.mxu0 %v70
    %867 = vmatpush.msra.mxu0 %v69
    %868 = vmatpush.msra.mxu0 %v68
    %869 = vmatpush.msra.mxu0 %v67
    %870 = vmatmul.f32.gmra.mxu0 %v852
    %v871 = vpop.f32.mrf.mxu0
    %v872 = vadd.f32 %v542, %v871
    %873 = vdwg.mxu0
    %v874 = vadd.f32 %v872, %v567
    %875 = vrot.lane.b32.xlu0 %v748, 64
    %v876 = vpop.permute.xlu0 %875
    %v878 = vsel %vm232, %v290, %v876
    %v880 = vsel %vm297, %v878, 0
    %882 = vmatpush.msra.mxu0 0.0
    %883 = vmatpush.msra.mxu0 0.0
    %884 = vmatpush.msra.mxu0 0.0
    %885 = vmatpush.msra.mxu0 0.0
    %886 = vmatpush.msra.mxu0 0.0
    %887 = vmatpush.msra.mxu0 0.0
    %888 = vmatpush.msra.mxu0 0.0
    %889 = vmatpush.msra.mxu0 0.0
    %890 = vmatpush.msra.mxu0 %v79
    %891 = vmatpush.msra.mxu0 %v78
    %892 = vmatpush.msra.mxu0 %v77
    %893 = vmatpush.msra.mxu0 %v76
    %894 = vmatpush.msra.mxu0 %v75
    %895 = vmatpush.msra.mxu0 %v74
    %896 = vmatpush.msra.mxu0 %v73
    %897 = vmatpush.msra.mxu0 %v72
    %898 = vmatmul.f32.gmra.mxu0 %v880
    %v899 = vpop.f32.mrf.mxu0
    %v900 = vadd.f32 %v295, %v899
    %901 = vdwg.mxu0
    %v902 = vmul.f32 %v900, 0.5
    %v903 = vsel %vm131, %v900, %v902
    %v904 = vtanh.pop %v903
    %v905 = vmul.f32 %v904, 0.5
    %v906 = vadd.f32 %v905, 0.5
    %v907 = vsel %vm131, %v904, %v906
    %v908 = vmul.f32 %v907, %v742
    %910 = vrot.lane.b32.xlu0 %v907, 64
    %v911 = vpop.permute.xlu0 %910
    %v913 = vmul.f32 %v907, %v911
    %915 = vrot.lane.b32.xlu0 %v913, 32
    %v916 = vpop.permute.xlu0 %915
    %v918 = vadd.f32 %v908, %v916
    %v919 = vtanh.pop %v918
    %921 = vrot.lane.b32.xlu0 %v919, 64
    %v922 = vpop.permute.xlu0 %921
    %v924 = vmul.f32 %v907, %v922
    %v926 = vrot.slane %v924, 4
    %927 = vrot.lane.b32.xlu0 %v926, 64
    %v928 = vpop.permute.xlu0 %927
    %930 = vrot.lane.b32.xlu0 %v926, 96
    %v931 = vpop.permute.xlu0 %930
    %v933 = vsel %vm232, %v290, %v928
    %v934 = vsel %vm297, %v933, %v931
    %v935 = vsel %vm354, %v934, %v822
    %v937 = vrot.slane %v935, 4
    %939 = vmatpush.msra.mxu0 %v111
    %940 = vmatpush.msra.mxu0 %v109
    %941 = vmatpush.msra.mxu0 %v107
    %942 = vmatpush.msra.mxu0 %v105
    %943 = vmatpush.msra.mxu0 %v103
    %944 = vmatpush.msra.mxu0 %v101
    %945 = vmatpush.msra.mxu0 %v99
    %946 = vmatpush.msra.mxu0 %v97
    %947 = vmatpush.msra.mxu0 %v95
    %948 = vmatpush.msra.mxu0 %v93
    %949 = vmatpush.msra.mxu0 %v91
    %950 = vmatpush.msra.mxu0 %v89
    %951 = vmatpush.msra.mxu0 %v87
    %952 = vmatpush.msra.mxu0 %v85
    %953 = vmatpush.msra.mxu0 %v83
    %954 = vmatpush.msra.mxu0 %v81
    %955 = vmatmul.f32.gmra.mxu0 %v937
    %v956 = vpop.f32.mrf.mxu0
    %v957 = vadd.f32 %v357, %v956
    %958 = vdwg.mxu0
    %959 = vmatpush.msra.mxu0 %v112
    %960 = vmatpush.msra.mxu0 %v110
    %961 = vmatpush.msra.mxu0 %v108
    %962 = vmatpush.msra.mxu0 %v106
    %963 = vmatpush.msra.mxu0 %v104
    %964 = vmatpush.msra.mxu0 %v102
    %965 = vmatpush.msra.mxu0 %v100
    %966 = vmatpush.msra.mxu0 %v98
    %967 = vmatpush.msra.mxu0 %v96
    %968 = vmatpush.msra.mxu0 %v94
    %969 = vmatpush.msra.mxu0 %v92
    %970 = vmatpush.msra.mxu0 %v90
    %971 = vmatpush.msra.mxu0 %v88
    %972 = vmatpush.msra.mxu0 %v86
    %973 = vmatpush.msra.mxu0 %v84
    %974 = vmatpush.msra.mxu0 %v82
    %975 = vmatmul.f32.gmra.mxu0 %v937
    %v976 = vpop.f32.mrf.mxu0
    %v977 = vadd.f32 %v358, %v976
    %978 = vdwg.mxu0
    %v979 = vmul.f32 %v957, 0.5
    %v980 = vmul.f32 %v977, 0.5
    %v981 = vsel %vm131, %v957, %v979
    %v982 = vsel %vm147, %v977, %v980
    %v983 = vtanh.pop %v981
    %v984 = vtanh.pop %v982
    %v985 = vmul.f32 %v983, 0.5
    %v986 = vmul.f32 %v984, 0.5
    %v987 = vadd.f32 %v985, 0.5
    %v988 = vadd.f32 %v986, 0.5
    %v989 = vsel %vm131, %v983, %v987
    %v990 = vsel %vm147, %v984, %v988
    %v991 = vmul.f32 %v989, %v918
    %993 = vrot.lane.b32.xlu0 %v989, 64
    %v994 = vpop.permute.xlu0 %993
    %v996 = vmul.f32 %v989, %v994
    %998 = vrot.lane.b32.xlu0 %v996, 32
    %v999 = vpop.permute.xlu0 %998
    %v1001 = vadd.f32 %v991, %v999
    %v1002 = vtanh.pop %v1001
    %1004 = vrot.lane.b32.xlu0 %v1002, 64
    %v1005 = vpop.permute.xlu0 %1004
    %v1007 = vmul.f32 %v989, %v1005
    %v1008 = vmul.f32 %v990, %v814
    %1010 = vrot.lane.b32.xlu0 %v990, 64
    %v1011 = vpop.permute.xlu0 %1010
    %v1013 = vmul.f32 %v990, %v1011
    %1015 = vrot.lane.b32.xlu0 %v1013, 32
    %v1016 = vpop.permute.xlu0 %1015
    %v1018 = vadd.f32 %v1008, %v1016
    %v1019 = vtanh.pop %v1018
    %1021 = vrot.lane.b32.xlu0 %v1019, 64
    %v1022 = vpop.permute.xlu0 %1021
    %v1024 = vmul.f32 %v990, %v1022
    %1026 = vrot.lane.b32.xlu0 %v1007, 32
    %v1027 = vpop.permute.xlu0 %1026
    %1030 = vrot.lane.b32.xlu0 %v1024, 64
    %v1031 = vpop.permute.xlu0 %1030
    %v1033 = vsel %vm232, %v1027, %v1031
    %v1035 = vsel %vm297, %v1033, 0
    %1037 = vmatpush.msra.mxu0 0.0
    %1038 = vmatpush.msra.mxu0 0.0
    %1039 = vmatpush.msra.mxu0 0.0
    %1040 = vmatpush.msra.mxu0 0.0
    %1041 = vmatpush.msra.mxu0 0.0
    %1042 = vmatpush.msra.mxu0 0.0
    %1043 = vmatpush.msra.mxu0 0.0
    %1044 = vmatpush.msra.mxu0 0.0
    %1045 = vmatpush.msra.mxu0 %v112
    %1046 = vmatpush.msra.mxu0 %v110
    %1047 = vmatpush.msra.mxu0 %v108
    %1048 = vmatpush.msra.mxu0 %v106
    %1049 = vmatpush.msra.mxu0 %v104
    %1050 = vmatpush.msra.mxu0 %v102
    %1051 = vmatpush.msra.mxu0 %v100
    %1052 = vmatpush.msra.mxu0 %v98
    %1053 = vmatmul.f32.gmra.mxu0 %v1035
    %v1054 = vpop.f32.mrf.mxu0
    %v1055 = vadd.f32 %v460, %v1054
    %1056 = vdwg.mxu0
    %v1057 = vmul.f32 %v1055, 0.5
    %v1058 = vsel %vm131, %v1055, %v1057
    %v1059 = vtanh.pop %v1058
    %v1060 = vmul.f32 %v1059, 0.5
    %v1061 = vadd.f32 %v1060, 0.5
    %v1062 = vsel %vm131, %v1059, %v1061
    %v1063 = vmul.f32 %v1062, %v1018
    %1065 = vrot.lane.b32.xlu0 %v1062, 64
    %v1066 = vpop.permute.xlu0 %1065
    %v1068 = vmul.f32 %v1062, %v1066
    %1070 = vrot.lane.b32.xlu0 %v1068, 32
    %v1071 = vpop.permute.xlu0 %1070
    %v1073 = vadd.f32 %v1063, %v1071
    %v1074 = vtanh.pop %v1073
    %1076 = vrot.lane.b32.xlu0 %v1074, 64
    %v1077 = vpop.permute.xlu0 %1076
    %v1079 = vmul.f32 %v1062, %v1077
    %v1081 = vrot.slane %v1079, 4
    %v1083 = vsel %vm180, %v1024, %v1081
    %1085 = vrot.lane.b32.xlu0 %v1083, 32
    %v1086 = vpop.permute.xlu0 %1085
    %v1087 = vsel %vm232, %v1086, 0
    %1089 = vmatpush.msra.mxu0 0.0
    %1090 = vmatpush.msra.mxu0 0.0
    %1091 = vmatpush.msra.mxu0 0.0
    %1092 = vmatpush.msra.mxu0 0.0
    %1093 = vmatpush.msra.mxu0 0.0
    %1094 = vmatpush.msra.mxu0 0.0
    %1095 = vmatpush.msra.mxu0 0.0
    %1096 = vmatpush.msra.mxu0 0.0
    %1097 = vmatpush.msra.mxu0 0.0
    %1098 = vmatpush.msra.mxu0 0.0
    %1099 = vmatpush.msra.mxu0 0.0
    %1100 = vmatpush.msra.mxu0 0.0
    %1101 = vmatpush.msra.mxu0 %v65
    %1102 = vmatpush.msra.mxu0 %v64
    %1103 = vmatpush.msra.mxu0 %v63
    %1104 = vmatpush.msra.mxu0 %v62
    %1105 = vmatmul.f32.gmra.mxu0 %v1087
    %v1106 = vpop.f32.mrf.mxu0
    %v1107 = vadd.f32 %v513, %v1106
    %1108 = vdwg.mxu0
    %v1109 = vmax.f32 %v1107, 0.0
    %v1111 = vsel %vm232, %v1109, 0
    %1113 = vmatpush.msra.mxu0 0.0
    %1114 = vmatpush.msra.mxu0 0.0
    %1115 = vmatpush.msra.mxu0 0.0
    %1116 = vmatpush.msra.mxu0 0.0
    %1117 = vmatpush.msra.mxu0 0.0
    %1118 = vmatpush.msra.mxu0 0.0
    %1119 = vmatpush.msra.mxu0 0.0
    %1120 = vmatpush.msra.mxu0 0.0
    %1121 = vmatpush.msra.mxu0 0.0
    %1122 = vmatpush.msra.mxu0 0.0
    %1123 = vmatpush.msra.mxu0 0.0
    %1124 = vmatpush.msra.mxu0 0.0
    %1125 = vmatpush.msra.mxu0 %v70
    %1126 = vmatpush.msra.mxu0 %v69
    %1127 = vmatpush.msra.mxu0 %v68
    %1128 = vmatpush.msra.mxu0 %v67
    %1129 = vmatmul.f32.gmra.mxu0 %v1111
    %v1130 = vpop.f32.mrf.mxu0
    %v1131 = vadd.f32 %v542, %v1130
    %1132 = vdwg.mxu0
    %v1133 = vadd.f32 %v1131, %v150
    %v1135 = vsel %vm158, %v1133, 0
    %1137 = vmatpush.msra.mxu0 0.0
    %1138 = vmatpush.msra.mxu0 0.0
    %1139 = vmatpush.msra.mxu0 0.0
    %1140 = vmatpush.msra.mxu0 0.0
    %1141 = vmatpush.msra.mxu0 0.0
    %1142 = vmatpush.msra.mxu0 0.0
    %1143 = vmatpush.msra.mxu0 0.0
    %1144 = vmatpush.msra.mxu0 0.0
    %1145 = vmatpush.msra.mxu0 0.0
    %1146 = vmatpush.msra.mxu0 0.0
    %1147 = vmatpush.msra.mxu0 0.0
    %1148 = vmatpush.msra.mxu0 0.0
    %1149 = vmatpush.msra.mxu0 0.0
    %1150 = vmatpush.msra.mxu0 0.0
    %1151 = vmatpush.msra.mxu0 0.0
    %1152 = vmatpush.msra.mxu0 %v182
    %1153 = vmatmul.f32.gmra.mxu0 %v1135
    %v1154 = vpop.f32.mrf.mxu0
    %v1155 = vadd.f32 %v156, %v1154
    %1156 = vdwg.mxu0
    %v1157 = vmax.f32 %v1155, 0.0
    %v1159 = vsel %vm232, %v1157, 0
    %1161 = vmatpush.msra.mxu0 0.0
    %1162 = vmatpush.msra.mxu0 0.0
    %1163 = vmatpush.msra.mxu0 0.0
    %1164 = vmatpush.msra.mxu0 0.0
    %1165 = vmatpush.msra.mxu0 0.0
    %1166 = vmatpush.msra.mxu0 0.0
    %1167 = vmatpush.msra.mxu0 0.0
    %1168 = vmatpush.msra.mxu0 0.0
    %1169 = vmatpush.msra.mxu0 0.0
    %1170 = vmatpush.msra.mxu0 0.0
    %1171 = vmatpush.msra.mxu0 0.0
    %1172 = vmatpush.msra.mxu0 0.0
    %1173 = vmatpush.msra.mxu0 %v60
    %1174 = vmatpush.msra.mxu0 %v59
    %1175 = vmatpush.msra.mxu0 %v58
    %1176 = vmatpush.msra.mxu0 %v57
    %1177 = vmatmul.f32.gmra.mxu0 %v1159
    %v1178 = vpop.f32.mrf.mxu0
    %v1179 = vadd.f32 %v230, %v1178
    %1180 = vdwg.mxu0
    %v1181 = vmax.f32 %v1179, 0.0
    %1182 = vrot.lane.b32.xlu0 %v1007, 64
    %v1183 = vpop.permute.xlu0 %1182
    %v1185 = vsel %vm232, %v1181, %v1183
    %v1187 = vsel %vm297, %v1185, 0
    %1189 = vmatpush.msra.mxu0 0.0
    %1190 = vmatpush.msra.mxu0 0.0
    %1191 = vmatpush.msra.mxu0 0.0
    %1192 = vmatpush.msra.mxu0 0.0
    %1193 = vmatpush.msra.mxu0 0.0
    %1194 = vmatpush.msra.mxu0 0.0
    %1195 = vmatpush.msra.mxu0 0.0
    %1196 = vmatpush.msra.mxu0 0.0
    %1197 = vmatpush.msra.mxu0 %v79
    %1198 = vmatpush.msra.mxu0 %v78
    %1199 = vmatpush.msra.mxu0 %v77
    %1200 = vmatpush.msra.mxu0 %v76
    %1201 = vmatpush.msra.mxu0 %v75
    %1202 = vmatpush.msra.mxu0 %v74
    %1203 = vmatpush.msra.mxu0 %v73
    %1204 = vmatpush.msra.mxu0 %v72
    %1205 = vmatmul.f32.gmra.mxu0 %v1187
    %v1206 = vpop.f32.mrf.mxu0
    %v1207 = vadd.f32 %v295, %v1206
    %1208 = vdwg.mxu0
    %v1209 = vmul.f32 %v1207, 0.5
    %v1210 = vsel %vm131, %v1207, %v1209
    %v1211 = vtanh.pop %v1210
    %v1212 = vmul.f32 %v1211, 0.5
    %v1213 = vadd.f32 %v1212, 0.5
    %v1214 = vsel %vm131, %v1211, %v1213
    %v1215 = vmul.f32 %v1214, %v1001
    %1217 = vrot.lane.b32.xlu0 %v1214, 64
    %v1218 = vpop.permute.xlu0 %1217
    %v1220 = vmul.f32 %v1214, %v1218
    %1222 = vrot.lane.b32.xlu0 %v1220, 32
    %v1223 = vpop.permute.xlu0 %1222
    %v1225 = vadd.f32 %v1215, %v1223
    %v1226 = vtanh.pop %v1225
    %1228 = vrot.lane.b32.xlu0 %v1226, 64
    %v1229 = vpop.permute.xlu0 %1228
    %v1231 = vmul.f32 %v1214, %v1229
    %v1233 = vrot.slane %v1231, 4
    %1234 = vrot.lane.b32.xlu0 %v1233, 64
    %v1235 = vpop.permute.xlu0 %1234
    %1237 = vrot.lane.b32.xlu0 %v1233, 96
    %v1238 = vpop.permute.xlu0 %1237
    %v1240 = vsel %vm232, %v1181, %v1235
    %v1241 = vsel %vm297, %v1240, %v1238
    %v1242 = vsel %vm354, %v1241, %v1081
    %v1244 = vrot.slane %v1242, 4
    %1246 = vmatpush.msra.mxu0 %v111
    %1247 = vmatpush.msra.mxu0 %v109
    %1248 = vmatpush.msra.mxu0 %v107
    %1249 = vmatpush.msra.mxu0 %v105
    %1250 = vmatpush.msra.mxu0 %v103
    %1251 = vmatpush.msra.mxu0 %v101
    %1252 = vmatpush.msra.mxu0 %v99
    %1253 = vmatpush.msra.mxu0 %v97
    %1254 = vmatpush.msra.mxu0 %v95
    %1255 = vmatpush.msra.mxu0 %v93
    %1256 = vmatpush.msra.mxu0 %v91
    %1257 = vmatpush.msra.mxu0 %v89
    %1258 = vmatpush.msra.mxu0 %v87
    %1259 = vmatpush.msra.mxu0 %v85
    %1260 = vmatpush.msra.mxu0 %v83
    %1261 = vmatpush.msra.mxu0 %v81
    %1262 = vmatmul.f32.gmra.mxu0 %v1244
    %v1263 = vpop.f32.mrf.mxu0
    %v1264 = vadd.f32 %v357, %v1263
    %1265 = vdwg.mxu0
    %1266 = vmatpush.msra.mxu0 %v112
    %1267 = vmatpush.msra.mxu0 %v110
    %1268 = vmatpush.msra.mxu0 %v108
    %1269 = vmatpush.msra.mxu0 %v106
    %1270 = vmatpush.msra.mxu0 %v104
    %1271 = vmatpush.msra.mxu0 %v102
    %1272 = vmatpush.msra.mxu0 %v100
    %1273 = vmatpush.msra.mxu0 %v98
    %1274 = vmatpush.msra.mxu0 %v96
    %1275 = vmatpush.msra.mxu0 %v94
    %1276 = vmatpush.msra.mxu0 %v92
    %1277 = vmatpush.msra.mxu0 %v90
    %1278 = vmatpush.msra.mxu0 %v88
    %1279 = vmatpush.msra.mxu0 %v86
    %1280 = vmatpush.msra.mxu0 %v84
    %1281 = vmatpush.msra.mxu0 %v82
    %1282 = vmatmul.f32.gmra.mxu0 %v1244
    %v1283 = vpop.f32.mrf.mxu0
    %v1284 = vadd.f32 %v358, %v1283
    %1285 = vdwg.mxu0
    %v1286 = vmul.f32 %v1264, 0.5
    %v1287 = vmul.f32 %v1284, 0.5
    %v1288 = vsel %vm131, %v1264, %v1286
    %v1289 = vsel %vm147, %v1284, %v1287
    %v1290 = vtanh.pop %v1288
    %v1291 = vtanh.pop %v1289
    %v1292 = vmul.f32 %v1290, 0.5
    %v1293 = vmul.f32 %v1291, 0.5
    %v1294 = vadd.f32 %v1292, 0.5
    %v1295 = vadd.f32 %v1293, 0.5
    %v1296 = vsel %vm131, %v1290, %v1294
    %v1297 = vsel %vm147, %v1291, %v1295
    %v1298 = vmul.f32 %v1296, %v1225
    %1300 = vrot.lane.b32.xlu0 %v1296, 64
    %v1301 = vpop.permute.xlu0 %1300
    %v1303 = vmul.f32 %v1296, %v1301
    %1305 = vrot.lane.b32.xlu0 %v1303, 32
    %v1306 = vpop.permute.xlu0 %1305
    %v1308 = vadd.f32 %v1298, %v1306
    %v1309 = vtanh.pop %v1308
    %1311 = vrot.lane.b32.xlu0 %v1309, 64
    %v1312 = vpop.permute.xlu0 %1311
    %v1314 = vmul.f32 %v1296, %v1312
    %v1315 = vmul.f32 %v1297, %v1073
    %1317 = vrot.lane.b32.xlu0 %v1297, 64
    %v1318 = vpop.permute.xlu0 %1317
    %v1320 = vmul.f32 %v1297, %v1318
    %1322 = vrot.lane.b32.xlu0 %v1320, 32
    %v1323 = vpop.permute.xlu0 %1322
    %v1325 = vadd.f32 %v1315, %v1323
    %v1326 = vtanh.pop %v1325
    %1328 = vrot.lane.b32.xlu0 %v1326, 64
    %v1329 = vpop.permute.xlu0 %1328
    %v1331 = vmul.f32 %v1297, %v1329
    %1333 = vrot.lane.b32.xlu0 %v1314, 32
    %v1334 = vpop.permute.xlu0 %1333
    %1337 = vrot.lane.b32.xlu0 %v1331, 64
    %v1338 = vpop.permute.xlu0 %1337
    %v1340 = vsel %vm232, %v1334, %v1338
    %v1342 = vsel %vm297, %v1340, 0
    %1344 = vmatpush.msra.mxu0 0.0
    %1345 = vmatpush.msra.mxu0 0.0
    %1346 = vmatpush.msra.mxu0 0.0
    %1347 = vmatpush.msra.mxu0 0.0
    %1348 = vmatpush.msra.mxu0 0.0
    %1349 = vmatpush.msra.mxu0 0.0
    %1350 = vmatpush.msra.mxu0 0.0
    %1351 = vmatpush.msra.mxu0 0.0
    %1352 = vmatpush.msra.mxu0 %v112
    %1353 = vmatpush.msra.mxu0 %v110
    %1354 = vmatpush.msra.mxu0 %v108
    %1355 = vmatpush.msra.mxu0 %v106
    %1356 = vmatpush.msra.mxu0 %v104
    %1357 = vmatpush.msra.mxu0 %v102
    %1358 = vmatpush.msra.mxu0 %v100
    %1359 = vmatpush.msra.mxu0 %v98
    %1360 = vmatmul.f32.gmra.mxu0 %v1342
    %v1361 = vpop.f32.mrf.mxu0
    %v1362 = vadd.f32 %v460, %v1361
    %1363 = vdwg.mxu0
    %v1364 = vmul.f32 %v1362, 0.5
    %v1365 = vsel %vm131, %v1362, %v1364
    %v1366 = vtanh.pop %v1365
    %v1367 = vmul.f32 %v1366, 0.5
    %v1368 = vadd.f32 %v1367, 0.5
    %v1369 = vsel %vm131, %v1366, %v1368
    %v1370 = vmul.f32 %v1369, %v1325
    %1372 = vrot.lane.b32.xlu0 %v1369, 64
    %v1373 = vpop.permute.xlu0 %1372
    %v1375 = vmul.f32 %v1369, %v1373
    %1377 = vrot.lane.b32.xlu0 %v1375, 32
    %v1378 = vpop.permute.xlu0 %1377
    %v1380 = vadd.f32 %v1370, %v1378
    %v1381 = vtanh.pop %v1380
    %1383 = vrot.lane.b32.xlu0 %v1381, 64
    %v1384 = vpop.permute.xlu0 %1383
    %v1386 = vmul.f32 %v1369, %v1384
    %v1388 = vrot.slane %v1386, 4
    %v1390 = vsel %vm180, %v1331, %v1388
    %1392 = vrot.lane.b32.xlu0 %v1390, 32
    %v1393 = vpop.permute.xlu0 %1392
    %v1394 = vsel %vm232, %v1393, 0
    %1396 = vmatpush.msra.mxu0 0.0
    %1397 = vmatpush.msra.mxu0 0.0
    %1398 = vmatpush.msra.mxu0 0.0
    %1399 = vmatpush.msra.mxu0 0.0
    %1400 = vmatpush.msra.mxu0 0.0
    %1401 = vmatpush.msra.mxu0 0.0
    %1402 = vmatpush.msra.mxu0 0.0
    %1403 = vmatpush.msra.mxu0 0.0
    %1404 = vmatpush.msra.mxu0 0.0
    %1405 = vmatpush.msra.mxu0 0.0
    %1406 = vmatpush.msra.mxu0 0.0
    %1407 = vmatpush.msra.mxu0 0.0
    %1408 = vmatpush.msra.mxu0 %v65
    %1409 = vmatpush.msra.mxu0 %v64
    %1410 = vmatpush.msra.mxu0 %v63
    %1411 = vmatpush.msra.mxu0 %v62
    %1412 = vmatmul.f32.gmra.mxu0 %v1394
    %v1413 = vpop.f32.mrf.mxu0
    %v1414 = vadd.f32 %v513, %v1413
    %1415 = vdwg.mxu0
    %v1416 = vmax.f32 %v1414, 0.0
    %v1418 = vsel %vm232, %v1416, 0
    %1420 = vmatpush.msra.mxu0 0.0
    %1421 = vmatpush.msra.mxu0 0.0
    %1422 = vmatpush.msra.mxu0 0.0
    %1423 = vmatpush.msra.mxu0 0.0
    %1424 = vmatpush.msra.mxu0 0.0
    %1425 = vmatpush.msra.mxu0 0.0
    %1426 = vmatpush.msra.mxu0 0.0
    %1427 = vmatpush.msra.mxu0 0.0
    %1428 = vmatpush.msra.mxu0 0.0
    %1429 = vmatpush.msra.mxu0 0.0
    %1430 = vmatpush.msra.mxu0 0.0
    %1431 = vmatpush.msra.mxu0 0.0
    %1432 = vmatpush.msra.mxu0 %v70
    %1433 = vmatpush.msra.mxu0 %v69
    %1434 = vmatpush.msra.mxu0 %v68
    %1435 = vmatpush.msra.mxu0 %v67
    %1436 = vmatmul.f32.gmra.mxu0 %v1418
    %v1437 = vpop.f32.mrf.mxu0
    %v1438 = vadd.f32 %v542, %v1437
    %1439 = vdwg.mxu0
    %v1440 = vadd.f32 %v1438, %v1133
    %1441 = vrot.lane.b32.xlu0 %v1314, 64
    %v1442 = vpop.permute.xlu0 %1441
    %v1444 = vsel %vm232, %v291, %v1442
    %v1446 = vsel %vm297, %v1444, 0
    %1448 = vmatpush.msra.mxu0 0.0
    %1449 = vmatpush.msra.mxu0 0.0
    %1450 = vmatpush.msra.mxu0 0.0
    %1451 = vmatpush.msra.mxu0 0.0
    %1452 = vmatpush.msra.mxu0 0.0
    %1453 = vmatpush.msra.mxu0 0.0
    %1454 = vmatpush.msra.mxu0 0.0
    %1455 = vmatpush.msra.mxu0 0.0
    %1456 = vmatpush.msra.mxu0 %v79
    %1457 = vmatpush.msra.mxu0 %v78
    %1458 = vmatpush.msra.mxu0 %v77
    %1459 = vmatpush.msra.mxu0 %v76
    %1460 = vmatpush.msra.mxu0 %v75
    %1461 = vmatpush.msra.mxu0 %v74
    %1462 = vmatpush.msra.mxu0 %v73
    %1463 = vmatpush.msra.mxu0 %v72
    %1464 = vmatmul.f32.gmra.mxu0 %v1446
    %v1465 = vpop.f32.mrf.mxu0
    %v1466 = vadd.f32 %v295, %v1465
    %1467 = vdwg.mxu0
    %v1468 = vmul.f32 %v1466, 0.5
    %v1469 = vsel %vm131, %v1466, %v1468
    %v1470 = vtanh.pop %v1469
    %v1471 = vmul.f32 %v1470, 0.5
    %v1472 = vadd.f32 %v1471, 0.5
    %v1473 = vsel %vm131, %v1470, %v1472
    %v1474 = vmul.f32 %v1473, %v1308
    %1476 = vrot.lane.b32.xlu0 %v1473, 64
    %v1477 = vpop.permute.xlu0 %1476
    %v1479 = vmul.f32 %v1473, %v1477
    %1481 = vrot.lane.b32.xlu0 %v1479, 32
    %v1482 = vpop.permute.xlu0 %1481
    %v1484 = vadd.f32 %v1474, %v1482
    %v1485 = vtanh.pop %v1484
    %1487 = vrot.lane.b32.xlu0 %v1485, 64
    %v1488 = vpop.permute.xlu0 %1487
    %v1490 = vmul.f32 %v1473, %v1488
    %v1492 = vrot.slane %v1490, 4
    %1493 = vrot.lane.b32.xlu0 %v1492, 64
    %v1494 = vpop.permute.xlu0 %1493
    %1496 = vrot.lane.b32.xlu0 %v1492, 96
    %v1497 = vpop.permute.xlu0 %1496
    %v1499 = vsel %vm232, %v291, %v1494
    %v1500 = vsel %vm297, %v1499, %v1497
    %v1501 = vsel %vm354, %v1500, %v1388
    %v1503 = vrot.slane %v1501, 4
    %1505 = vmatpush.msra.mxu0 %v111
    %1506 = vmatpush.msra.mxu0 %v109
    %1507 = vmatpush.msra.mxu0 %v107
    %1508 = vmatpush.msra.mxu0 %v105
    %1509 = vmatpush.msra.mxu0 %v103
    %1510 = vmatpush.msra.mxu0 %v101
    %1511 = vmatpush.msra.mxu0 %v99
    %1512 = vmatpush.msra.mxu0 %v97
    %1513 = vmatpush.msra.mxu0 %v95
    %1514 = vmatpush.msra.mxu0 %v93
    %1515 = vmatpush.msra.mxu0 %v91
    %1516 = vmatpush.msra.mxu0 %v89
    %1517 = vmatpush.msra.mxu0 %v87
    %1518 = vmatpush.msra.mxu0 %v85
    %1519 = vmatpush.msra.mxu0 %v83
    %1520 = vmatpush.msra.mxu0 %v81
    %1521 = vmatmul.f32.gmra.mxu0 %v1503
    %v1522 = vpop.f32.mrf.mxu0
    %v1523 = vadd.f32 %v357, %v1522
    %1524 = vdwg.mxu0
    %1525 = vmatpush.msra.mxu0 %v112
    %1526 = vmatpush.msra.mxu0 %v110
    %1527 = vmatpush.msra.mxu0 %v108
    %1528 = vmatpush.msra.mxu0 %v106
    %1529 = vmatpush.msra.mxu0 %v104
    %1530 = vmatpush.msra.mxu0 %v102
    %1531 = vmatpush.msra.mxu0 %v100
    %1532 = vmatpush.msra.mxu0 %v98
    %1533 = vmatpush.msra.mxu0 %v96
    %1534 = vmatpush.msra.mxu0 %v94
    %1535 = vmatpush.msra.mxu0 %v92
    %1536 = vmatpush.msra.mxu0 %v90
    %1537 = vmatpush.msra.mxu0 %v88
    %1538 = vmatpush.msra.mxu0 %v86
    %1539 = vmatpush.msra.mxu0 %v84
    %1540 = vmatpush.msra.mxu0 %v82
    %1541 = vmatmul.f32.gmra.mxu0 %v1503
    %v1542 = vpop.f32.mrf.mxu0
    %v1543 = vadd.f32 %v358, %v1542
    %1544 = vdwg.mxu0
    %v1545 = vmul.f32 %v1523, 0.5
    %v1546 = vmul.f32 %v1543, 0.5
    %v1547 = vsel %vm131, %v1523, %v1545
    %v1548 = vsel %vm147, %v1543, %v1546
    %v1549 = vtanh.pop %v1547
    %v1550 = vtanh.pop %v1548
    %v1551 = vmul.f32 %v1549, 0.5
    %v1552 = vmul.f32 %v1550, 0.5
    %v1553 = vadd.f32 %v1551, 0.5
    %v1554 = vadd.f32 %v1552, 0.5
    %v1555 = vsel %vm131, %v1549, %v1553
    %v1556 = vsel %vm147, %v1550, %v1554
    %v1557 = vmul.f32 %v1555, %v1484
    %1559 = vrot.lane.b32.xlu0 %v1555, 64
    %v1560 = vpop.permute.xlu0 %1559
    %v1562 = vmul.f32 %v1555, %v1560
    %1564 = vrot.lane.b32.xlu0 %v1562, 32
    %v1565 = vpop.permute.xlu0 %1564
    %v1567 = vadd.f32 %v1557, %v1565
    %v1568 = vtanh.pop %v1567
    %1570 = vrot.lane.b32.xlu0 %v1568, 64
    %v1571 = vpop.permute.xlu0 %1570
    %v1573 = vmul.f32 %v1555, %v1571
    %v1574 = vmul.f32 %v1556, %v1380
    %1576 = vrot.lane.b32.xlu0 %v1556, 64
    %v1577 = vpop.permute.xlu0 %1576
    %v1579 = vmul.f32 %v1556, %v1577
    %1581 = vrot.lane.b32.xlu0 %v1579, 32
    %v1582 = vpop.permute.xlu0 %1581
    %v1584 = vadd.f32 %v1574, %v1582
    %v1585 = vtanh.pop %v1584
    %1587 = vrot.lane.b32.xlu0 %v1585, 64
    %v1588 = vpop.permute.xlu0 %1587
    %v1590 = vmul.f32 %v1556, %v1588
    %1592 = vrot.lane.b32.xlu0 %v1573, 32
    %v1593 = vpop.permute.xlu0 %1592
    %1596 = vrot.lane.b32.xlu0 %v1590, 64
    %v1597 = vpop.permute.xlu0 %1596
    %v1599 = vsel %vm232, %v1593, %v1597
    %v1601 = vsel %vm297, %v1599, 0
    %1603 = vmatpush.msra.mxu0 0.0
    %1604 = vmatpush.msra.mxu0 0.0
    %1605 = vmatpush.msra.mxu0 0.0
    %1606 = vmatpush.msra.mxu0 0.0
    %1607 = vmatpush.msra.mxu0 0.0
    %1608 = vmatpush.msra.mxu0 0.0
    %1609 = vmatpush.msra.mxu0 0.0
    %1610 = vmatpush.msra.mxu0 0.0
    %1611 = vmatpush.msra.mxu0 %v112
    %1612 = vmatpush.msra.mxu0 %v110
    %1613 = vmatpush.msra.mxu0 %v108
    %1614 = vmatpush.msra.mxu0 %v106
    %1615 = vmatpush.msra.mxu0 %v104
    %1616 = vmatpush.msra.mxu0 %v102
    %1617 = vmatpush.msra.mxu0 %v100
    %1618 = vmatpush.msra.mxu0 %v98
    %1619 = vmatmul.f32.gmra.mxu0 %v1601
    %v1620 = vpop.f32.mrf.mxu0
    %v1621 = vadd.f32 %v460, %v1620
    %1622 = vdwg.mxu0
    %v1623 = vmul.f32 %v1621, 0.5
    %v1624 = vsel %vm131, %v1621, %v1623
    %v1625 = vtanh.pop %v1624
    %v1626 = vmul.f32 %v1625, 0.5
    %v1627 = vadd.f32 %v1626, 0.5
    %v1628 = vsel %vm131, %v1625, %v1627
    %v1629 = vmul.f32 %v1628, %v1584
    %1631 = vrot.lane.b32.xlu0 %v1628, 64
    %v1632 = vpop.permute.xlu0 %1631
    %v1634 = vmul.f32 %v1628, %v1632
    %1636 = vrot.lane.b32.xlu0 %v1634, 32
    %v1637 = vpop.permute.xlu0 %1636
    %v1639 = vadd.f32 %v1629, %v1637
    %v1640 = vtanh.pop %v1639
    %1642 = vrot.lane.b32.xlu0 %v1640, 64
    %v1643 = vpop.permute.xlu0 %1642
    %v1645 = vmul.f32 %v1628, %v1643
    %v1647 = vrot.slane %v1645, 4
    %v1649 = vsel %vm180, %v1590, %v1647
    %1651 = vrot.lane.b32.xlu0 %v1649, 32
    %v1652 = vpop.permute.xlu0 %1651
    %v1653 = vsel %vm232, %v1652, 0
    %1655 = vmatpush.msra.mxu0 0.0
    %1656 = vmatpush.msra.mxu0 0.0
    %1657 = vmatpush.msra.mxu0 0.0
    %1658 = vmatpush.msra.mxu0 0.0
    %1659 = vmatpush.msra.mxu0 0.0
    %1660 = vmatpush.msra.mxu0 0.0
    %1661 = vmatpush.msra.mxu0 0.0
    %1662 = vmatpush.msra.mxu0 0.0
    %1663 = vmatpush.msra.mxu0 0.0
    %1664 = vmatpush.msra.mxu0 0.0
    %1665 = vmatpush.msra.mxu0 0.0
    %1666 = vmatpush.msra.mxu0 0.0
    %1667 = vmatpush.msra.mxu0 %v65
    %1668 = vmatpush.msra.mxu0 %v64
    %1669 = vmatpush.msra.mxu0 %v63
    %1670 = vmatpush.msra.mxu0 %v62
    %1671 = vmatmul.f32.gmra.mxu0 %v1653
    %v1672 = vpop.f32.mrf.mxu0
    %v1673 = vadd.f32 %v513, %v1672
    %1674 = vdwg.mxu0
    %v1675 = vmax.f32 %v1673, 0.0
    %v1677 = vsel %vm232, %v1675, 0
    %1679 = vmatpush.msra.mxu0 0.0
    %1680 = vmatpush.msra.mxu0 0.0
    %1681 = vmatpush.msra.mxu0 0.0
    %1682 = vmatpush.msra.mxu0 0.0
    %1683 = vmatpush.msra.mxu0 0.0
    %1684 = vmatpush.msra.mxu0 0.0
    %1685 = vmatpush.msra.mxu0 0.0
    %1686 = vmatpush.msra.mxu0 0.0
    %1687 = vmatpush.msra.mxu0 0.0
    %1688 = vmatpush.msra.mxu0 0.0
    %1689 = vmatpush.msra.mxu0 0.0
    %1690 = vmatpush.msra.mxu0 0.0
    %1691 = vmatpush.msra.mxu0 %v70
    %1692 = vmatpush.msra.mxu0 %v69
    %1693 = vmatpush.msra.mxu0 %v68
    %1694 = vmatpush.msra.mxu0 %v67
    %1695 = vmatmul.f32.gmra.mxu0 %v1677
    %v1696 = vpop.f32.mrf.mxu0
    %v1697 = vadd.f32 %v542, %v1696
    %1698 = vdwg.mxu0
    %v1699 = vadd.f32 %v1697, %v152
    %v1701 = vsel %vm158, %v1699, 0
    %1703 = vmatpush.msra.mxu0 0.0
    %1704 = vmatpush.msra.mxu0 0.0
    %1705 = vmatpush.msra.mxu0 0.0
    %1706 = vmatpush.msra.mxu0 0.0
    %1707 = vmatpush.msra.mxu0 0.0
    %1708 = vmatpush.msra.mxu0 0.0
    %1709 = vmatpush.msra.mxu0 0.0
    %1710 = vmatpush.msra.mxu0 0.0
    %1711 = vmatpush.msra.mxu0 0.0
    %1712 = vmatpush.msra.mxu0 0.0
    %1713 = vmatpush.msra.mxu0 0.0
    %1714 = vmatpush.msra.mxu0 0.0
    %1715 = vmatpush.msra.mxu0 0.0
    %1716 = vmatpush.msra.mxu0 0.0
    %1717 = vmatpush.msra.mxu0 0.0
    %1718 = vmatpush.msra.mxu0 %v182
    %1719 = vmatmul.f32.gmra.mxu0 %v1701
    %v1720 = vpop.f32.mrf.mxu0
    %v1721 = vadd.f32 %v156, %v1720
    %1722 = vdwg.mxu0
    %v1723 = vmax.f32 %v1721, 0.0
    %v1725 = vsel %vm232, %v1723, 0
    %1727 = vmatpush.msra.mxu0 0.0
    %1728 = vmatpush.msra.mxu0 0.0
    %1729 = vmatpush.msra.mxu0 0.0
    %1730 = vmatpush.msra.mxu0 0.0
    %1731 = vmatpush.msra.mxu0 0.0
    %1732 = vmatpush.msra.mxu0 0.0
    %1733 = vmatpush.msra.mxu0 0.0
    %1734 = vmatpush.msra.mxu0 0.0
    %1735 = vmatpush.msra.mxu0 0.0
    %1736 = vmatpush.msra.mxu0 0.0
    %1737 = vmatpush.msra.mxu0 0.0
    %1738 = vmatpush.msra.mxu0 0.0
    %1739 = vmatpush.msra.mxu0 %v60
    %1740 = vmatpush.msra.mxu0 %v59
    %1741 = vmatpush.msra.mxu0 %v58
    %1742 = vmatpush.msra.mxu0 %v57
    %1743 = vmatmul.f32.gmra.mxu0 %v1725
    %v1744 = vpop.f32.mrf.mxu0
    %v1745 = vadd.f32 %v230, %v1744
    %1746 = vdwg.mxu0
    %v1747 = vmax.f32 %v1745, 0.0
    %1748 = vrot.lane.b32.xlu0 %v1573, 64
    %v1749 = vpop.permute.xlu0 %1748
    %v1751 = vsel %vm232, %v1747, %v1749
    %v1753 = vsel %vm297, %v1751, 0
    %1755 = vmatpush.msra.mxu0 0.0
    %1756 = vmatpush.msra.mxu0 0.0
    %1757 = vmatpush.msra.mxu0 0.0
    %1758 = vmatpush.msra.mxu0 0.0
    %1759 = vmatpush.msra.mxu0 0.0
    %1760 = vmatpush.msra.mxu0 0.0
    %1761 = vmatpush.msra.mxu0 0.0
    %1762 = vmatpush.msra.mxu0 0.0
    %1763 = vmatpush.msra.mxu0 %v79
    %1764 = vmatpush.msra.mxu0 %v78
    %1765 = vmatpush.msra.mxu0 %v77
    %1766 = vmatpush.msra.mxu0 %v76
    %1767 = vmatpush.msra.mxu0 %v75
    %1768 = vmatpush.msra.mxu0 %v74
    %1769 = vmatpush.msra.mxu0 %v73
    %1770 = vmatpush.msra.mxu0 %v72
    %1771 = vmatmul.f32.gmra.mxu0 %v1753
    %v1772 = vpop.f32.mrf.mxu0
    %v1773 = vadd.f32 %v295, %v1772
    %1774 = vdwg.mxu0
    %v1775 = vmul.f32 %v1773, 0.5
    %v1776 = vsel %vm131, %v1773, %v1775
    %v1777 = vtanh.pop %v1776
    %v1778 = vmul.f32 %v1777, 0.5
    %v1779 = vadd.f32 %v1778, 0.5
    %v1780 = vsel %vm131, %v1777, %v1779
    %v1781 = vmul.f32 %v1780, %v1567
    %1783 = vrot.lane.b32.xlu0 %v1780, 64
    %v1784 = vpop.permute.xlu0 %1783
    %v1786 = vmul.f32 %v1780, %v1784
    %1788 = vrot.lane.b32.xlu0 %v1786, 32
    %v1789 = vpop.permute.xlu0 %1788
    %v1791 = vadd.f32 %v1781, %v1789
    %v1792 = vtanh.pop %v1791
    %1794 = vrot.lane.b32.xlu0 %v1792, 64
    %v1795 = vpop.permute.xlu0 %1794
    %v1797 = vmul.f32 %v1780, %v1795
    %v1799 = vrot.slane %v1797, 4
    %1800 = vrot.lane.b32.xlu0 %v1799, 64
    %v1801 = vpop.permute.xlu0 %1800
    %1803 = vrot.lane.b32.xlu0 %v1799, 96
    %v1804 = vpop.permute.xlu0 %1803
    %v1806 = vsel %vm232, %v1747, %v1801
    %v1807 = vsel %vm297, %v1806, %v1804
    %v1808 = vsel %vm354, %v1807, %v1647
    %v1810 = vrot.slane %v1808, 4
    %1812 = vmatpush.msra.mxu0 %v111
    %1813 = vmatpush.msra.mxu0 %v109
    %1814 = vmatpush.msra.mxu0 %v107
    %1815 = vmatpush.msra.mxu0 %v105
    %1816 = vmatpush.msra.mxu0 %v103
    %1817 = vmatpush.msra.mxu0 %v101
    %1818 = vmatpush.msra.mxu0 %v99
    %1819 = vmatpush.msra.mxu0 %v97
    %1820 = vmatpush.msra.mxu0 %v95
    %1821 = vmatpush.msra.mxu0 %v93
    %1822 = vmatpush.msra.mxu0 %v91
    %1823 = vmatpush.msra.mxu0 %v89
    %1824 = vmatpush.msra.mxu0 %v87
    %1825 = vmatpush.msra.mxu0 %v85
    %1826 = vmatpush.msra.mxu0 %v83
    %1827 = vmatpush.msra.mxu0 %v81
    %1828 = vmatmul.f32.gmra.mxu0 %v1810
    %v1829 = vpop.f32.mrf.mxu0
    %v1830 = vadd.f32 %v357, %v1829
    %1831 = vdwg.mxu0
    %1832 = vmatpush.msra.mxu0 %v112
    %1833 = vmatpush.msra.mxu0 %v110
    %1834 = vmatpush.msra.mxu0 %v108
    %1835 = vmatpush.msra.mxu0 %v106
    %1836 = vmatpush.msra.mxu0 %v104
    %1837 = vmatpush.msra.mxu0 %v102
    %1838 = vmatpush.msra.mxu0 %v100
    %1839 = vmatpush.msra.mxu0 %v98
    %1840 = vmatpush.msra.mxu0 %v96
    %1841 = vmatpush.msra.mxu0 %v94
    %1842 = vmatpush.msra.mxu0 %v92
    %1843 = vmatpush.msra.mxu0 %v90
    %1844 = vmatpush.msra.mxu0 %v88
    %1845 = vmatpush.msra.mxu0 %v86
    %1846 = vmatpush.msra.mxu0 %v84
    %1847 = vmatpush.msra.mxu0 %v82
    %1848 = vmatmul.f32.gmra.mxu0 %v1810
    %v1849 = vpop.f32.mrf.mxu0
    %v1850 = vadd.f32 %v358, %v1849
    %1851 = vdwg.mxu0
    %v1852 = vmul.f32 %v1830, 0.5
    %v1853 = vmul.f32 %v1850, 0.5
    %v1854 = vsel %vm131, %v1830, %v1852
    %v1855 = vsel %vm147, %v1850, %v1853
    %v1856 = vtanh.pop %v1854
    %v1857 = vtanh.pop %v1855
    %v1858 = vmul.f32 %v1856, 0.5
    %v1859 = vmul.f32 %v1857, 0.5
    %v1860 = vadd.f32 %v1858, 0.5
    %v1861 = vadd.f32 %v1859, 0.5
    %v1862 = vsel %vm131, %v1856, %v1860
    %v1863 = vsel %vm147, %v1857, %v1861
    %v1864 = vmul.f32 %v1862, %v1791
    %1866 = vrot.lane.b32.xlu0 %v1862, 64
    %v1867 = vpop.permute.xlu0 %1866
    %v1869 = vmul.f32 %v1862, %v1867
    %1871 = vrot.lane.b32.xlu0 %v1869, 32
    %v1872 = vpop.permute.xlu0 %1871
    %v1874 = vadd.f32 %v1864, %v1872
    %v1875 = vtanh.pop %v1874
    %1877 = vrot.lane.b32.xlu0 %v1875, 64
    %v1878 = vpop.permute.xlu0 %1877
    %v1880 = vmul.f32 %v1862, %v1878
    %v1881 = vmul.f32 %v1863, %v1639
    %1883 = vrot.lane.b32.xlu0 %v1863, 64
    %v1884 = vpop.permute.xlu0 %1883
    %v1886 = vmul.f32 %v1863, %v1884
    %1888 = vrot.lane.b32.xlu0 %v1886, 32
    %v1889 = vpop.permute.xlu0 %1888
    %v1891 = vadd.f32 %v1881, %v1889
    %v1892 = vtanh.pop %v1891
    %1894 = vrot.lane.b32.xlu0 %v1892, 64
    %v1895 = vpop.permute.xlu0 %1894
    %v1897 = vmul.f32 %v1863, %v1895
    %1899 = vrot.lane.b32.xlu0 %v1880, 32
    %v1900 = vpop.permute.xlu0 %1899
    %1903 = vrot.lane.b32.xlu0 %v1897, 64
    %v1904 = vpop.permute.xlu0 %1903
    %v1906 = vsel %vm232, %v1900, %v1904
    %v1908 = vsel %vm297, %v1906, 0
    %1910 = vmatpush.msra.mxu0 0.0
    %1911 = vmatpush.msra.mxu0 0.0
    %1912 = vmatpush.msra.mxu0 0.0
    %1913 = vmatpush.msra.mxu0 0.0
    %1914 = vmatpush.msra.mxu0 0.0
    %1915 = vmatpush.msra.mxu0 0.0
    %1916 = vmatpush.msra.mxu0 0.0
    %1917 = vmatpush.msra.mxu0 0.0
    %1918 = vmatpush.msra.mxu0 %v112
    %1919 = vmatpush.msra.mxu0 %v110
    %1920 = vmatpush.msra.mxu0 %v108
    %1921 = vmatpush.msra.mxu0 %v106
    %1922 = vmatpush.msra.mxu0 %v104
    %1923 = vmatpush.msra.mxu0 %v102
    %1924 = vmatpush.msra.mxu0 %v100
    %1925 = vmatpush.msra.mxu0 %v98
    %1926 = vmatmul.f32.gmra.mxu0 %v1908
    %v1927 = vpop.f32.mrf.mxu0
    %v1928 = vadd.f32 %v460, %v1927
    %1929 = vdwg.mxu0
    %v1930 = vmul.f32 %v1928, 0.5
    %v1931 = vsel %vm131, %v1928, %v1930
    %v1932 = vtanh.pop %v1931
    %v1933 = vmul.f32 %v1932, 0.5
    %v1934 = vadd.f32 %v1933, 0.5
    %v1935 = vsel %vm131, %v1932, %v1934
    %v1936 = vmul.f32 %v1935, %v1891
    %1938 = vrot.lane.b32.xlu0 %v1935, 64
    %v1939 = vpop.permute.xlu0 %1938
    %v1941 = vmul.f32 %v1935, %v1939
    %1943 = vrot.lane.b32.xlu0 %v1941, 32
    %v1944 = vpop.permute.xlu0 %1943
    %v1946 = vadd.f32 %v1936, %v1944
    %v1947 = vtanh.pop %v1946
    %1949 = vrot.lane.b32.xlu0 %v1947, 64
    %v1950 = vpop.permute.xlu0 %1949
    %v1952 = vmul.f32 %v1935, %v1950
    %v1954 = vrot.slane %v1952, 4
    %v1956 = vsel %vm180, %v1897, %v1954
    %1958 = vrot.lane.b32.xlu0 %v1956, 32
    %v1959 = vpop.permute.xlu0 %1958
    %v1960 = vsel %vm232, %v1959, 0
    %1962 = vmatpush.msra.mxu0 0.0
    %1963 = vmatpush.msra.mxu0 0.0
    %1964 = vmatpush.msra.mxu0 0.0
    %1965 = vmatpush.msra.mxu0 0.0
    %1966 = vmatpush.msra.mxu0 0.0
    %1967 = vmatpush.msra.mxu0 0.0
    %1968 = vmatpush.msra.mxu0 0.0
    %1969 = vmatpush.msra.mxu0 0.0
    %1970 = vmatpush.msra.mxu0 0.0
    %1971 = vmatpush.msra.mxu0 0.0
    %1972 = vmatpush.msra.mxu0 0.0
    %1973 = vmatpush.msra.mxu0 0.0
    %1974 = vmatpush.msra.mxu0 %v65
    %1975 = vmatpush.msra.mxu0 %v64
    %1976 = vmatpush.msra.mxu0 %v63
    %1977 = vmatpush.msra.mxu0 %v62
    %1978 = vmatmul.f32.gmra.mxu0 %v1960
    %v1979 = vpop.f32.mrf.mxu0
    %v1980 = vadd.f32 %v513, %v1979
    %1981 = vdwg.mxu0
    %v1982 = vmax.f32 %v1980, 0.0
    %v1984 = vsel %vm232, %v1982, 0
    %1986 = vmatpush.msra.mxu0 0.0
    %1987 = vmatpush.msra.mxu0 0.0
    %1988 = vmatpush.msra.mxu0 0.0
    %1989 = vmatpush.msra.mxu0 0.0
    %1990 = vmatpush.msra.mxu0 0.0
    %1991 = vmatpush.msra.mxu0 0.0
    %1992 = vmatpush.msra.mxu0 0.0
    %1993 = vmatpush.msra.mxu0 0.0
    %1994 = vmatpush.msra.mxu0 0.0
    %1995 = vmatpush.msra.mxu0 0.0
    %1996 = vmatpush.msra.mxu0 0.0
    %1997 = vmatpush.msra.mxu0 0.0
    %1998 = vmatpush.msra.mxu0 %v70
    %1999 = vmatpush.msra.mxu0 %v69
    %2000 = vmatpush.msra.mxu0 %v68
    %2001 = vmatpush.msra.mxu0 %v67
    %2002 = vmatmul.f32.gmra.mxu0 %v1984
    %v2003 = vpop.f32.mrf.mxu0
    %v2004 = vadd.f32 %v542, %v2003
    %2005 = vdwg.mxu0
    %v2006 = vadd.f32 %v2004, %v1699
    %2007 = vrot.lane.b32.xlu0 %v1880, 64
    %v2008 = vpop.permute.xlu0 %2007
    %v2010 = vsel %vm232, %v292, %v2008
    %v2012 = vsel %vm297, %v2010, 0
    %2014 = vmatpush.msra.mxu0 0.0
    %2015 = vmatpush.msra.mxu0 0.0
    %2016 = vmatpush.msra.mxu0 0.0
    %2017 = vmatpush.msra.mxu0 0.0
    %2018 = vmatpush.msra.mxu0 0.0
    %2019 = vmatpush.msra.mxu0 0.0
    %2020 = vmatpush.msra.mxu0 0.0
    %2021 = vmatpush.msra.mxu0 0.0
    %2022 = vmatpush.msra.mxu0 %v79
    %2023 = vmatpush.msra.mxu0 %v78
    %2024 = vmatpush.msra.mxu0 %v77
    %2025 = vmatpush.msra.mxu0 %v76
    %2026 = vmatpush.msra.mxu0 %v75
    %2027 = vmatpush.msra.mxu0 %v74
    %2028 = vmatpush.msra.mxu0 %v73
    %2029 = vmatpush.msra.mxu0 %v72
    %2030 = vmatmul.f32.gmra.mxu0 %v2012
    %v2031 = vpop.f32.mrf.mxu0
    %v2032 = vadd.f32 %v295, %v2031
    %2033 = vdwg.mxu0
    %v2034 = vmul.f32 %v2032, 0.5
    %v2035 = vsel %vm131, %v2032, %v2034
    %v2036 = vtanh.pop %v2035
    %v2037 = vmul.f32 %v2036, 0.5
    %v2038 = vadd.f32 %v2037, 0.5
    %v2039 = vsel %vm131, %v2036, %v2038
    %v2040 = vmul.f32 %v2039, %v1874
    %2042 = vrot.lane.b32.xlu0 %v2039, 64
    %v2043 = vpop.permute.xlu0 %2042
    %v2045 = vmul.f32 %v2039, %v2043
    %2047 = vrot.lane.b32.xlu0 %v2045, 32
    %v2048 = vpop.permute.xlu0 %2047
    %v2050 = vadd.f32 %v2040, %v2048
    %v2051 = vtanh.pop %v2050
    %2053 = vrot.lane.b32.xlu0 %v2051, 64
    %v2054 = vpop.permute.xlu0 %2053
    %v2056 = vmul.f32 %v2039, %v2054
    %v2058 = vrot.slane %v2056, 4
    %2059 = vrot.lane.b32.xlu0 %v2058, 64
    %v2060 = vpop.permute.xlu0 %2059
    %2062 = vrot.lane.b32.xlu0 %v2058, 96
    %v2063 = vpop.permute.xlu0 %2062
    %v2065 = vsel %vm232, %v292, %v2060
    %v2066 = vsel %vm297, %v2065, %v2063
    %v2067 = vsel %vm354, %v2066, %v1954
    %v2069 = vrot.slane %v2067, 4
    %2071 = vmatpush.msra.mxu0 %v111
    %2072 = vmatpush.msra.mxu0 %v109
    %2073 = vmatpush.msra.mxu0 %v107
    %2074 = vmatpush.msra.mxu0 %v105
    %2075 = vmatpush.msra.mxu0 %v103
    %2076 = vmatpush.msra.mxu0 %v101
    %2077 = vmatpush.msra.mxu0 %v99
    %2078 = vmatpush.msra.mxu0 %v97
    %2079 = vmatpush.msra.mxu0 %v95
    %2080 = vmatpush.msra.mxu0 %v93
    %2081 = vmatpush.msra.mxu0 %v91
    %2082 = vmatpush.msra.mxu0 %v89
    %2083 = vmatpush.msra.mxu0 %v87
    %2084 = vmatpush.msra.mxu0 %v85
    %2085 = vmatpush.msra.mxu0 %v83
    %2086 = vmatpush.msra.mxu0 %v81
    %2087 = vmatmul.f32.gmra.mxu0 %v2069
    %v2088 = vpop.f32.mrf.mxu0
    %v2089 = vadd.f32 %v357, %v2088
    %2090 = vdwg.mxu0
    %2091 = vmatpush.msra.mxu0 %v112
    %2092 = vmatpush.msra.mxu0 %v110
    %2093 = vmatpush.msra.mxu0 %v108
    %2094 = vmatpush.msra.mxu0 %v106
    %2095 = vmatpush.msra.mxu0 %v104
    %2096 = vmatpush.msra.mxu0 %v102
    %2097 = vmatpush.msra.mxu0 %v100
    %2098 = vmatpush.msra.mxu0 %v98
    %2099 = vmatpush.msra.mxu0 %v96
    %2100 = vmatpush.msra.mxu0 %v94
    %2101 = vmatpush.msra.mxu0 %v92
    %2102 = vmatpush.msra.mxu0 %v90
    %2103 = vmatpush.msra.mxu0 %v88
    %2104 = vmatpush.msra.mxu0 %v86
    %2105 = vmatpush.msra.mxu0 %v84
    %2106 = vmatpush.msra.mxu0 %v82
    %2107 = vmatmul.f32.gmra.mxu0 %v2069
    %v2108 = vpop.f32.mrf.mxu0
    %v2109 = vadd.f32 %v358, %v2108
    %2110 = vdwg.mxu0
    %v2111 = vmul.f32 %v2089, 0.5
    %v2112 = vmul.f32 %v2109, 0.5
    %v2113 = vsel %vm131, %v2089, %v2111
    %v2114 = vsel %vm147, %v2109, %v2112
    %v2115 = vtanh.pop %v2113
    %v2116 = vtanh.pop %v2114
    %v2117 = vmul.f32 %v2115, 0.5
    %v2118 = vmul.f32 %v2116, 0.5
    %v2119 = vadd.f32 %v2117, 0.5
    %v2120 = vadd.f32 %v2118, 0.5
    %v2121 = vsel %vm131, %v2115, %v2119
    %v2122 = vsel %vm147, %v2116, %v2120
    %v2123 = vmul.f32 %v2121, %v2050
    %2125 = vrot.lane.b32.xlu0 %v2121, 64
    %v2126 = vpop.permute.xlu0 %2125
    %v2128 = vmul.f32 %v2121, %v2126
    %2130 = vrot.lane.b32.xlu0 %v2128, 32
    %v2131 = vpop.permute.xlu0 %2130
    %v2133 = vadd.f32 %v2123, %v2131
    %v2134 = vtanh.pop %v2133
    %2136 = vrot.lane.b32.xlu0 %v2134, 64
    %v2137 = vpop.permute.xlu0 %2136
    %v2139 = vmul.f32 %v2121, %v2137
    %v2140 = vmul.f32 %v2122, %v1946
    %2142 = vrot.lane.b32.xlu0 %v2122, 64
    %v2143 = vpop.permute.xlu0 %2142
    %v2145 = vmul.f32 %v2122, %v2143
    %2147 = vrot.lane.b32.xlu0 %v2145, 32
    %v2148 = vpop.permute.xlu0 %2147
    %v2150 = vadd.f32 %v2140, %v2148
    %v2151 = vtanh.pop %v2150
    %2153 = vrot.lane.b32.xlu0 %v2151, 64
    %v2154 = vpop.permute.xlu0 %2153
    %v2156 = vmul.f32 %v2122, %v2154
    %2158 = vrot.lane.b32.xlu0 %v2139, 32
    %v2159 = vpop.permute.xlu0 %2158
    %2162 = vrot.lane.b32.xlu0 %v2156, 64
    %v2163 = vpop.permute.xlu0 %2162
    %v2165 = vsel %vm232, %v2159, %v2163
    %v2167 = vsel %vm297, %v2165, 0
    %2169 = vmatpush.msra.mxu0 0.0
    %2170 = vmatpush.msra.mxu0 0.0
    %2171 = vmatpush.msra.mxu0 0.0
    %2172 = vmatpush.msra.mxu0 0.0
    %2173 = vmatpush.msra.mxu0 0.0
    %2174 = vmatpush.msra.mxu0 0.0
    %2175 = vmatpush.msra.mxu0 0.0
    %2176 = vmatpush.msra.mxu0 0.0
    %2177 = vmatpush.msra.mxu0 %v112
    %2178 = vmatpush.msra.mxu0 %v110
    %2179 = vmatpush.msra.mxu0 %v108
    %2180 = vmatpush.msra.mxu0 %v106
    %2181 = vmatpush.msra.mxu0 %v104
    %2182 = vmatpush.msra.mxu0 %v102
    %2183 = vmatpush.msra.mxu0 %v100
    %2184 = vmatpush.msra.mxu0 %v98
    %2185 = vmatmul.f32.gmra.mxu0 %v2167
    %v2186 = vpop.f32.mrf.mxu0
    %v2187 = vadd.f32 %v460, %v2186
    %2188 = vdwg.mxu0
    %v2189 = vmul.f32 %v2187, 0.5
    %v2190 = vsel %vm131, %v2187, %v2189
    %v2191 = vtanh.pop %v2190
    %v2192 = vmul.f32 %v2191, 0.5
    %v2193 = vadd.f32 %v2192, 0.5
    %v2194 = vsel %vm131, %v2191, %v2193
    %v2195 = vmul.f32 %v2194, %v2150
    %2197 = vrot.lane.b32.xlu0 %v2194, 64
    %v2198 = vpop.permute.xlu0 %2197
    %v2200 = vmul.f32 %v2194, %v2198
    %2202 = vrot.lane.b32.xlu0 %v2200, 32
    %v2203 = vpop.permute.xlu0 %2202
    %v2205 = vadd.f32 %v2195, %v2203
    %v2206 = vtanh.pop %v2205
    %2208 = vrot.lane.b32.xlu0 %v2206, 64
    %v2209 = vpop.permute.xlu0 %2208
    %v2211 = vmul.f32 %v2194, %v2209
    %v2213 = vrot.slane %v2211, 4
    %v2215 = vsel %vm180, %v2156, %v2213
    %2217 = vrot.lane.b32.xlu0 %v2215, 32
    %v2218 = vpop.permute.xlu0 %2217
    %v2219 = vsel %vm232, %v2218, 0
    %2221 = vmatpush.msra.mxu0 0.0
    %2222 = vmatpush.msra.mxu0 0.0
    %2223 = vmatpush.msra.mxu0 0.0
    %2224 = vmatpush.msra.mxu0 0.0
    %2225 = vmatpush.msra.mxu0 0.0
    %2226 = vmatpush.msra.mxu0 0.0
    %2227 = vmatpush.msra.mxu0 0.0
    %2228 = vmatpush.msra.mxu0 0.0
    %2229 = vmatpush.msra.mxu0 0.0
    %2230 = vmatpush.msra.mxu0 0.0
    %2231 = vmatpush.msra.mxu0 0.0
    %2232 = vmatpush.msra.mxu0 0.0
    %2233 = vmatpush.msra.mxu0 %v65
    %2234 = vmatpush.msra.mxu0 %v64
    %2235 = vmatpush.msra.mxu0 %v63
    %2236 = vmatpush.msra.mxu0 %v62
    %2237 = vmatmul.f32.gmra.mxu0 %v2219
    %v2238 = vpop.f32.mrf.mxu0
    %v2239 = vadd.f32 %v513, %v2238
    %2240 = vdwg.mxu0
    %v2241 = vmax.f32 %v2239, 0.0
    %v2243 = vsel %vm232, %v2241, 0
    %2245 = vmatpush.msra.mxu0 0.0
    %2246 = vmatpush.msra.mxu0 0.0
    %2247 = vmatpush.msra.mxu0 0.0
    %2248 = vmatpush.msra.mxu0 0.0
    %2249 = vmatpush.msra.mxu0 0.0
    %2250 = vmatpush.msra.mxu0 0.0
    %2251 = vmatpush.msra.mxu0 0.0
    %2252 = vmatpush.msra.mxu0 0.0
    %2253 = vmatpush.msra.mxu0 0.0
    %2254 = vmatpush.msra.mxu0 0.0
    %2255 = vmatpush.msra.mxu0 0.0
    %2256 = vmatpush.msra.mxu0 0.0
    %2257 = vmatpush.msra.mxu0 %v70
    %2258 = vmatpush.msra.mxu0 %v69
    %2259 = vmatpush.msra.mxu0 %v68
    %2260 = vmatpush.msra.mxu0 %v67
    %2261 = vmatmul.f32.gmra.mxu0 %v2243
    %v2262 = vpop.f32.mrf.mxu0
    %v2263 = vadd.f32 %v542, %v2262
    %2264 = vdwg.mxu0
    %v2265 = vadd.f32 %v2263, %v154
    %2267 = vrot.lane.b32.xlu0 %v874, 4
    %v2268 = vpop.permute.xlu0 %2267
    %2270 = vrot.lane.b32.xlu0 %v1133, 8
    %v2271 = vpop.permute.xlu0 %2270
    %2274 = vrot.lane.b32.xlu0 %v1440, 12
    %v2275 = vpop.permute.xlu0 %2274
    %2277 = vrot.lane.b32.xlu0 %v1699, 16
    %v2278 = vpop.permute.xlu0 %2277
    %2281 = vrot.lane.b32.xlu0 %v2006, 20
    %v2282 = vpop.permute.xlu0 %2281
    %2285 = vrot.lane.b32.xlu0 %v2265, 24
    %v2286 = vpop.permute.xlu0 %2285
    %v2288 = vsel %vm158, %v567, %v2268
    %vm2289 = vcmask 64512
    %v2290 = vsel %vm2289, %v2288, %v2271
    %vm2291 = vcmask 97280
    %v2292 = vsel %vm2291, %v2290, %v2275
    %vm2293 = vcmask 130048
    %v2294 = vsel %vm2293, %v2292, %v2278
    %vm2295 = vcmask 162816
    %v2296 = vsel %vm2295, %v2294, %v2282
    %vm2297 = vcmask 195584
    %v2298 = vsel %vm2297, %v2296, %v2286
    %vm2299 = vcmask 228352
    %2300 = vst.msk [vmem:[#allocation5] sm:$0xff] %vm2299, %v2298
    // Predicated region
    $region50: #{tpu_custom_call.1} parent=1 // pred_check
      _
    $region51: #{tpu_custom_call.1} parent=1 // pred_check_branch
      %2302 = sbr.rel (0) target = $region53
    $region52: #{tpu_custom_call.1} parent=1 // pred_region
      %2304 = vsyncadd [#allocation4], 0
      %s2306 = sshll.u32 [#allocation5], 4
      %s2307 = int_to_ptr.vmem [resolvable:$true] %s2306
      %s2308 = sshll.u32 %s11, 4
      %s2309 = int_to_ptr.hbm [resolvable:$true] %s2308
      %2311 = dma.vmem_to_hbm [thread:$0]  %s2307, 128, %s2309, [#allocation4]
    $region53: #{tpu_custom_call.1} parent=1 // pred_fallthru
      _
    // Predicated region
    $region54: #{tpu_custom_call.1} parent=1 // pred_check
      _
    $region55: #{tpu_custom_call.1} parent=1 // pred_check_branch
      %2313 = sbr.rel (0) target = $region57
    $region56: #{tpu_custom_call.1} parent=1 // pred_region
      %2315 = dma.done [#allocation4], 128
    $region57: #{tpu_custom_call.1} parent=1 // pred_fallthru
      _
    %2316 = vsyncpa [#allocation3], 1
    %2317 = vsyncpa [#allocation4], 1

</llo_original>
